<compile_context>
chip_gen: v5e
topology: v5e:2x2
jax: 0.10.0
libtpu: 0.0.40
codegen_flags: <defaults>
</compile_context>

<pallas_src>
import functools

import numpy as np
import jax
import jax.numpy as jnp
from jax.experimental import pallas as pl
from jax.experimental.pallas import tpu as pltpu


# --------------------------- fused Pallas kernel ----------------------------

def _gelu_exact(v):
    """Exact (erf-form) GELU, matching torch nn.GELU() default.
    erf via the Abramowitz-Stegun 7.1.26 rational approximation
    (|error| <= 1.5e-7); the exp runs on the EUP so it is essentially free.
    (pl.reciprocal(..., approx=True) could replace the divide on v6e/v7x.)"""
    z = v * 0.7071067811865476          # v / sqrt(2)
    a = jnp.abs(z)
    t = 1.0 / (1.0 + 0.3275911 * a)
    poly = t * (0.254829592 + t * (-0.284496736 + t * (1.421413741
             + t * (-1.453152027 + t * 1.061405429))))
    erf_a = 1.0 - poly * jnp.exp(-a * a)
    erf_z = jnp.where(z >= 0.0, erf_a, -erf_a)
    return 0.5 * v * (1.0 + erf_z)


def _convmixer_kernel(colsT_ref, ew_ref, pcp_ref, dww_ref, masks_ref, pww_ref,
                      hwb_ref, poolsel_ref, out_ref, xbuf_ref,
                      *, n, hp, wp, c, ksize, depth, eps):
    m = n * hp * wp                       # batch*spatial size (the lane axis)
    pad = ksize // 2
    inv_m = 1.0 / m
    buf_off = (xbuf_ref.shape[1] - m) // 2   # = 128: centre store is lane-aligned

    def batchnorm(v, g, b):
        # nn.BatchNorm2d training mode: biased batch variance over N*H*W.
        # Fused single pass: the two cross-lane reductions are independent.
        s1 = jnp.sum(v, axis=1, keepdims=True)
        s2 = jnp.sum(v * v, axis=1, keepdims=True)
        mean = s1 * inv_m
        var = jnp.maximum(s2 * inv_m - mean * mean, 0.0)
        return (v - mean) * (g * jax.lax.rsqrt(var + eps)) + b

    # Zero the lane-padded depthwise buffer once; only the centre window is
    # rewritten per block.  Out-of-array taps read these zeros; row / image
    # crossings inside the flat index are killed by the per-tap masks.
    xbuf_ref[...] = jnp.zeros(xbuf_ref.shape, xbuf_ref.dtype)

    pcp = pcp_ref[...]                    # (C, 3 + 6*depth) per-channel params

    # ---- input_embedding: Conv2d(3, dim, k=patch, stride=patch) + GELU + BN ----
    y = jnp.dot(ew_ref[...], colsT_ref[...],
                preferred_element_type=jnp.float32) + pcp[:, 0:1]
    x2 = batchnorm(_gelu_exact(y), pcp[:, 1:2], pcp[:, 2:3])   # (C, M) f32

    # ---- mixer blocks (static unroll over depth) ----
    for l in range(depth):
        base = 3 + 6 * l
        # spatial: Residual( depthwise 5x5 'same' (permuted heads) -> BN )
        res = x2
        xbuf_ref[:, pl.ds(buf_off, m)] = x2
        taps = dww_ref[l]                                      # (C, k*k) f32
        acc = jnp.zeros((c, m), jnp.float32)
        for ky in range(ksize):
            for kx in range(ksize):
                t = ky * ksize + kx
                off = (ky - pad) * wp + (kx - pad)
                win = xbuf_ref[:, pl.ds(buf_off + off, m)]     # (C, M) lane window
                mask = masks_ref[pl.ds(t, 1), :]               # (1, M) 0/1
                acc = acc + (win * mask) * taps[:, t:t + 1]
        y = acc + pcp[:, base:base + 1]
        x2 = batchnorm(y, pcp[:, base + 1:base + 2],
                       pcp[:, base + 2:base + 3]) + res

        # channel: Conv2d(dim, dim, 1) -> GELU -> BN
        y = jnp.dot(pww_ref[l], x2.astype(jnp.bfloat16),
                    preferred_element_type=jnp.float32) + pcp[:, base + 3:base + 4]
        x2 = batchnorm(_gelu_exact(y), pcp[:, base + 4:base + 5],
                       pcp[:, base + 5:base + 6])

    # ---- head: AdaptiveAvgPool2d((1,1)) + Flatten + Linear (logits^T out) ----
    pooled = jnp.dot(x2, poolsel_ref[...],
                     preferred_element_type=jnp.float32)       # (C, N) f32
    hwb = hwb_ref[...]                                         # (n_classes, C+1)
    out_ref[...] = (jnp.dot(hwb[:, :c], pooled,
                            preferred_element_type=jnp.float32) + hwb[:, c:c + 1])


# ------------------------------ forward wrapper ------------------------------

def convmixer_forward(x_nchw, params, *, patch):
    n, cin, h, w = x_nchw.shape
    hp, wp = h // patch, w // patch
    dim = params['embed_w'].shape[0]
    depth = len(params['layers'])
    ksize = params['layers'][0]['dw_w'].shape[-1]
    n_classes = params['head_w'].shape[0]
    pad = ksize // 2
    m = n * hp * wp
    assert pad * wp + pad <= 128, "lane padding of the depthwise buffer too small"

    # TODO(synk): im2col stays as host-side layout plumbing (pure reshape /
    # transpose, no compute); rows ordered (cin, ky, kx), lanes (image, y, x).
    colsT = (x_nchw.reshape(n, cin, hp, patch, wp, patch)
             .transpose(1, 3, 5, 0, 2, 4)
             .reshape(cin * patch * patch, m).astype(jnp.bfloat16))
    ew = params['embed_w'].reshape(dim, cin * patch * patch).astype(jnp.bfloat16)

    # Pack every per-channel vector into one (C, 3 + 6*depth) table.
    pc_cols = [params['embed_b'], params['bn0_g'], params['bn0_b']]
    dww, pww = [], []
    for layer in params['layers']:
        pc_cols += [layer['dw_b'], layer['bn1_g'], layer['bn1_b'],
                    layer['pw_b'], layer['bn2_g'], layer['bn2_b']]
        wd = layer['dw_w'][layer['choice_idx']][:, 0]          # (C, k, k) permuted heads
        dww.append(wd.reshape(dim, ksize * ksize))
        pww.append(layer['pw_w'][:, :, 0, 0])                  # (C_out, C_in)
    pcp = jnp.stack(pc_cols, axis=1).astype(jnp.float32)       # (C, 3+6*depth)
    dww = jnp.stack(dww).astype(jnp.float32)                   # (depth, C, k*k)
    pww = jnp.stack(pww).astype(jnp.bfloat16)                  # (depth, C, C)
    hwb = jnp.concatenate(
        [params['head_w'], params['head_b'].reshape(n_classes, 1)],
        axis=1).astype(jnp.float32)                            # (n_classes, C+1)

    # Per-tap boundary masks (row / image crossings of the flat lane index)
    # and the average-pool selector -- compile-time constants.
    mv = np.arange(m)
    ym, xm = (mv % (hp * wp)) // wp, mv % wp
    masks_np = np.zeros((ksize * ksize, m), np.float32)
    for ky in range(ksize):
        for kx in range(ksize):
            ok = ((ym + ky - pad >= 0) & (ym + ky - pad < hp) &
                  (xm + kx - pad >= 0) & (xm + kx - pad < wp))
            masks_np[ky * ksize + kx] = ok
    masks = jnp.asarray(masks_np)
    poolsel_np = np.zeros((m, n), np.float32)
    poolsel_np[mv, mv // (hp * wp)] = 1.0 / (hp * wp)
    poolsel = jnp.asarray(poolsel_np)

    kern = functools.partial(_convmixer_kernel, n=n, hp=hp, wp=wp, c=dim,
                             ksize=ksize, depth=depth, eps=1e-5)
    # Single fused kernel, no grid: the full (tiny) operands map straight into
    # VMEM; the lane-padded depthwise buffer is a VMEM scratch.
    logits_t = pl.pallas_call(
        kern,
        out_shape=jax.ShapeDtypeStruct((n_classes, n), jnp.float32),
        scratch_shapes=[pltpu.VMEM((dim, m + 256), jnp.float32)],
    )(colsT, ew, pcp, dww, masks, pww, hwb, poolsel)
    return logits_t.T                                          # (N, n_classes)


# ----------------------- pure-JAX reference (for checking) -------------------

def _reference_forward(x_nchw, params, *, patch, eps=1e-5):
    dn = ('NCHW', 'OIHW', 'NCHW')

    def bn(v, g, b):
        mean = jnp.mean(v, axis=(0, 2, 3), keepdims=True)
        var = jnp.mean(jnp.square(v - mean), axis=(0, 2, 3), keepdims=True)
        return ((v - mean) * (g.reshape(1, -1, 1, 1) / jnp.sqrt(var + eps))
                + b.reshape(1, -1, 1, 1))

    gelu = lambda v: jax.nn.gelu(v, approximate=False)

    x = jax.lax.conv_general_dilated(x_nchw, params['embed_w'], (patch, patch),
                                     'VALID', dimension_numbers=dn)
    x = bn(gelu(x + params['embed_b'].reshape(1, -1, 1, 1)),
           params['bn0_g'], params['bn0_b'])
    dim = x.shape[1]
    for layer in params['layers']:
        wd = layer['dw_w'][layer['choice_idx']]                # (dim,1,k,k)
        y = jax.lax.conv_general_dilated(x, wd, (1, 1), 'SAME',
                                         feature_group_count=dim,
                                         dimension_numbers=dn)
        y = y + layer['dw_b'].reshape(1, -1, 1, 1)
        x = bn(y, layer['bn1_g'], layer['bn1_b']) + x
        y = jax.lax.conv_general_dilated(x, layer['pw_w'], (1, 1), 'VALID',
                                         dimension_numbers=dn)
        y = y + layer['pw_b'].reshape(1, -1, 1, 1)
        x = bn(gelu(y), layer['bn2_g'], layer['bn2_b'])
    pooled = jnp.mean(x, axis=(2, 3))
    return pooled @ params['head_w'].T + params['head_b']


# ------------------------- deterministic parameters --------------------------

def _uniform(key, shape, bound):
    return jax.random.uniform(key, shape, jnp.float32, minval=-bound, maxval=bound)


def init_params(key, *, dim, depth, ksize, patch, n_classes, in_ch=3):
    keys = iter(jax.random.split(key, 4 + 5 * depth))
    embed_bound = float((in_ch * patch * patch) ** -0.5)
    params = {
        'embed_w': _uniform(next(keys), (dim, in_ch, patch, patch), embed_bound),
        'embed_b': _uniform(next(keys), (dim,), embed_bound),
        'bn0_g': jnp.ones((dim,), jnp.float32),
        'bn0_b': jnp.zeros((dim,), jnp.float32),
        'layers': [],
    }
    for _ in range(depth):
        layer = {
            # SpatialConv2d init='random': 1/k * (2*rand - 1), heads == dim
            'dw_w': _uniform(next(keys), (dim, 1, ksize, ksize), 1.0 / ksize),
            'dw_b': _uniform(next(keys), (dim,), 1.0 / ksize),
            # heads == C, replace=False  ->  choice_idx is a permutation
            'choice_idx': jax.random.permutation(next(keys), dim),
            'bn1_g': jnp.ones((dim,), jnp.float32),
            'bn1_b': jnp.zeros((dim,), jnp.float32),
            'pw_w': _uniform(next(keys), (dim, dim, 1, 1), float(dim ** -0.5)),
            'pw_b': _uniform(next(keys), (dim,), float(dim ** -0.5)),
            'bn2_g': jnp.ones((dim,), jnp.float32),
            'bn2_b': jnp.zeros((dim,), jnp.float32),
        }
        params['layers'].append(layer)
    params['head_w'] = _uniform(next(keys), (n_classes, dim), float(dim ** -0.5))
    params['head_b'] = _uniform(next(keys), (n_classes,), float(dim ** -0.5))
    return params


if __name__ == "__main__":
    N, IN_CH, IMG = 2, 3, 16
    DIM, DEPTH, KSIZE, PATCH, N_CLASSES = 32, 2, 5, 2, 10

    root = jax.random.PRNGKey(0)
    k_params, k_x = jax.random.split(root)
    params = init_params(k_params, dim=DIM, depth=DEPTH, ksize=KSIZE,
                         patch=PATCH, n_classes=N_CLASSES, in_ch=IN_CH)
    x = jax.random.normal(k_x, (N, IN_CH, IMG, IMG), jnp.float32)   # NCHW like PyTorch

    fwd = jax.jit(functools.partial(convmixer_forward, patch=PATCH))
    logits = jax.block_until_ready(fwd(x, params))

    assert logits.shape == (N, N_CLASSES)
    assert bool(jnp.all(jnp.isfinite(logits)))

    # Check against a plain-JAX f32 reference; the only divergence sources are
    # the bf16 MXU operands (embed / pointwise) and the f32-accurate erf approx.
    ref = _reference_forward(x, params, patch=PATCH)
    assert float(jnp.max(jnp.abs(logits - ref))) < 0.1

    print("KERNEL_OK")
</pallas_src>

<mosaic_0001>
module attributes {stable_mosaic.version = 11 : i64} {
  func.func @_convmixer_kernel(%arg0: memref<12x128xbf16, #tpu.memory_space<vmem>>, %arg1: memref<32x12xbf16, #tpu.memory_space<vmem>>, %arg2: memref<32x15xf32, #tpu.memory_space<vmem>>, %arg3: memref<2x32x25xf32, #tpu.memory_space<vmem>>, %arg4: memref<25x128xf32, #tpu.memory_space<vmem>>, %arg5: memref<2x32x32xbf16, #tpu.memory_space<vmem>>, %arg6: memref<10x33xf32, #tpu.memory_space<vmem>>, %arg7: memref<128x2xf32, #tpu.memory_space<vmem>>, %arg8: memref<10x2xf32, #tpu.memory_space<vmem>>, %arg9: memref<32x384xf32, #tpu.memory_space<vmem>>) attributes {dimension_semantics = [], scalar_prefetch = 0 : i64, scratch_operands = 1 : i64, tpu.core_type = #tpu.core_type<tc>} {
    %cst = arith.constant 0.000000e+00 : f32
    %0 = vector.broadcast %cst : f32 to vector<32x384xf32>
    %c0 = arith.constant 0 : index
    %c0_0 = arith.constant 0 : index
    %1 = vector.load %arg9[%c0, %c0_0] : memref<32x384xf32, #tpu.memory_space<vmem>>, vector<32x384xf32>
    tpu.vector_store %arg9[%c0, %c0_0], %0 {strides = array<i32>} : memref<32x384xf32, #tpu.memory_space<vmem>>, vector<32x384xf32>,
    %c0_1 = arith.constant 0 : index
    %c0_2 = arith.constant 0 : index
    %2 = vector.load %arg2[%c0_1, %c0_2] : memref<32x15xf32, #tpu.memory_space<vmem>>, vector<32x15xf32>
    %c0_3 = arith.constant 0 : index
    %c0_4 = arith.constant 0 : index
    %3 = vector.load %arg1[%c0_3, %c0_4] : memref<32x12xbf16, #tpu.memory_space<vmem>>, vector<32x12xbf16>
    %c0_5 = arith.constant 0 : index
    %c0_6 = arith.constant 0 : index
    %4 = vector.load %arg0[%c0_5, %c0_6] : memref<12x128xbf16, #tpu.memory_space<vmem>>, vector<12x128xbf16>
    %cst_7 = arith.constant dense<0.000000e+00> : vector<32x128xf32>
    %5 = tpu.matmul %3, %4, %cst_7 {dimension_numbers = #tpu.dot_dimension_numbers<[1], [0], [0], [1], [0, 0, 1, 1], [], []>} : vector<32x12xbf16>, vector<12x128xbf16>, vector<32x128xf32> -> vector<32x128xf32>
    %6 = vector.extract_strided_slice %2 {offsets = [0, 0], sizes = [32, 1], strides = [1, 1]} : vector<32x15xf32> to vector<32x1xf32>
    %7 = vector.broadcast %6 : vector<32x1xf32> to vector<32x128xf32>
    %8 = arith.addf %5, %7 : vector<32x128xf32>
    %cst_8 = arith.constant 0.707106769 : f32
    %9 = vector.broadcast %cst_8 : f32 to vector<32x128xf32>
    %10 = arith.mulf %8, %9 : vector<32x128xf32>
    %11 = math.absf %10 : vector<32x128xf32>
    %cst_9 = arith.constant 0.327591091 : f32
    %12 = vector.broadcast %cst_9 : f32 to vector<32x128xf32>
    %13 = arith.mulf %12, %11 : vector<32x128xf32>
    %cst_10 = arith.constant 1.000000e+00 : f32
    %14 = vector.broadcast %cst_10 : f32 to vector<32x128xf32>
    %15 = arith.addf %14, %13 : vector<32x128xf32>
    %cst_11 = arith.constant 1.000000e+00 : f32
    %16 = vector.broadcast %cst_11 : f32 to vector<32x128xf32>
    %17 = arith.divf %16, %15 : vector<32x128xf32>
    %cst_12 = arith.constant 1.06140542 : f32
    %18 = vector.broadcast %cst_12 : f32 to vector<32x128xf32>
    %19 = arith.mulf %17, %18 : vector<32x128xf32>
    %cst_13 = arith.constant -1.45315206 : f32
    %20 = vector.broadcast %cst_13 : f32 to vector<32x128xf32>
    %21 = arith.addf %20, %19 : vector<32x128xf32>
    %22 = arith.mulf %17, %21 : vector<32x128xf32>
    %cst_14 = arith.constant 1.42141378 : f32
    %23 = vector.broadcast %cst_14 : f32 to vector<32x128xf32>
    %24 = arith.addf %23, %22 : vector<32x128xf32>
    %25 = arith.mulf %17, %24 : vector<32x128xf32>
    %cst_15 = arith.constant -0.284496725 : f32
    %26 = vector.broadcast %cst_15 : f32 to vector<32x128xf32>
    %27 = arith.addf %26, %25 : vector<32x128xf32>
    %28 = arith.mulf %17, %27 : vector<32x128xf32>
    %cst_16 = arith.constant 0.254829586 : f32
    %29 = vector.broadcast %cst_16 : f32 to vector<32x128xf32>
    %30 = arith.addf %29, %28 : vector<32x128xf32>
    %31 = arith.mulf %17, %30 : vector<32x128xf32>
    %cst_17 = arith.constant 0.000000e+00 : f32
    %32 = vector.broadcast %cst_17 : f32 to vector<32x128xf32>
    %33 = arith.subf %32, %11 : vector<32x128xf32>
    %34 = arith.mulf %33, %11 : vector<32x128xf32>
    %35 = math.exp %34 : vector<32x128xf32>
    %36 = arith.mulf %31, %35 : vector<32x128xf32>
    %cst_18 = arith.constant 1.000000e+00 : f32
    %37 = vector.broadcast %cst_18 : f32 to vector<32x128xf32>
    %38 = arith.subf %37, %36 : vector<32x128xf32>
    %cst_19 = arith.constant 0.000000e+00 : f32
    %39 = vector.broadcast %cst_19 : f32 to vector<32x128xf32>
    %40 = arith.cmpf oge, %10, %39 : vector<32x128xf32>
    %cst_20 = arith.constant 0.000000e+00 : f32
    %41 = vector.broadcast %cst_20 : f32 to vector<32x128xf32>
    %42 = arith.subf %41, %38 : vector<32x128xf32>
    %43 = arith.select %40, %38, %42 : vector<32x128xi1>, vector<32x128xf32>
    %cst_21 = arith.constant 5.000000e-01 : f32
    %44 = vector.broadcast %cst_21 : f32 to vector<32x128xf32>
    %45 = arith.mulf %44, %8 : vector<32x128xf32>
    %cst_22 = arith.constant 1.000000e+00 : f32
    %46 = vector.broadcast %cst_22 : f32 to vector<32x128xf32>
    %47 = arith.addf %46, %43 : vector<32x128xf32>
    %48 = arith.mulf %45, %47 : vector<32x128xf32>
    %49 = vector.extract_strided_slice %2 {offsets = [0, 1], sizes = [32, 1], strides = [1, 1]} : vector<32x15xf32> to vector<32x1xf32>
    %50 = vector.extract_strided_slice %2 {offsets = [0, 2], sizes = [32, 1], strides = [1, 1]} : vector<32x15xf32> to vector<32x1xf32>
    %cst_23 = arith.constant dense<0.000000e+00> : vector<32xf32>
    %51 = vector.multi_reduction <add>, %48, %cst_23 [1] : vector<32x128xf32> to vector<32xf32>
    %52 = vector.shape_cast %51 : vector<32xf32> to vector<32x1xf32>
    %53 = arith.mulf %48, %48 : vector<32x128xf32>
    %cst_24 = arith.constant dense<0.000000e+00> : vector<32xf32>
    %54 = vector.multi_reduction <add>, %53, %cst_24 [1] : vector<32x128xf32> to vector<32xf32>
    %55 = vector.shape_cast %54 : vector<32xf32> to vector<32x1xf32>
    %cst_25 = arith.constant 7.812500e-03 : f32
    %56 = vector.broadcast %cst_25 : f32 to vector<32x1xf32>
    %57 = arith.mulf %52, %56 : vector<32x1xf32>
    %cst_26 = arith.constant 7.812500e-03 : f32
    %58 = vector.broadcast %cst_26 : f32 to vector<32x1xf32>
    %59 = arith.mulf %55, %58 : vector<32x1xf32>
    %60 = arith.mulf %57, %57 : vector<32x1xf32>
    %61 = arith.subf %59, %60 : vector<32x1xf32>
    %cst_27 = arith.constant 0.000000e+00 : f32
    %62 = vector.broadcast %cst_27 : f32 to vector<32x1xf32>
    %63 = arith.maximumf %61, %62 : vector<32x1xf32>
    %64 = vector.broadcast %57 : vector<32x1xf32> to vector<32x128xf32>
    %65 = arith.subf %48, %64 : vector<32x128xf32>
    %cst_28 = arith.constant 9.99999974E-6 : f32
    %66 = vector.broadcast %cst_28 : f32 to vector<32x1xf32>
    %67 = arith.addf %63, %66 : vector<32x1xf32>
    %68 = math.rsqrt %67 : vector<32x1xf32>
    %69 = arith.mulf %49, %68 : vector<32x1xf32>
    %70 = vector.broadcast %69 : vector<32x1xf32> to vector<32x128xf32>
    %71 = arith.mulf %65, %70 : vector<32x128xf32>
    %72 = vector.broadcast %50 : vector<32x1xf32> to vector<32x128xf32>
    %73 = arith.addf %71, %72 : vector<32x128xf32>
    %c0_29 = arith.constant 0 : index
    %c128 = arith.constant 128 : index
    %74 = vector.load %arg9[%c0_29, %c128] : memref<32x384xf32, #tpu.memory_space<vmem>>, vector<32x128xf32>
    tpu.vector_store %arg9[%c0_29, %c128], %73 {strides = array<i32>} : memref<32x384xf32, #tpu.memory_space<vmem>>, vector<32x128xf32>,
    %c0_30 = arith.constant 0 : index
    %c0_31 = arith.constant 0 : index
    %c0_32 = arith.constant 0 : index
    %75 = vector.load %arg3[%c0_30, %c0_31, %c0_32] : memref<2x32x25xf32, #tpu.memory_space<vmem>>, vector<1x32x25xf32>
    %76 = vector.shape_cast %75 : vector<1x32x25xf32> to vector<32x25xf32>
    %cst_33 = arith.constant 0.000000e+00 : f32
    %77 = vector.broadcast %cst_33 : f32 to vector<32x128xf32>
    %c0_34 = arith.constant 0 : index
    %c110 = arith.constant 110 : index
    %78 = vector.load %arg9[%c0_34, %c110] : memref<32x384xf32, #tpu.memory_space<vmem>>, vector<32x128xf32>
    %c0_35 = arith.constant 0 : index
    %c0_36 = arith.constant 0 : index
    %79 = vector.load %arg4[%c0_35, %c0_36] : memref<25x128xf32, #tpu.memory_space<vmem>>, vector<1x128xf32>
    %80 = vector.broadcast %79 : vector<1x128xf32> to vector<32x128xf32>
    %81 = arith.mulf %78, %80 : vector<32x128xf32>
    %82 = vector.extract_strided_slice %76 {offsets = [0, 0], sizes = [32, 1], strides = [1, 1]} : vector<32x25xf32> to vector<32x1xf32>
    %83 = vector.broadcast %82 : vector<32x1xf32> to vector<32x128xf32>
    %84 = arith.mulf %81, %83 : vector<32x128xf32>
    %85 = arith.addf %77, %84 : vector<32x128xf32>
    %c0_37 = arith.constant 0 : index
    %c111 = arith.constant 111 : index
    %86 = vector.load %arg9[%c0_37, %c111] : memref<32x384xf32, #tpu.memory_space<vmem>>, vector<32x128xf32>
    %c1 = arith.constant 1 : index
    %c0_38 = arith.constant 0 : index
    %87 = vector.load %arg4[%c1, %c0_38] : memref<25x128xf32, #tpu.memory_space<vmem>>, vector<1x128xf32>
    %88 = vector.broadcast %87 : vector<1x128xf32> to vector<32x128xf32>
    %89 = arith.mulf %86, %88 : vector<32x128xf32>
    %90 = vector.extract_strided_slice %76 {offsets = [0, 1], sizes = [32, 1], strides = [1, 1]} : vector<32x25xf32> to vector<32x1xf32>
    %91 = vector.broadcast %90 : vector<32x1xf32> to vector<32x128xf32>
    %92 = arith.mulf %89, %91 : vector<32x128xf32>
    %93 = arith.addf %85, %92 : vector<32x128xf32>
    %c0_39 = arith.constant 0 : index
    %c112 = arith.constant 112 : index
    %94 = vector.load %arg9[%c0_39, %c112] : memref<32x384xf32, #tpu.memory_space<vmem>>, vector<32x128xf32>
    %c2 = arith.constant 2 : index
    %c0_40 = arith.constant 0 : index
    %95 = vector.load %arg4[%c2, %c0_40] : memref<25x128xf32, #tpu.memory_space<vmem>>, vector<1x128xf32>
    %96 = vector.broadcast %95 : vector<1x128xf32> to vector<32x128xf32>
    %97 = arith.mulf %94, %96 : vector<32x128xf32>
    %98 = vector.extract_strided_slice %76 {offsets = [0, 2], sizes = [32, 1], strides = [1, 1]} : vector<32x25xf32> to vector<32x1xf32>
    %99 = vector.broadcast %98 : vector<32x1xf32> to vector<32x128xf32>
    %100 = arith.mulf %97, %99 : vector<32x128xf32>
    %101 = arith.addf %93, %100 : vector<32x128xf32>
    %c0_41 = arith.constant 0 : index
    %c113 = arith.constant 113 : index
    %102 = vector.load %arg9[%c0_41, %c113] : memref<32x384xf32, #tpu.memory_space<vmem>>, vector<32x128xf32>
    %c3 = arith.constant 3 : index
    %c0_42 = arith.constant 0 : index
    %103 = vector.load %arg4[%c3, %c0_42] : memref<25x128xf32, #tpu.memory_space<vmem>>, vector<1x128xf32>
    %104 = vector.broadcast %103 : vector<1x128xf32> to vector<32x128xf32>
    %105 = arith.mulf %102, %104 : vector<32x128xf32>
    %106 = vector.extract_strided_slice %76 {offsets = [0, 3], sizes = [32, 1], strides = [1, 1]} : vector<32x25xf32> to vector<32x1xf32>
    %107 = vector.broadcast %106 : vector<32x1xf32> to vector<32x128xf32>
    %108 = arith.mulf %105, %107 : vector<32x128xf32>
    %109 = arith.addf %101, %108 : vector<32x128xf32>
    %c0_43 = arith.constant 0 : index
    %c114 = arith.constant 114 : index
    %110 = vector.load %arg9[%c0_43, %c114] : memref<32x384xf32, #tpu.memory_space<vmem>>, vector<32x128xf32>
    %c4 = arith.constant 4 : index
    %c0_44 = arith.constant 0 : index
    %111 = vector.load %arg4[%c4, %c0_44] : memref<25x128xf32, #tpu.memory_space<vmem>>, vector<1x128xf32>
    %112 = vector.broadcast %111 : vector<1x128xf32> to vector<32x128xf32>
    %113 = arith.mulf %110, %112 : vector<32x128xf32>
    %114 = vector.extract_strided_slice %76 {offsets = [0, 4], sizes = [32, 1], strides = [1, 1]} : vector<32x25xf32> to vector<32x1xf32>
    %115 = vector.broadcast %114 : vector<32x1xf32> to vector<32x128xf32>
    %116 = arith.mulf %113, %115 : vector<32x128xf32>
    %117 = arith.addf %109, %116 : vector<32x128xf32>
    %c0_45 = arith.constant 0 : index
    %c118 = arith.constant 118 : index
    %118 = vector.load %arg9[%c0_45, %c118] : memref<32x384xf32, #tpu.memory_space<vmem>>, vector<32x128xf32>
    %c5 = arith.constant 5 : index
    %c0_46 = arith.constant 0 : index
    %119 = vector.load %arg4[%c5, %c0_46] : memref<25x128xf32, #tpu.memory_space<vmem>>, vector<1x128xf32>
    %120 = vector.broadcast %119 : vector<1x128xf32> to vector<32x128xf32>
    %121 = arith.mulf %118, %120 : vector<32x128xf32>
    %122 = vector.extract_strided_slice %76 {offsets = [0, 5], sizes = [32, 1], strides = [1, 1]} : vector<32x25xf32> to vector<32x1xf32>
    %123 = vector.broadcast %122 : vector<32x1xf32> to vector<32x128xf32>
    %124 = arith.mulf %121, %123 : vector<32x128xf32>
    %125 = arith.addf %117, %124 : vector<32x128xf32>
    %c0_47 = arith.constant 0 : index
    %c119 = arith.constant 119 : index
    %126 = vector.load %arg9[%c0_47, %c119] : memref<32x384xf32, #tpu.memory_space<vmem>>, vector<32x128xf32>
    %c6 = arith.constant 6 : index
    %c0_48 = arith.constant 0 : index
    %127 = vector.load %arg4[%c6, %c0_48] : memref<25x128xf32, #tpu.memory_space<vmem>>, vector<1x128xf32>
    %128 = vector.broadcast %127 : vector<1x128xf32> to vector<32x128xf32>
    %129 = arith.mulf %126, %128 : vector<32x128xf32>
    %130 = vector.extract_strided_slice %76 {offsets = [0, 6], sizes = [32, 1], strides = [1, 1]} : vector<32x25xf32> to vector<32x1xf32>
    %131 = vector.broadcast %130 : vector<32x1xf32> to vector<32x128xf32>
    %132 = arith.mulf %129, %131 : vector<32x128xf32>
    %133 = arith.addf %125, %132 : vector<32x128xf32>
    %c0_49 = arith.constant 0 : index
    %c120 = arith.constant 120 : index
    %134 = vector.load %arg9[%c0_49, %c120] : memref<32x384xf32, #tpu.memory_space<vmem>>, vector<32x128xf32>
    %c7 = arith.constant 7 : index
    %c0_50 = arith.constant 0 : index
    %135 = vector.load %arg4[%c7, %c0_50] : memref<25x128xf32, #tpu.memory_space<vmem>>, vector<1x128xf32>
    %136 = vector.broadcast %135 : vector<1x128xf32> to vector<32x128xf32>
    %137 = arith.mulf %134, %136 : vector<32x128xf32>
    %138 = vector.extract_strided_slice %76 {offsets = [0, 7], sizes = [32, 1], strides = [1, 1]} : vector<32x25xf32> to vector<32x1xf32>
    %139 = vector.broadcast %138 : vector<32x1xf32> to vector<32x128xf32>
    %140 = arith.mulf %137, %139 : vector<32x128xf32>
    %141 = arith.addf %133, %140 : vector<32x128xf32>
    %c0_51 = arith.constant 0 : index
    %c121 = arith.constant 121 : index
    %142 = vector.load %arg9[%c0_51, %c121] : memref<32x384xf32, #tpu.memory_space<vmem>>, vector<32x128xf32>
    %c8 = arith.constant 8 : index
    %c0_52 = arith.constant 0 : index
    %143 = vector.load %arg4[%c8, %c0_52] : memref<25x128xf32, #tpu.memory_space<vmem>>, vector<1x128xf32>
    %144 = vector.broadcast %143 : vector<1x128xf32> to vector<32x128xf32>
    %145 = arith.mulf %142, %144 : vector<32x128xf32>
    %146 = vector.extract_strided_slice %76 {offsets = [0, 8], sizes = [32, 1], strides = [1, 1]} : vector<32x25xf32> to vector<32x1xf32>
    %147 = vector.broadcast %146 : vector<32x1xf32> to vector<32x128xf32>
    %148 = arith.mulf %145, %147 : vector<32x128xf32>
    %149 = arith.addf %141, %148 : vector<32x128xf32>
    %c0_53 = arith.constant 0 : index
    %c122 = arith.constant 122 : index
    %150 = vector.load %arg9[%c0_53, %c122] : memref<32x384xf32, #tpu.memory_space<vmem>>, vector<32x128xf32>
    %c9 = arith.constant 9 : index
    %c0_54 = arith.constant 0 : index
    %151 = vector.load %arg4[%c9, %c0_54] : memref<25x128xf32, #tpu.memory_space<vmem>>, vector<1x128xf32>
    %152 = vector.broadcast %151 : vector<1x128xf32> to vector<32x128xf32>
    %153 = arith.mulf %150, %152 : vector<32x128xf32>
    %154 = vector.extract_strided_slice %76 {offsets = [0, 9], sizes = [32, 1], strides = [1, 1]} : vector<32x25xf32> to vector<32x1xf32>
    %155 = vector.broadcast %154 : vector<32x1xf32> to vector<32x128xf32>
    %156 = arith.mulf %153, %155 : vector<32x128xf32>
    %157 = arith.addf %149, %156 : vector<32x128xf32>
    %c0_55 = arith.constant 0 : index
    %c126 = arith.constant 126 : index
    %158 = vector.load %arg9[%c0_55, %c126] : memref<32x384xf32, #tpu.memory_space<vmem>>, vector<32x128xf32>
    %c10 = arith.constant 10 : index
    %c0_56 = arith.constant 0 : index
    %159 = vector.load %arg4[%c10, %c0_56] : memref<25x128xf32, #tpu.memory_space<vmem>>, vector<1x128xf32>
    %160 = vector.broadcast %159 : vector<1x128xf32> to vector<32x128xf32>
    %161 = arith.mulf %158, %160 : vector<32x128xf32>
    %162 = vector.extract_strided_slice %76 {offsets = [0, 10], sizes = [32, 1], strides = [1, 1]} : vector<32x25xf32> to vector<32x1xf32>
    %163 = vector.broadcast %162 : vector<32x1xf32> to vector<32x128xf32>
    %164 = arith.mulf %161, %163 : vector<32x128xf32>
    %165 = arith.addf %157, %164 : vector<32x128xf32>
    %c0_57 = arith.constant 0 : index
    %c127 = arith.constant 127 : index
    %166 = vector.load %arg9[%c0_57, %c127] : memref<32x384xf32, #tpu.memory_space<vmem>>, vector<32x128xf32>
    %c11 = arith.constant 11 : index
    %c0_58 = arith.constant 0 : index
    %167 = vector.load %arg4[%c11, %c0_58] : memref<25x128xf32, #tpu.memory_space<vmem>>, vector<1x128xf32>
    %168 = vector.broadcast %167 : vector<1x128xf32> to vector<32x128xf32>
    %169 = arith.mulf %166, %168 : vector<32x128xf32>
    %170 = vector.extract_strided_slice %76 {offsets = [0, 11], sizes = [32, 1], strides = [1, 1]} : vector<32x25xf32> to vector<32x1xf32>
    %171 = vector.broadcast %170 : vector<32x1xf32> to vector<32x128xf32>
    %172 = arith.mulf %169, %171 : vector<32x128xf32>
    %173 = arith.addf %165, %172 : vector<32x128xf32>
    %c0_59 = arith.constant 0 : index
    %c128_60 = arith.constant 128 : index
    %174 = vector.load %arg9[%c0_59, %c128_60] : memref<32x384xf32, #tpu.memory_space<vmem>>, vector<32x128xf32>
    %c12 = arith.constant 12 : index
    %c0_61 = arith.constant 0 : index
    %175 = vector.load %arg4[%c12, %c0_61] : memref<25x128xf32, #tpu.memory_space<vmem>>, vector<1x128xf32>
    %176 = vector.broadcast %175 : vector<1x128xf32> to vector<32x128xf32>
    %177 = arith.mulf %174, %176 : vector<32x128xf32>
    %178 = vector.extract_strided_slice %76 {offsets = [0, 12], sizes = [32, 1], strides = [1, 1]} : vector<32x25xf32> to vector<32x1xf32>
    %179 = vector.broadcast %178 : vector<32x1xf32> to vector<32x128xf32>
    %180 = arith.mulf %177, %179 : vector<32x128xf32>
    %181 = arith.addf %173, %180 : vector<32x128xf32>
    %c0_62 = arith.constant 0 : index
    %c129 = arith.constant 129 : index
    %182 = vector.load %arg9[%c0_62, %c129] : memref<32x384xf32, #tpu.memory_space<vmem>>, vector<32x128xf32>
    %c13 = arith.constant 13 : index
    %c0_63 = arith.constant 0 : index
    %183 = vector.load %arg4[%c13, %c0_63] : memref<25x128xf32, #tpu.memory_space<vmem>>, vector<1x128xf32>
    %184 = vector.broadcast %183 : vector<1x128xf32> to vector<32x128xf32>
    %185 = arith.mulf %182, %184 : vector<32x128xf32>
    %186 = vector.extract_strided_slice %76 {offsets = [0, 13], sizes = [32, 1], strides = [1, 1]} : vector<32x25xf32> to vector<32x1xf32>
    %187 = vector.broadcast %186 : vector<32x1xf32> to vector<32x128xf32>
    %188 = arith.mulf %185, %187 : vector<32x128xf32>
    %189 = arith.addf %181, %188 : vector<32x128xf32>
    %c0_64 = arith.constant 0 : index
    %c130 = arith.constant 130 : index
    %190 = vector.load %arg9[%c0_64, %c130] : memref<32x384xf32, #tpu.memory_space<vmem>>, vector<32x128xf32>
    %c14 = arith.constant 14 : index
    %c0_65 = arith.constant 0 : index
    %191 = vector.load %arg4[%c14, %c0_65] : memref<25x128xf32, #tpu.memory_space<vmem>>, vector<1x128xf32>
    %192 = vector.broadcast %191 : vector<1x128xf32> to vector<32x128xf32>
    %193 = arith.mulf %190, %192 : vector<32x128xf32>
    %194 = vector.extract_strided_slice %76 {offsets = [0, 14], sizes = [32, 1], strides = [1, 1]} : vector<32x25xf32> to vector<32x1xf32>
    %195 = vector.broadcast %194 : vector<32x1xf32> to vector<32x128xf32>
    %196 = arith.mulf %193, %195 : vector<32x128xf32>
    %197 = arith.addf %189, %196 : vector<32x128xf32>
    %c0_66 = arith.constant 0 : index
    %c134 = arith.constant 134 : index
    %198 = vector.load %arg9[%c0_66, %c134] : memref<32x384xf32, #tpu.memory_space<vmem>>, vector<32x128xf32>
    %c15 = arith.constant 15 : index
    %c0_67 = arith.constant 0 : index
    %199 = vector.load %arg4[%c15, %c0_67] : memref<25x128xf32, #tpu.memory_space<vmem>>, vector<1x128xf32>
    %200 = vector.broadcast %199 : vector<1x128xf32> to vector<32x128xf32>
    %201 = arith.mulf %198, %200 : vector<32x128xf32>
    %202 = vector.extract_strided_slice %76 {offsets = [0, 15], sizes = [32, 1], strides = [1, 1]} : vector<32x25xf32> to vector<32x1xf32>
    %203 = vector.broadcast %202 : vector<32x1xf32> to vector<32x128xf32>
    %204 = arith.mulf %201, %203 : vector<32x128xf32>
    %205 = arith.addf %197, %204 : vector<32x128xf32>
    %c0_68 = arith.constant 0 : index
    %c135 = arith.constant 135 : index
    %206 = vector.load %arg9[%c0_68, %c135] : memref<32x384xf32, #tpu.memory_space<vmem>>, vector<32x128xf32>
    %c16 = arith.constant 16 : index
    %c0_69 = arith.constant 0 : index
    %207 = vector.load %arg4[%c16, %c0_69] : memref<25x128xf32, #tpu.memory_space<vmem>>, vector<1x128xf32>
    %208 = vector.broadcast %207 : vector<1x128xf32> to vector<32x128xf32>
    %209 = arith.mulf %206, %208 : vector<32x128xf32>
    %210 = vector.extract_strided_slice %76 {offsets = [0, 16], sizes = [32, 1], strides = [1, 1]} : vector<32x25xf32> to vector<32x1xf32>
    %211 = vector.broadcast %210 : vector<32x1xf32> to vector<32x128xf32>
    %212 = arith.mulf %209, %211 : vector<32x128xf32>
    %213 = arith.addf %205, %212 : vector<32x128xf32>
    %c0_70 = arith.constant 0 : index
    %c136 = arith.constant 136 : index
    %214 = vector.load %arg9[%c0_70, %c136] : memref<32x384xf32, #tpu.memory_space<vmem>>, vector<32x128xf32>
    %c17 = arith.constant 17 : index
    %c0_71 = arith.constant 0 : index
    %215 = vector.load %arg4[%c17, %c0_71] : memref<25x128xf32, #tpu.memory_space<vmem>>, vector<1x128xf32>
    %216 = vector.broadcast %215 : vector<1x128xf32> to vector<32x128xf32>
    %217 = arith.mulf %214, %216 : vector<32x128xf32>
    %218 = vector.extract_strided_slice %76 {offsets = [0, 17], sizes = [32, 1], strides = [1, 1]} : vector<32x25xf32> to vector<32x1xf32>
    %219 = vector.broadcast %218 : vector<32x1xf32> to vector<32x128xf32>
    %220 = arith.mulf %217, %219 : vector<32x128xf32>
    %221 = arith.addf %213, %220 : vector<32x128xf32>
    %c0_72 = arith.constant 0 : index
    %c137 = arith.constant 137 : index
    %222 = vector.load %arg9[%c0_72, %c137] : memref<32x384xf32, #tpu.memory_space<vmem>>, vector<32x128xf32>
    %c18 = arith.constant 18 : index
    %c0_73 = arith.constant 0 : index
    %223 = vector.load %arg4[%c18, %c0_73] : memref<25x128xf32, #tpu.memory_space<vmem>>, vector<1x128xf32>
    %224 = vector.broadcast %223 : vector<1x128xf32> to vector<32x128xf32>
    %225 = arith.mulf %222, %224 : vector<32x128xf32>
    %226 = vector.extract_strided_slice %76 {offsets = [0, 18], sizes = [32, 1], strides = [1, 1]} : vector<32x25xf32> to vector<32x1xf32>
    %227 = vector.broadcast %226 : vector<32x1xf32> to vector<32x128xf32>
    %228 = arith.mulf %225, %227 : vector<32x128xf32>
    %229 = arith.addf %221, %228 : vector<32x128xf32>
    %c0_74 = arith.constant 0 : index
    %c138 = arith.constant 138 : index
    %230 = vector.load %arg9[%c0_74, %c138] : memref<32x384xf32, #tpu.memory_space<vmem>>, vector<32x128xf32>
    %c19 = arith.constant 19 : index
    %c0_75 = arith.constant 0 : index
    %231 = vector.load %arg4[%c19, %c0_75] : memref<25x128xf32, #tpu.memory_space<vmem>>, vector<1x128xf32>
    %232 = vector.broadcast %231 : vector<1x128xf32> to vector<32x128xf32>
    %233 = arith.mulf %230, %232 : vector<32x128xf32>
    %234 = vector.extract_strided_slice %76 {offsets = [0, 19], sizes = [32, 1], strides = [1, 1]} : vector<32x25xf32> to vector<32x1xf32>
    %235 = vector.broadcast %234 : vector<32x1xf32> to vector<32x128xf32>
    %236 = arith.mulf %233, %235 : vector<32x128xf32>
    %237 = arith.addf %229, %236 : vector<32x128xf32>
    %c0_76 = arith.constant 0 : index
    %c142 = arith.constant 142 : index
    %238 = vector.load %arg9[%c0_76, %c142] : memref<32x384xf32, #tpu.memory_space<vmem>>, vector<32x128xf32>
    %c20 = arith.constant 20 : index
    %c0_77 = arith.constant 0 : index
    %239 = vector.load %arg4[%c20, %c0_77] : memref<25x128xf32, #tpu.memory_space<vmem>>, vector<1x128xf32>
    %240 = vector.broadcast %239 : vector<1x128xf32> to vector<32x128xf32>
    %241 = arith.mulf %238, %240 : vector<32x128xf32>
    %242 = vector.extract_strided_slice %76 {offsets = [0, 20], sizes = [32, 1], strides = [1, 1]} : vector<32x25xf32> to vector<32x1xf32>
    %243 = vector.broadcast %242 : vector<32x1xf32> to vector<32x128xf32>
    %244 = arith.mulf %241, %243 : vector<32x128xf32>
    %245 = arith.addf %237, %244 : vector<32x128xf32>
    %c0_78 = arith.constant 0 : index
    %c143 = arith.constant 143 : index
    %246 = vector.load %arg9[%c0_78, %c143] : memref<32x384xf32, #tpu.memory_space<vmem>>, vector<32x128xf32>
    %c21 = arith.constant 21 : index
    %c0_79 = arith.constant 0 : index
    %247 = vector.load %arg4[%c21, %c0_79] : memref<25x128xf32, #tpu.memory_space<vmem>>, vector<1x128xf32>
    %248 = vector.broadcast %247 : vector<1x128xf32> to vector<32x128xf32>
    %249 = arith.mulf %246, %248 : vector<32x128xf32>
    %250 = vector.extract_strided_slice %76 {offsets = [0, 21], sizes = [32, 1], strides = [1, 1]} : vector<32x25xf32> to vector<32x1xf32>
    %251 = vector.broadcast %250 : vector<32x1xf32> to vector<32x128xf32>
    %252 = arith.mulf %249, %251 : vector<32x128xf32>
    %253 = arith.addf %245, %252 : vector<32x128xf32>
    %c0_80 = arith.constant 0 : index
    %c144 = arith.constant 144 : index
    %254 = vector.load %arg9[%c0_80, %c144] : memref<32x384xf32, #tpu.memory_space<vmem>>, vector<32x128xf32>
    %c22 = arith.constant 22 : index
    %c0_81 = arith.constant 0 : index
    %255 = vector.load %arg4[%c22, %c0_81] : memref<25x128xf32, #tpu.memory_space<vmem>>, vector<1x128xf32>
    %256 = vector.broadcast %255 : vector<1x128xf32> to vector<32x128xf32>
    %257 = arith.mulf %254, %256 : vector<32x128xf32>
    %258 = vector.extract_strided_slice %76 {offsets = [0, 22], sizes = [32, 1], strides = [1, 1]} : vector<32x25xf32> to vector<32x1xf32>
    %259 = vector.broadcast %258 : vector<32x1xf32> to vector<32x128xf32>
    %260 = arith.mulf %257, %259 : vector<32x128xf32>
    %261 = arith.addf %253, %260 : vector<32x128xf32>
    %c0_82 = arith.constant 0 : index
    %c145 = arith.constant 145 : index
    %262 = vector.load %arg9[%c0_82, %c145] : memref<32x384xf32, #tpu.memory_space<vmem>>, vector<32x128xf32>
    %c23 = arith.constant 23 : index
    %c0_83 = arith.constant 0 : index
    %263 = vector.load %arg4[%c23, %c0_83] : memref<25x128xf32, #tpu.memory_space<vmem>>, vector<1x128xf32>
    %264 = vector.broadcast %263 : vector<1x128xf32> to vector<32x128xf32>
    %265 = arith.mulf %262, %264 : vector<32x128xf32>
    %266 = vector.extract_strided_slice %76 {offsets = [0, 23], sizes = [32, 1], strides = [1, 1]} : vector<32x25xf32> to vector<32x1xf32>
    %267 = vector.broadcast %266 : vector<32x1xf32> to vector<32x128xf32>
    %268 = arith.mulf %265, %267 : vector<32x128xf32>
    %269 = arith.addf %261, %268 : vector<32x128xf32>
    %c0_84 = arith.constant 0 : index
    %c146 = arith.constant 146 : index
    %270 = vector.load %arg9[%c0_84, %c146] : memref<32x384xf32, #tpu.memory_space<vmem>>, vector<32x128xf32>
    %c24 = arith.constant 24 : index
    %c0_85 = arith.constant 0 : index
    %271 = vector.load %arg4[%c24, %c0_85] : memref<25x128xf32, #tpu.memory_space<vmem>>, vector<1x128xf32>
    %272 = vector.broadcast %271 : vector<1x128xf32> to vector<32x128xf32>
    %273 = arith.mulf %270, %272 : vector<32x128xf32>
    %274 = vector.extract_strided_slice %76 {offsets = [0, 24], sizes = [32, 1], strides = [1, 1]} : vector<32x25xf32> to vector<32x1xf32>
    %275 = vector.broadcast %274 : vector<32x1xf32> to vector<32x128xf32>
    %276 = arith.mulf %273, %275 : vector<32x128xf32>
    %277 = arith.addf %269, %276 : vector<32x128xf32>
    %278 = vector.extract_strided_slice %2 {offsets = [0, 3], sizes = [32, 1], strides = [1, 1]} : vector<32x15xf32> to vector<32x1xf32>
    %279 = vector.broadcast %278 : vector<32x1xf32> to vector<32x128xf32>
    %280 = arith.addf %277, %279 : vector<32x128xf32>
    %281 = vector.extract_strided_slice %2 {offsets = [0, 4], sizes = [32, 1], strides = [1, 1]} : vector<32x15xf32> to vector<32x1xf32>
    %282 = vector.extract_strided_slice %2 {offsets = [0, 5], sizes = [32, 1], strides = [1, 1]} : vector<32x15xf32> to vector<32x1xf32>
    %cst_86 = arith.constant dense<0.000000e+00> : vector<32xf32>
    %283 = vector.multi_reduction <add>, %280, %cst_86 [1] : vector<32x128xf32> to vector<32xf32>
    %284 = vector.shape_cast %283 : vector<32xf32> to vector<32x1xf32>
    %285 = arith.mulf %280, %280 : vector<32x128xf32>
    %cst_87 = arith.constant dense<0.000000e+00> : vector<32xf32>
    %286 = vector.multi_reduction <add>, %285, %cst_87 [1] : vector<32x128xf32> to vector<32xf32>
    %287 = vector.shape_cast %286 : vector<32xf32> to vector<32x1xf32>
    %cst_88 = arith.constant 7.812500e-03 : f32
    %288 = vector.broadcast %cst_88 : f32 to vector<32x1xf32>
    %289 = arith.mulf %284, %288 : vector<32x1xf32>
    %cst_89 = arith.constant 7.812500e-03 : f32
    %290 = vector.broadcast %cst_89 : f32 to vector<32x1xf32>
    %291 = arith.mulf %287, %290 : vector<32x1xf32>
    %292 = arith.mulf %289, %289 : vector<32x1xf32>
    %293 = arith.subf %291, %292 : vector<32x1xf32>
    %cst_90 = arith.constant 0.000000e+00 : f32
    %294 = vector.broadcast %cst_90 : f32 to vector<32x1xf32>
    %295 = arith.maximumf %293, %294 : vector<32x1xf32>
    %296 = vector.broadcast %289 : vector<32x1xf32> to vector<32x128xf32>
    %297 = arith.subf %280, %296 : vector<32x128xf32>
    %cst_91 = arith.constant 9.99999974E-6 : f32
    %298 = vector.broadcast %cst_91 : f32 to vector<32x1xf32>
    %299 = arith.addf %295, %298 : vector<32x1xf32>
    %300 = math.rsqrt %299 : vector<32x1xf32>
    %301 = arith.mulf %281, %300 : vector<32x1xf32>
    %302 = vector.broadcast %301 : vector<32x1xf32> to vector<32x128xf32>
    %303 = arith.mulf %297, %302 : vector<32x128xf32>
    %304 = vector.broadcast %282 : vector<32x1xf32> to vector<32x128xf32>
    %305 = arith.addf %303, %304 : vector<32x128xf32>
    %306 = arith.addf %305, %73 : vector<32x128xf32>
    %c0_92 = arith.constant 0 : index
    %c0_93 = arith.constant 0 : index
    %c0_94 = arith.constant 0 : index
    %307 = vector.load %arg5[%c0_92, %c0_93, %c0_94] : memref<2x32x32xbf16, #tpu.memory_space<vmem>>, vector<1x32x32xbf16>
    %308 = vector.shape_cast %307 : vector<1x32x32xbf16> to vector<32x32xbf16>
    %309 = arith.truncf %306 : vector<32x128xf32> to vector<32x128xbf16>
    %cst_95 = arith.constant dense<0.000000e+00> : vector<32x128xf32>
    %310 = tpu.matmul %308, %309, %cst_95 {dimension_numbers = #tpu.dot_dimension_numbers<[1], [0], [0], [1], [0, 0, 1, 1], [], []>} : vector<32x32xbf16>, vector<32x128xbf16>, vector<32x128xf32> -> vector<32x128xf32>
    %311 = vector.extract_strided_slice %2 {offsets = [0, 6], sizes = [32, 1], strides = [1, 1]} : vector<32x15xf32> to vector<32x1xf32>
    %312 = vector.broadcast %311 : vector<32x1xf32> to vector<32x128xf32>
    %313 = arith.addf %310, %312 : vector<32x128xf32>
    %cst_96 = arith.constant 0.707106769 : f32
    %314 = vector.broadcast %cst_96 : f32 to vector<32x128xf32>
    %315 = arith.mulf %313, %314 : vector<32x128xf32>
    %316 = math.absf %315 : vector<32x128xf32>
    %cst_97 = arith.constant 0.327591091 : f32
    %317 = vector.broadcast %cst_97 : f32 to vector<32x128xf32>
    %318 = arith.mulf %317, %316 : vector<32x128xf32>
    %cst_98 = arith.constant 1.000000e+00 : f32
    %319 = vector.broadcast %cst_98 : f32 to vector<32x128xf32>
    %320 = arith.addf %319, %318 : vector<32x128xf32>
    %cst_99 = arith.constant 1.000000e+00 : f32
    %321 = vector.broadcast %cst_99 : f32 to vector<32x128xf32>
    %322 = arith.divf %321, %320 : vector<32x128xf32>
    %cst_100 = arith.constant 1.06140542 : f32
    %323 = vector.broadcast %cst_100 : f32 to vector<32x128xf32>
    %324 = arith.mulf %322, %323 : vector<32x128xf32>
    %cst_101 = arith.constant -1.45315206 : f32
    %325 = vector.broadcast %cst_101 : f32 to vector<32x128xf32>
    %326 = arith.addf %325, %324 : vector<32x128xf32>
    %327 = arith.mulf %322, %326 : vector<32x128xf32>
    %cst_102 = arith.constant 1.42141378 : f32
    %328 = vector.broadcast %cst_102 : f32 to vector<32x128xf32>
    %329 = arith.addf %328, %327 : vector<32x128xf32>
    %330 = arith.mulf %322, %329 : vector<32x128xf32>
    %cst_103 = arith.constant -0.284496725 : f32
    %331 = vector.broadcast %cst_103 : f32 to vector<32x128xf32>
    %332 = arith.addf %331, %330 : vector<32x128xf32>
    %333 = arith.mulf %322, %332 : vector<32x128xf32>
    %cst_104 = arith.constant 0.254829586 : f32
    %334 = vector.broadcast %cst_104 : f32 to vector<32x128xf32>
    %335 = arith.addf %334, %333 : vector<32x128xf32>
    %336 = arith.mulf %322, %335 : vector<32x128xf32>
    %cst_105 = arith.constant 0.000000e+00 : f32
    %337 = vector.broadcast %cst_105 : f32 to vector<32x128xf32>
    %338 = arith.subf %337, %316 : vector<32x128xf32>
    %339 = arith.mulf %338, %316 : vector<32x128xf32>
    %340 = math.exp %339 : vector<32x128xf32>
    %341 = arith.mulf %336, %340 : vector<32x128xf32>
    %cst_106 = arith.constant 1.000000e+00 : f32
    %342 = vector.broadcast %cst_106 : f32 to vector<32x128xf32>
    %343 = arith.subf %342, %341 : vector<32x128xf32>
    %cst_107 = arith.constant 0.000000e+00 : f32
    %344 = vector.broadcast %cst_107 : f32 to vector<32x128xf32>
    %345 = arith.cmpf oge, %315, %344 : vector<32x128xf32>
    %cst_108 = arith.constant 0.000000e+00 : f32
    %346 = vector.broadcast %cst_108 : f32 to vector<32x128xf32>
    %347 = arith.subf %346, %343 : vector<32x128xf32>
    %348 = arith.select %345, %343, %347 : vector<32x128xi1>, vector<32x128xf32>
    %cst_109 = arith.constant 5.000000e-01 : f32
    %349 = vector.broadcast %cst_109 : f32 to vector<32x128xf32>
    %350 = arith.mulf %349, %313 : vector<32x128xf32>
    %cst_110 = arith.constant 1.000000e+00 : f32
    %351 = vector.broadcast %cst_110 : f32 to vector<32x128xf32>
    %352 = arith.addf %351, %348 : vector<32x128xf32>
    %353 = arith.mulf %350, %352 : vector<32x128xf32>
    %354 = vector.extract_strided_slice %2 {offsets = [0, 7], sizes = [32, 1], strides = [1, 1]} : vector<32x15xf32> to vector<32x1xf32>
    %355 = vector.extract_strided_slice %2 {offsets = [0, 8], sizes = [32, 1], strides = [1, 1]} : vector<32x15xf32> to vector<32x1xf32>
    %cst_111 = arith.constant dense<0.000000e+00> : vector<32xf32>
    %356 = vector.multi_reduction <add>, %353, %cst_111 [1] : vector<32x128xf32> to vector<32xf32>
    %357 = vector.shape_cast %356 : vector<32xf32> to vector<32x1xf32>
    %358 = arith.mulf %353, %353 : vector<32x128xf32>
    %cst_112 = arith.constant dense<0.000000e+00> : vector<32xf32>
    %359 = vector.multi_reduction <add>, %358, %cst_112 [1] : vector<32x128xf32> to vector<32xf32>
    %360 = vector.shape_cast %359 : vector<32xf32> to vector<32x1xf32>
    %cst_113 = arith.constant 7.812500e-03 : f32
    %361 = vector.broadcast %cst_113 : f32 to vector<32x1xf32>
    %362 = arith.mulf %357, %361 : vector<32x1xf32>
    %cst_114 = arith.constant 7.812500e-03 : f32
    %363 = vector.broadcast %cst_114 : f32 to vector<32x1xf32>
    %364 = arith.mulf %360, %363 : vector<32x1xf32>
    %365 = arith.mulf %362, %362 : vector<32x1xf32>
    %366 = arith.subf %364, %365 : vector<32x1xf32>
    %cst_115 = arith.constant 0.000000e+00 : f32
    %367 = vector.broadcast %cst_115 : f32 to vector<32x1xf32>
    %368 = arith.maximumf %366, %367 : vector<32x1xf32>
    %369 = vector.broadcast %362 : vector<32x1xf32> to vector<32x128xf32>
    %370 = arith.subf %353, %369 : vector<32x128xf32>
    %cst_116 = arith.constant 9.99999974E-6 : f32
    %371 = vector.broadcast %cst_116 : f32 to vector<32x1xf32>
    %372 = arith.addf %368, %371 : vector<32x1xf32>
    %373 = math.rsqrt %372 : vector<32x1xf32>
    %374 = arith.mulf %354, %373 : vector<32x1xf32>
    %375 = vector.broadcast %374 : vector<32x1xf32> to vector<32x128xf32>
    %376 = arith.mulf %370, %375 : vector<32x128xf32>
    %377 = vector.broadcast %355 : vector<32x1xf32> to vector<32x128xf32>
    %378 = arith.addf %376, %377 : vector<32x128xf32>
    %c0_117 = arith.constant 0 : index
    %c128_118 = arith.constant 128 : index
    %379 = vector.load %arg9[%c0_117, %c128_118] : memref<32x384xf32, #tpu.memory_space<vmem>>, vector<32x128xf32>
    tpu.vector_store %arg9[%c0_117, %c128_118], %378 {strides = array<i32>} : memref<32x384xf32, #tpu.memory_space<vmem>>, vector<32x128xf32>,
    %c1_119 = arith.constant 1 : index
    %c0_120 = arith.constant 0 : index
    %c0_121 = arith.constant 0 : index
    %380 = vector.load %arg3[%c1_119, %c0_120, %c0_121] : memref<2x32x25xf32, #tpu.memory_space<vmem>>, vector<1x32x25xf32>
    %381 = vector.shape_cast %380 : vector<1x32x25xf32> to vector<32x25xf32>
    %cst_122 = arith.constant 0.000000e+00 : f32
    %382 = vector.broadcast %cst_122 : f32 to vector<32x128xf32>
    %c0_123 = arith.constant 0 : index
    %c110_124 = arith.constant 110 : index
    %383 = vector.load %arg9[%c0_123, %c110_124] : memref<32x384xf32, #tpu.memory_space<vmem>>, vector<32x128xf32>
    %c0_125 = arith.constant 0 : index
    %c0_126 = arith.constant 0 : index
    %384 = vector.load %arg4[%c0_125, %c0_126] : memref<25x128xf32, #tpu.memory_space<vmem>>, vector<1x128xf32>
    %385 = vector.broadcast %384 : vector<1x128xf32> to vector<32x128xf32>
    %386 = arith.mulf %383, %385 : vector<32x128xf32>
    %387 = vector.extract_strided_slice %381 {offsets = [0, 0], sizes = [32, 1], strides = [1, 1]} : vector<32x25xf32> to vector<32x1xf32>
    %388 = vector.broadcast %387 : vector<32x1xf32> to vector<32x128xf32>
    %389 = arith.mulf %386, %388 : vector<32x128xf32>
    %390 = arith.addf %382, %389 : vector<32x128xf32>
    %c0_127 = arith.constant 0 : index
    %c111_128 = arith.constant 111 : index
    %391 = vector.load %arg9[%c0_127, %c111_128] : memref<32x384xf32, #tpu.memory_space<vmem>>, vector<32x128xf32>
    %c1_129 = arith.constant 1 : index
    %c0_130 = arith.constant 0 : index
    %392 = vector.load %arg4[%c1_129, %c0_130] : memref<25x128xf32, #tpu.memory_space<vmem>>, vector<1x128xf32>
    %393 = vector.broadcast %392 : vector<1x128xf32> to vector<32x128xf32>
    %394 = arith.mulf %391, %393 : vector<32x128xf32>
    %395 = vector.extract_strided_slice %381 {offsets = [0, 1], sizes = [32, 1], strides = [1, 1]} : vector<32x25xf32> to vector<32x1xf32>
    %396 = vector.broadcast %395 : vector<32x1xf32> to vector<32x128xf32>
    %397 = arith.mulf %394, %396 : vector<32x128xf32>
    %398 = arith.addf %390, %397 : vector<32x128xf32>
    %c0_131 = arith.constant 0 : index
    %c112_132 = arith.constant 112 : index
    %399 = vector.load %arg9[%c0_131, %c112_132] : memref<32x384xf32, #tpu.memory_space<vmem>>, vector<32x128xf32>
    %c2_133 = arith.constant 2 : index
    %c0_134 = arith.constant 0 : index
    %400 = vector.load %arg4[%c2_133, %c0_134] : memref<25x128xf32, #tpu.memory_space<vmem>>, vector<1x128xf32>
    %401 = vector.broadcast %400 : vector<1x128xf32> to vector<32x128xf32>
    %402 = arith.mulf %399, %401 : vector<32x128xf32>
    %403 = vector.extract_strided_slice %381 {offsets = [0, 2], sizes = [32, 1], strides = [1, 1]} : vector<32x25xf32> to vector<32x1xf32>
    %404 = vector.broadcast %403 : vector<32x1xf32> to vector<32x128xf32>
    %405 = arith.mulf %402, %404 : vector<32x128xf32>
    %406 = arith.addf %398, %405 : vector<32x128xf32>
    %c0_135 = arith.constant 0 : index
    %c113_136 = arith.constant 113 : index
    %407 = vector.load %arg9[%c0_135, %c113_136] : memref<32x384xf32, #tpu.memory_space<vmem>>, vector<32x128xf32>
    %c3_137 = arith.constant 3 : index
    %c0_138 = arith.constant 0 : index
    %408 = vector.load %arg4[%c3_137, %c0_138] : memref<25x128xf32, #tpu.memory_space<vmem>>, vector<1x128xf32>
    %409 = vector.broadcast %408 : vector<1x128xf32> to vector<32x128xf32>
    %410 = arith.mulf %407, %409 : vector<32x128xf32>
    %411 = vector.extract_strided_slice %381 {offsets = [0, 3], sizes = [32, 1], strides = [1, 1]} : vector<32x25xf32> to vector<32x1xf32>
    %412 = vector.broadcast %411 : vector<32x1xf32> to vector<32x128xf32>
    %413 = arith.mulf %410, %412 : vector<32x128xf32>
    %414 = arith.addf %406, %413 : vector<32x128xf32>
    %c0_139 = arith.constant 0 : index
    %c114_140 = arith.constant 114 : index
    %415 = vector.load %arg9[%c0_139, %c114_140] : memref<32x384xf32, #tpu.memory_space<vmem>>, vector<32x128xf32>
    %c4_141 = arith.constant 4 : index
    %c0_142 = arith.constant 0 : index
    %416 = vector.load %arg4[%c4_141, %c0_142] : memref<25x128xf32, #tpu.memory_space<vmem>>, vector<1x128xf32>
    %417 = vector.broadcast %416 : vector<1x128xf32> to vector<32x128xf32>
    %418 = arith.mulf %415, %417 : vector<32x128xf32>
    %419 = vector.extract_strided_slice %381 {offsets = [0, 4], sizes = [32, 1], strides = [1, 1]} : vector<32x25xf32> to vector<32x1xf32>
    %420 = vector.broadcast %419 : vector<32x1xf32> to vector<32x128xf32>
    %421 = arith.mulf %418, %420 : vector<32x128xf32>
    %422 = arith.addf %414, %421 : vector<32x128xf32>
    %c0_143 = arith.constant 0 : index
    %c118_144 = arith.constant 118 : index
    %423 = vector.load %arg9[%c0_143, %c118_144] : memref<32x384xf32, #tpu.memory_space<vmem>>, vector<32x128xf32>
    %c5_145 = arith.constant 5 : index
    %c0_146 = arith.constant 0 : index
    %424 = vector.load %arg4[%c5_145, %c0_146] : memref<25x128xf32, #tpu.memory_space<vmem>>, vector<1x128xf32>
    %425 = vector.broadcast %424 : vector<1x128xf32> to vector<32x128xf32>
    %426 = arith.mulf %423, %425 : vector<32x128xf32>
    %427 = vector.extract_strided_slice %381 {offsets = [0, 5], sizes = [32, 1], strides = [1, 1]} : vector<32x25xf32> to vector<32x1xf32>
    %428 = vector.broadcast %427 : vector<32x1xf32> to vector<32x128xf32>
    %429 = arith.mulf %426, %428 : vector<32x128xf32>
    %430 = arith.addf %422, %429 : vector<32x128xf32>
    %c0_147 = arith.constant 0 : index
    %c119_148 = arith.constant 119 : index
    %431 = vector.load %arg9[%c0_147, %c119_148] : memref<32x384xf32, #tpu.memory_space<vmem>>, vector<32x128xf32>
    %c6_149 = arith.constant 6 : index
    %c0_150 = arith.constant 0 : index
    %432 = vector.load %arg4[%c6_149, %c0_150] : memref<25x128xf32, #tpu.memory_space<vmem>>, vector<1x128xf32>
    %433 = vector.broadcast %432 : vector<1x128xf32> to vector<32x128xf32>
    %434 = arith.mulf %431, %433 : vector<32x128xf32>
    %435 = vector.extract_strided_slice %381 {offsets = [0, 6], sizes = [32, 1], strides = [1, 1]} : vector<32x25xf32> to vector<32x1xf32>
    %436 = vector.broadcast %435 : vector<32x1xf32> to vector<32x128xf32>
    %437 = arith.mulf %434, %436 : vector<32x128xf32>
    %438 = arith.addf %430, %437 : vector<32x128xf32>
    %c0_151 = arith.constant 0 : index
    %c120_152 = arith.constant 120 : index
    %439 = vector.load %arg9[%c0_151, %c120_152] : memref<32x384xf32, #tpu.memory_space<vmem>>, vector<32x128xf32>
    %c7_153 = arith.constant 7 : index
    %c0_154 = arith.constant 0 : index
    %440 = vector.load %arg4[%c7_153, %c0_154] : memref<25x128xf32, #tpu.memory_space<vmem>>, vector<1x128xf32>
    %441 = vector.broadcast %440 : vector<1x128xf32> to vector<32x128xf32>
    %442 = arith.mulf %439, %441 : vector<32x128xf32>
    %443 = vector.extract_strided_slice %381 {offsets = [0, 7], sizes = [32, 1], strides = [1, 1]} : vector<32x25xf32> to vector<32x1xf32>
    %444 = vector.broadcast %443 : vector<32x1xf32> to vector<32x128xf32>
    %445 = arith.mulf %442, %444 : vector<32x128xf32>
    %446 = arith.addf %438, %445 : vector<32x128xf32>
    %c0_155 = arith.constant 0 : index
    %c121_156 = arith.constant 121 : index
    %447 = vector.load %arg9[%c0_155, %c121_156] : memref<32x384xf32, #tpu.memory_space<vmem>>, vector<32x128xf32>
    %c8_157 = arith.constant 8 : index
    %c0_158 = arith.constant 0 : index
    %448 = vector.load %arg4[%c8_157, %c0_158] : memref<25x128xf32, #tpu.memory_space<vmem>>, vector<1x128xf32>
    %449 = vector.broadcast %448 : vector<1x128xf32> to vector<32x128xf32>
    %450 = arith.mulf %447, %449 : vector<32x128xf32>
    %451 = vector.extract_strided_slice %381 {offsets = [0, 8], sizes = [32, 1], strides = [1, 1]} : vector<32x25xf32> to vector<32x1xf32>
    %452 = vector.broadcast %451 : vector<32x1xf32> to vector<32x128xf32>
    %453 = arith.mulf %450, %452 : vector<32x128xf32>
    %454 = arith.addf %446, %453 : vector<32x128xf32>
    %c0_159 = arith.constant 0 : index
    %c122_160 = arith.constant 122 : index
    %455 = vector.load %arg9[%c0_159, %c122_160] : memref<32x384xf32, #tpu.memory_space<vmem>>, vector<32x128xf32>
    %c9_161 = arith.constant 9 : index
    %c0_162 = arith.constant 0 : index
    %456 = vector.load %arg4[%c9_161, %c0_162] : memref<25x128xf32, #tpu.memory_space<vmem>>, vector<1x128xf32>
    %457 = vector.broadcast %456 : vector<1x128xf32> to vector<32x128xf32>
    %458 = arith.mulf %455, %457 : vector<32x128xf32>
    %459 = vector.extract_strided_slice %381 {offsets = [0, 9], sizes = [32, 1], strides = [1, 1]} : vector<32x25xf32> to vector<32x1xf32>
    %460 = vector.broadcast %459 : vector<32x1xf32> to vector<32x128xf32>
    %461 = arith.mulf %458, %460 : vector<32x128xf32>
    %462 = arith.addf %454, %461 : vector<32x128xf32>
    %c0_163 = arith.constant 0 : index
    %c126_164 = arith.constant 126 : index
    %463 = vector.load %arg9[%c0_163, %c126_164] : memref<32x384xf32, #tpu.memory_space<vmem>>, vector<32x128xf32>
    %c10_165 = arith.constant 10 : index
    %c0_166 = arith.constant 0 : index
    %464 = vector.load %arg4[%c10_165, %c0_166] : memref<25x128xf32, #tpu.memory_space<vmem>>, vector<1x128xf32>
    %465 = vector.broadcast %464 : vector<1x128xf32> to vector<32x128xf32>
    %466 = arith.mulf %463, %465 : vector<32x128xf32>
    %467 = vector.extract_strided_slice %381 {offsets = [0, 10], sizes = [32, 1], strides = [1, 1]} : vector<32x25xf32> to vector<32x1xf32>
    %468 = vector.broadcast %467 : vector<32x1xf32> to vector<32x128xf32>
    %469 = arith.mulf %466, %468 : vector<32x128xf32>
    %470 = arith.addf %462, %469 : vector<32x128xf32>
    %c0_167 = arith.constant 0 : index
    %c127_168 = arith.constant 127 : index
    %471 = vector.load %arg9[%c0_167, %c127_168] : memref<32x384xf32, #tpu.memory_space<vmem>>, vector<32x128xf32>
    %c11_169 = arith.constant 11 : index
    %c0_170 = arith.constant 0 : index
    %472 = vector.load %arg4[%c11_169, %c0_170] : memref<25x128xf32, #tpu.memory_space<vmem>>, vector<1x128xf32>
    %473 = vector.broadcast %472 : vector<1x128xf32> to vector<32x128xf32>
    %474 = arith.mulf %471, %473 : vector<32x128xf32>
    %475 = vector.extract_strided_slice %381 {offsets = [0, 11], sizes = [32, 1], strides = [1, 1]} : vector<32x25xf32> to vector<32x1xf32>
    %476 = vector.broadcast %475 : vector<32x1xf32> to vector<32x128xf32>
    %477 = arith.mulf %474, %476 : vector<32x128xf32>
    %478 = arith.addf %470, %477 : vector<32x128xf32>
    %c0_171 = arith.constant 0 : index
    %c128_172 = arith.constant 128 : index
    %479 = vector.load %arg9[%c0_171, %c128_172] : memref<32x384xf32, #tpu.memory_space<vmem>>, vector<32x128xf32>
    %c12_173 = arith.constant 12 : index
    %c0_174 = arith.constant 0 : index
    %480 = vector.load %arg4[%c12_173, %c0_174] : memref<25x128xf32, #tpu.memory_space<vmem>>, vector<1x128xf32>
    %481 = vector.broadcast %480 : vector<1x128xf32> to vector<32x128xf32>
    %482 = arith.mulf %479, %481 : vector<32x128xf32>
    %483 = vector.extract_strided_slice %381 {offsets = [0, 12], sizes = [32, 1], strides = [1, 1]} : vector<32x25xf32> to vector<32x1xf32>
    %484 = vector.broadcast %483 : vector<32x1xf32> to vector<32x128xf32>
    %485 = arith.mulf %482, %484 : vector<32x128xf32>
    %486 = arith.addf %478, %485 : vector<32x128xf32>
    %c0_175 = arith.constant 0 : index
    %c129_176 = arith.constant 129 : index
    %487 = vector.load %arg9[%c0_175, %c129_176] : memref<32x384xf32, #tpu.memory_space<vmem>>, vector<32x128xf32>
    %c13_177 = arith.constant 13 : index
    %c0_178 = arith.constant 0 : index
    %488 = vector.load %arg4[%c13_177, %c0_178] : memref<25x128xf32, #tpu.memory_space<vmem>>, vector<1x128xf32>
    %489 = vector.broadcast %488 : vector<1x128xf32> to vector<32x128xf32>
    %490 = arith.mulf %487, %489 : vector<32x128xf32>
    %491 = vector.extract_strided_slice %381 {offsets = [0, 13], sizes = [32, 1], strides = [1, 1]} : vector<32x25xf32> to vector<32x1xf32>
    %492 = vector.broadcast %491 : vector<32x1xf32> to vector<32x128xf32>
    %493 = arith.mulf %490, %492 : vector<32x128xf32>
    %494 = arith.addf %486, %493 : vector<32x128xf32>
    %c0_179 = arith.constant 0 : index
    %c130_180 = arith.constant 130 : index
    %495 = vector.load %arg9[%c0_179, %c130_180] : memref<32x384xf32, #tpu.memory_space<vmem>>, vector<32x128xf32>
    %c14_181 = arith.constant 14 : index
    %c0_182 = arith.constant 0 : index
    %496 = vector.load %arg4[%c14_181, %c0_182] : memref<25x128xf32, #tpu.memory_space<vmem>>, vector<1x128xf32>
    %497 = vector.broadcast %496 : vector<1x128xf32> to vector<32x128xf32>
    %498 = arith.mulf %495, %497 : vector<32x128xf32>
    %499 = vector.extract_strided_slice %381 {offsets = [0, 14], sizes = [32, 1], strides = [1, 1]} : vector<32x25xf32> to vector<32x1xf32>
    %500 = vector.broadcast %499 : vector<32x1xf32> to vector<32x128xf32>
    %501 = arith.mulf %498, %500 : vector<32x128xf32>
    %502 = arith.addf %494, %501 : vector<32x128xf32>
    %c0_183 = arith.constant 0 : index
    %c134_184 = arith.constant 134 : index
    %503 = vector.load %arg9[%c0_183, %c134_184] : memref<32x384xf32, #tpu.memory_space<vmem>>, vector<32x128xf32>
    %c15_185 = arith.constant 15 : index
    %c0_186 = arith.constant 0 : index
    %504 = vector.load %arg4[%c15_185, %c0_186] : memref<25x128xf32, #tpu.memory_space<vmem>>, vector<1x128xf32>
    %505 = vector.broadcast %504 : vector<1x128xf32> to vector<32x128xf32>
    %506 = arith.mulf %503, %505 : vector<32x128xf32>
    %507 = vector.extract_strided_slice %381 {offsets = [0, 15], sizes = [32, 1], strides = [1, 1]} : vector<32x25xf32> to vector<32x1xf32>
    %508 = vector.broadcast %507 : vector<32x1xf32> to vector<32x128xf32>
    %509 = arith.mulf %506, %508 : vector<32x128xf32>
    %510 = arith.addf %502, %509 : vector<32x128xf32>
    %c0_187 = arith.constant 0 : index
    %c135_188 = arith.constant 135 : index
    %511 = vector.load %arg9[%c0_187, %c135_188] : memref<32x384xf32, #tpu.memory_space<vmem>>, vector<32x128xf32>
    %c16_189 = arith.constant 16 : index
    %c0_190 = arith.constant 0 : index
    %512 = vector.load %arg4[%c16_189, %c0_190] : memref<25x128xf32, #tpu.memory_space<vmem>>, vector<1x128xf32>
    %513 = vector.broadcast %512 : vector<1x128xf32> to vector<32x128xf32>
    %514 = arith.mulf %511, %513 : vector<32x128xf32>
    %515 = vector.extract_strided_slice %381 {offsets = [0, 16], sizes = [32, 1], strides = [1, 1]} : vector<32x25xf32> to vector<32x1xf32>
    %516 = vector.broadcast %515 : vector<32x1xf32> to vector<32x128xf32>
    %517 = arith.mulf %514, %516 : vector<32x128xf32>
    %518 = arith.addf %510, %517 : vector<32x128xf32>
    %c0_191 = arith.constant 0 : index
    %c136_192 = arith.constant 136 : index
    %519 = vector.load %arg9[%c0_191, %c136_192] : memref<32x384xf32, #tpu.memory_space<vmem>>, vector<32x128xf32>
    %c17_193 = arith.constant 17 : index
    %c0_194 = arith.constant 0 : index
    %520 = vector.load %arg4[%c17_193, %c0_194] : memref<25x128xf32, #tpu.memory_space<vmem>>, vector<1x128xf32>
    %521 = vector.broadcast %520 : vector<1x128xf32> to vector<32x128xf32>
    %522 = arith.mulf %519, %521 : vector<32x128xf32>
    %523 = vector.extract_strided_slice %381 {offsets = [0, 17], sizes = [32, 1], strides = [1, 1]} : vector<32x25xf32> to vector<32x1xf32>
    %524 = vector.broadcast %523 : vector<32x1xf32> to vector<32x128xf32>
    %525 = arith.mulf %522, %524 : vector<32x128xf32>
    %526 = arith.addf %518, %525 : vector<32x128xf32>
    %c0_195 = arith.constant 0 : index
    %c137_196 = arith.constant 137 : index
    %527 = vector.load %arg9[%c0_195, %c137_196] : memref<32x384xf32, #tpu.memory_space<vmem>>, vector<32x128xf32>
    %c18_197 = arith.constant 18 : index
    %c0_198 = arith.constant 0 : index
    %528 = vector.load %arg4[%c18_197, %c0_198] : memref<25x128xf32, #tpu.memory_space<vmem>>, vector<1x128xf32>
    %529 = vector.broadcast %528 : vector<1x128xf32> to vector<32x128xf32>
    %530 = arith.mulf %527, %529 : vector<32x128xf32>
    %531 = vector.extract_strided_slice %381 {offsets = [0, 18], sizes = [32, 1], strides = [1, 1]} : vector<32x25xf32> to vector<32x1xf32>
    %532 = vector.broadcast %531 : vector<32x1xf32> to vector<32x128xf32>
    %533 = arith.mulf %530, %532 : vector<32x128xf32>
    %534 = arith.addf %526, %533 : vector<32x128xf32>
    %c0_199 = arith.constant 0 : index
    %c138_200 = arith.constant 138 : index
    %535 = vector.load %arg9[%c0_199, %c138_200] : memref<32x384xf32, #tpu.memory_space<vmem>>, vector<32x128xf32>
    %c19_201 = arith.constant 19 : index
    %c0_202 = arith.constant 0 : index
    %536 = vector.load %arg4[%c19_201, %c0_202] : memref<25x128xf32, #tpu.memory_space<vmem>>, vector<1x128xf32>
    %537 = vector.broadcast %536 : vector<1x128xf32> to vector<32x128xf32>
    %538 = arith.mulf %535, %537 : vector<32x128xf32>
    %539 = vector.extract_strided_slice %381 {offsets = [0, 19], sizes = [32, 1], strides = [1, 1]} : vector<32x25xf32> to vector<32x1xf32>
    %540 = vector.broadcast %539 : vector<32x1xf32> to vector<32x128xf32>
    %541 = arith.mulf %538, %540 : vector<32x128xf32>
    %542 = arith.addf %534, %541 : vector<32x128xf32>
    %c0_203 = arith.constant 0 : index
    %c142_204 = arith.constant 142 : index
    %543 = vector.load %arg9[%c0_203, %c142_204] : memref<32x384xf32, #tpu.memory_space<vmem>>, vector<32x128xf32>
    %c20_205 = arith.constant 20 : index
    %c0_206 = arith.constant 0 : index
    %544 = vector.load %arg4[%c20_205, %c0_206] : memref<25x128xf32, #tpu.memory_space<vmem>>, vector<1x128xf32>
    %545 = vector.broadcast %544 : vector<1x128xf32> to vector<32x128xf32>
    %546 = arith.mulf %543, %545 : vector<32x128xf32>
    %547 = vector.extract_strided_slice %381 {offsets = [0, 20], sizes = [32, 1], strides = [1, 1]} : vector<32x25xf32> to vector<32x1xf32>
    %548 = vector.broadcast %547 : vector<32x1xf32> to vector<32x128xf32>
    %549 = arith.mulf %546, %548 : vector<32x128xf32>
    %550 = arith.addf %542, %549 : vector<32x128xf32>
    %c0_207 = arith.constant 0 : index
    %c143_208 = arith.constant 143 : index
    %551 = vector.load %arg9[%c0_207, %c143_208] : memref<32x384xf32, #tpu.memory_space<vmem>>, vector<32x128xf32>
    %c21_209 = arith.constant 21 : index
    %c0_210 = arith.constant 0 : index
    %552 = vector.load %arg4[%c21_209, %c0_210] : memref<25x128xf32, #tpu.memory_space<vmem>>, vector<1x128xf32>
    %553 = vector.broadcast %552 : vector<1x128xf32> to vector<32x128xf32>
    %554 = arith.mulf %551, %553 : vector<32x128xf32>
    %555 = vector.extract_strided_slice %381 {offsets = [0, 21], sizes = [32, 1], strides = [1, 1]} : vector<32x25xf32> to vector<32x1xf32>
    %556 = vector.broadcast %555 : vector<32x1xf32> to vector<32x128xf32>
    %557 = arith.mulf %554, %556 : vector<32x128xf32>
    %558 = arith.addf %550, %557 : vector<32x128xf32>
    %c0_211 = arith.constant 0 : index
    %c144_212 = arith.constant 144 : index
    %559 = vector.load %arg9[%c0_211, %c144_212] : memref<32x384xf32, #tpu.memory_space<vmem>>, vector<32x128xf32>
    %c22_213 = arith.constant 22 : index
    %c0_214 = arith.constant 0 : index
    %560 = vector.load %arg4[%c22_213, %c0_214] : memref<25x128xf32, #tpu.memory_space<vmem>>, vector<1x128xf32>
    %561 = vector.broadcast %560 : vector<1x128xf32> to vector<32x128xf32>
    %562 = arith.mulf %559, %561 : vector<32x128xf32>
    %563 = vector.extract_strided_slice %381 {offsets = [0, 22], sizes = [32, 1], strides = [1, 1]} : vector<32x25xf32> to vector<32x1xf32>
    %564 = vector.broadcast %563 : vector<32x1xf32> to vector<32x128xf32>
    %565 = arith.mulf %562, %564 : vector<32x128xf32>
    %566 = arith.addf %558, %565 : vector<32x128xf32>
    %c0_215 = arith.constant 0 : index
    %c145_216 = arith.constant 145 : index
    %567 = vector.load %arg9[%c0_215, %c145_216] : memref<32x384xf32, #tpu.memory_space<vmem>>, vector<32x128xf32>
    %c23_217 = arith.constant 23 : index
    %c0_218 = arith.constant 0 : index
    %568 = vector.load %arg4[%c23_217, %c0_218] : memref<25x128xf32, #tpu.memory_space<vmem>>, vector<1x128xf32>
    %569 = vector.broadcast %568 : vector<1x128xf32> to vector<32x128xf32>
    %570 = arith.mulf %567, %569 : vector<32x128xf32>
    %571 = vector.extract_strided_slice %381 {offsets = [0, 23], sizes = [32, 1], strides = [1, 1]} : vector<32x25xf32> to vector<32x1xf32>
    %572 = vector.broadcast %571 : vector<32x1xf32> to vector<32x128xf32>
    %573 = arith.mulf %570, %572 : vector<32x128xf32>
    %574 = arith.addf %566, %573 : vector<32x128xf32>
    %c0_219 = arith.constant 0 : index
    %c146_220 = arith.constant 146 : index
    %575 = vector.load %arg9[%c0_219, %c146_220] : memref<32x384xf32, #tpu.memory_space<vmem>>, vector<32x128xf32>
    %c24_221 = arith.constant 24 : index
    %c0_222 = arith.constant 0 : index
    %576 = vector.load %arg4[%c24_221, %c0_222] : memref<25x128xf32, #tpu.memory_space<vmem>>, vector<1x128xf32>
    %577 = vector.broadcast %576 : vector<1x128xf32> to vector<32x128xf32>
    %578 = arith.mulf %575, %577 : vector<32x128xf32>
    %579 = vector.extract_strided_slice %381 {offsets = [0, 24], sizes = [32, 1], strides = [1, 1]} : vector<32x25xf32> to vector<32x1xf32>
    %580 = vector.broadcast %579 : vector<32x1xf32> to vector<32x128xf32>
    %581 = arith.mulf %578, %580 : vector<32x128xf32>
    %582 = arith.addf %574, %581 : vector<32x128xf32>
    %583 = vector.extract_strided_slice %2 {offsets = [0, 9], sizes = [32, 1], strides = [1, 1]} : vector<32x15xf32> to vector<32x1xf32>
    %584 = vector.broadcast %583 : vector<32x1xf32> to vector<32x128xf32>
    %585 = arith.addf %582, %584 : vector<32x128xf32>
    %586 = vector.extract_strided_slice %2 {offsets = [0, 10], sizes = [32, 1], strides = [1, 1]} : vector<32x15xf32> to vector<32x1xf32>
    %587 = vector.extract_strided_slice %2 {offsets = [0, 11], sizes = [32, 1], strides = [1, 1]} : vector<32x15xf32> to vector<32x1xf32>
    %cst_223 = arith.constant dense<0.000000e+00> : vector<32xf32>
    %588 = vector.multi_reduction <add>, %585, %cst_223 [1] : vector<32x128xf32> to vector<32xf32>
    %589 = vector.shape_cast %588 : vector<32xf32> to vector<32x1xf32>
    %590 = arith.mulf %585, %585 : vector<32x128xf32>
    %cst_224 = arith.constant dense<0.000000e+00> : vector<32xf32>
    %591 = vector.multi_reduction <add>, %590, %cst_224 [1] : vector<32x128xf32> to vector<32xf32>
    %592 = vector.shape_cast %591 : vector<32xf32> to vector<32x1xf32>
    %cst_225 = arith.constant 7.812500e-03 : f32
    %593 = vector.broadcast %cst_225 : f32 to vector<32x1xf32>
    %594 = arith.mulf %589, %593 : vector<32x1xf32>
    %cst_226 = arith.constant 7.812500e-03 : f32
    %595 = vector.broadcast %cst_226 : f32 to vector<32x1xf32>
    %596 = arith.mulf %592, %595 : vector<32x1xf32>
    %597 = arith.mulf %594, %594 : vector<32x1xf32>
    %598 = arith.subf %596, %597 : vector<32x1xf32>
    %cst_227 = arith.constant 0.000000e+00 : f32
    %599 = vector.broadcast %cst_227 : f32 to vector<32x1xf32>
    %600 = arith.maximumf %598, %599 : vector<32x1xf32>
    %601 = vector.broadcast %594 : vector<32x1xf32> to vector<32x128xf32>
    %602 = arith.subf %585, %601 : vector<32x128xf32>
    %cst_228 = arith.constant 9.99999974E-6 : f32
    %603 = vector.broadcast %cst_228 : f32 to vector<32x1xf32>
    %604 = arith.addf %600, %603 : vector<32x1xf32>
    %605 = math.rsqrt %604 : vector<32x1xf32>
    %606 = arith.mulf %586, %605 : vector<32x1xf32>
    %607 = vector.broadcast %606 : vector<32x1xf32> to vector<32x128xf32>
    %608 = arith.mulf %602, %607 : vector<32x128xf32>
    %609 = vector.broadcast %587 : vector<32x1xf32> to vector<32x128xf32>
    %610 = arith.addf %608, %609 : vector<32x128xf32>
    %611 = arith.addf %610, %378 : vector<32x128xf32>
    %c1_229 = arith.constant 1 : index
    %c0_230 = arith.constant 0 : index
    %c0_231 = arith.constant 0 : index
    %612 = vector.load %arg5[%c1_229, %c0_230, %c0_231] : memref<2x32x32xbf16, #tpu.memory_space<vmem>>, vector<1x32x32xbf16>
    %613 = vector.shape_cast %612 : vector<1x32x32xbf16> to vector<32x32xbf16>
    %614 = arith.truncf %611 : vector<32x128xf32> to vector<32x128xbf16>
    %cst_232 = arith.constant dense<0.000000e+00> : vector<32x128xf32>
    %615 = tpu.matmul %613, %614, %cst_232 {dimension_numbers = #tpu.dot_dimension_numbers<[1], [0], [0], [1], [0, 0, 1, 1], [], []>} : vector<32x32xbf16>, vector<32x128xbf16>, vector<32x128xf32> -> vector<32x128xf32>
    %616 = vector.extract_strided_slice %2 {offsets = [0, 12], sizes = [32, 1], strides = [1, 1]} : vector<32x15xf32> to vector<32x1xf32>
    %617 = vector.broadcast %616 : vector<32x1xf32> to vector<32x128xf32>
    %618 = arith.addf %615, %617 : vector<32x128xf32>
    %cst_233 = arith.constant 0.707106769 : f32
    %619 = vector.broadcast %cst_233 : f32 to vector<32x128xf32>
    %620 = arith.mulf %618, %619 : vector<32x128xf32>
    %621 = math.absf %620 : vector<32x128xf32>
    %cst_234 = arith.constant 0.327591091 : f32
    %622 = vector.broadcast %cst_234 : f32 to vector<32x128xf32>
    %623 = arith.mulf %622, %621 : vector<32x128xf32>
    %cst_235 = arith.constant 1.000000e+00 : f32
    %624 = vector.broadcast %cst_235 : f32 to vector<32x128xf32>
    %625 = arith.addf %624, %623 : vector<32x128xf32>
    %cst_236 = arith.constant 1.000000e+00 : f32
    %626 = vector.broadcast %cst_236 : f32 to vector<32x128xf32>
    %627 = arith.divf %626, %625 : vector<32x128xf32>
    %cst_237 = arith.constant 1.06140542 : f32
    %628 = vector.broadcast %cst_237 : f32 to vector<32x128xf32>
    %629 = arith.mulf %627, %628 : vector<32x128xf32>
    %cst_238 = arith.constant -1.45315206 : f32
    %630 = vector.broadcast %cst_238 : f32 to vector<32x128xf32>
    %631 = arith.addf %630, %629 : vector<32x128xf32>
    %632 = arith.mulf %627, %631 : vector<32x128xf32>
    %cst_239 = arith.constant 1.42141378 : f32
    %633 = vector.broadcast %cst_239 : f32 to vector<32x128xf32>
    %634 = arith.addf %633, %632 : vector<32x128xf32>
    %635 = arith.mulf %627, %634 : vector<32x128xf32>
    %cst_240 = arith.constant -0.284496725 : f32
    %636 = vector.broadcast %cst_240 : f32 to vector<32x128xf32>
    %637 = arith.addf %636, %635 : vector<32x128xf32>
    %638 = arith.mulf %627, %637 : vector<32x128xf32>
    %cst_241 = arith.constant 0.254829586 : f32
    %639 = vector.broadcast %cst_241 : f32 to vector<32x128xf32>
    %640 = arith.addf %639, %638 : vector<32x128xf32>
    %641 = arith.mulf %627, %640 : vector<32x128xf32>
    %cst_242 = arith.constant 0.000000e+00 : f32
    %642 = vector.broadcast %cst_242 : f32 to vector<32x128xf32>
    %643 = arith.subf %642, %621 : vector<32x128xf32>
    %644 = arith.mulf %643, %621 : vector<32x128xf32>
    %645 = math.exp %644 : vector<32x128xf32>
    %646 = arith.mulf %641, %645 : vector<32x128xf32>
    %cst_243 = arith.constant 1.000000e+00 : f32
    %647 = vector.broadcast %cst_243 : f32 to vector<32x128xf32>
    %648 = arith.subf %647, %646 : vector<32x128xf32>
    %cst_244 = arith.constant 0.000000e+00 : f32
    %649 = vector.broadcast %cst_244 : f32 to vector<32x128xf32>
    %650 = arith.cmpf oge, %620, %649 : vector<32x128xf32>
    %cst_245 = arith.constant 0.000000e+00 : f32
    %651 = vector.broadcast %cst_245 : f32 to vector<32x128xf32>
    %652 = arith.subf %651, %648 : vector<32x128xf32>
    %653 = arith.select %650, %648, %652 : vector<32x128xi1>, vector<32x128xf32>
    %cst_246 = arith.constant 5.000000e-01 : f32
    %654 = vector.broadcast %cst_246 : f32 to vector<32x128xf32>
    %655 = arith.mulf %654, %618 : vector<32x128xf32>
    %cst_247 = arith.constant 1.000000e+00 : f32
    %656 = vector.broadcast %cst_247 : f32 to vector<32x128xf32>
    %657 = arith.addf %656, %653 : vector<32x128xf32>
    %658 = arith.mulf %655, %657 : vector<32x128xf32>
    %659 = vector.extract_strided_slice %2 {offsets = [0, 13], sizes = [32, 1], strides = [1, 1]} : vector<32x15xf32> to vector<32x1xf32>
    %660 = vector.extract_strided_slice %2 {offsets = [0, 14], sizes = [32, 1], strides = [1, 1]} : vector<32x15xf32> to vector<32x1xf32>
    %cst_248 = arith.constant dense<0.000000e+00> : vector<32xf32>
    %661 = vector.multi_reduction <add>, %658, %cst_248 [1] : vector<32x128xf32> to vector<32xf32>
    %662 = vector.shape_cast %661 : vector<32xf32> to vector<32x1xf32>
    %663 = arith.mulf %658, %658 : vector<32x128xf32>
    %cst_249 = arith.constant dense<0.000000e+00> : vector<32xf32>
    %664 = vector.multi_reduction <add>, %663, %cst_249 [1] : vector<32x128xf32> to vector<32xf32>
    %665 = vector.shape_cast %664 : vector<32xf32> to vector<32x1xf32>
    %cst_250 = arith.constant 7.812500e-03 : f32
    %666 = vector.broadcast %cst_250 : f32 to vector<32x1xf32>
    %667 = arith.mulf %662, %666 : vector<32x1xf32>
    %cst_251 = arith.constant 7.812500e-03 : f32
    %668 = vector.broadcast %cst_251 : f32 to vector<32x1xf32>
    %669 = arith.mulf %665, %668 : vector<32x1xf32>
    %670 = arith.mulf %667, %667 : vector<32x1xf32>
    %671 = arith.subf %669, %670 : vector<32x1xf32>
    %cst_252 = arith.constant 0.000000e+00 : f32
    %672 = vector.broadcast %cst_252 : f32 to vector<32x1xf32>
    %673 = arith.maximumf %671, %672 : vector<32x1xf32>
    %674 = vector.broadcast %667 : vector<32x1xf32> to vector<32x128xf32>
    %675 = arith.subf %658, %674 : vector<32x128xf32>
    %cst_253 = arith.constant 9.99999974E-6 : f32
    %676 = vector.broadcast %cst_253 : f32 to vector<32x1xf32>
    %677 = arith.addf %673, %676 : vector<32x1xf32>
    %678 = math.rsqrt %677 : vector<32x1xf32>
    %679 = arith.mulf %659, %678 : vector<32x1xf32>
    %680 = vector.broadcast %679 : vector<32x1xf32> to vector<32x128xf32>
    %681 = arith.mulf %675, %680 : vector<32x128xf32>
    %682 = vector.broadcast %660 : vector<32x1xf32> to vector<32x128xf32>
    %683 = arith.addf %681, %682 : vector<32x128xf32>
    %c0_254 = arith.constant 0 : index
    %c0_255 = arith.constant 0 : index
    %684 = vector.load %arg7[%c0_254, %c0_255] : memref<128x2xf32, #tpu.memory_space<vmem>>, vector<128x2xf32>
    %cst_256 = arith.constant dense<0.000000e+00> : vector<32x2xf32>
    %685 = tpu.matmul %683, %684, %cst_256 {dimension_numbers = #tpu.dot_dimension_numbers<[1], [0], [0], [1], [0, 0, 1, 1], [], []>} : vector<32x128xf32>, vector<128x2xf32>, vector<32x2xf32> -> vector<32x2xf32>
    %c0_257 = arith.constant 0 : index
    %c0_258 = arith.constant 0 : index
    %686 = vector.load %arg6[%c0_257, %c0_258] : memref<10x33xf32, #tpu.memory_space<vmem>>, vector<10x33xf32>
    %687 = vector.extract_strided_slice %686 {offsets = [0, 0], sizes = [10, 32], strides = [1, 1]} : vector<10x33xf32> to vector<10x32xf32>
    %cst_259 = arith.constant dense<0.000000e+00> : vector<10x2xf32>
    %688 = tpu.matmul %687, %685, %cst_259 {dimension_numbers = #tpu.dot_dimension_numbers<[1], [0], [0], [1], [0, 0, 1, 1], [], []>} : vector<10x32xf32>, vector<32x2xf32>, vector<10x2xf32> -> vector<10x2xf32>
    %689 = vector.extract_strided_slice %686 {offsets = [0, 32], sizes = [10, 1], strides = [1, 1]} : vector<10x33xf32> to vector<10x1xf32>
    %690 = vector.broadcast %689 : vector<10x1xf32> to vector<10x2xf32>
    %691 = arith.addf %688, %690 : vector<10x2xf32>
    %c0_260 = arith.constant 0 : index
    %c0_261 = arith.constant 0 : index
    %692 = vector.load %arg8[%c0_260, %c0_261] : memref<10x2xf32, #tpu.memory_space<vmem>>, vector<10x2xf32>
    tpu.vector_store %arg8[%c0_260, %c0_261], %691 {strides = array<i32>} : memref<10x2xf32, #tpu.memory_space<vmem>>, vector<10x2xf32>,
    return
  }
}

</mosaic_0001>

<llo_original>
// kernel: convmixer_forward.1
$region0: #{convmixer_forward.1}
  #allocation0 [shape = 'u32[]', space=smem, size = 0x4, offset = 0x4, fixed_abs, tag = 'smem constant byte address 0x4 - core index']
  #allocation1 [shape = 'u32[72,128]{1,0:T(1,128)}', space=vmem, size = 0x9000, scoped, tag = 'internal scratch']
  #allocation2 [shape = 'f32[32,384]{1,0:T(8,128)}', space=vmem, size = 0xc000, scoped, tag = 'scratch operand']
  %s0 = inlined_call_operand.vmem [shape: bf16[12,128], index: 0, kind: input, shape index: {}]
  %s1 = inlined_call_operand.vmem [shape: bf16[32,12], index: 1, kind: input, shape index: {}]
  %s2 = inlined_call_operand.vmem [shape: f32[32,15], index: 2, kind: input, shape index: {}]
  %s3 = inlined_call_operand.vmem [shape: f32[2,32,25], index: 3, kind: input, shape index: {}]
  %s4 = inlined_call_operand.vmem [shape: f32[25,128], index: 4, kind: input, shape index: {}]
  %s5 = inlined_call_operand.vmem [shape: bf16[2,32,32], index: 5, kind: input, shape index: {}]
  %s6 = inlined_call_operand.vmem [shape: f32[10,33], index: 6, kind: input, shape index: {}]
  %s7 = inlined_call_operand.vmem [shape: f32[128,2], index: 7, kind: input, shape index: {}]
  %s8 = inlined_call_operand.vmem [shape: f32[10,2], index: 8, kind: output, shape index: {}]
  %s9 = sld [smem:[#allocation0]]
  $region42: #{convmixer_forward.1} parent=0
    _
  %s11 = ssub.s32 1, %s9
  %s12 = scalar_select 0, %s11, %s9
  // Predicated region
  $region2: #{convmixer_forward.1} parent=0 // pred_check
    _
  $region3: #{convmixer_forward.1} parent=0 // pred_check_branch
    %14 = sbr.rel (0) target = $region5
  $region4: #{convmixer_forward.1} parent=0 // pred_region
    _
  $region5: #{convmixer_forward.1} parent=0 // pred_fallthru
    _
  // Predicated region
  $region6: #{convmixer_forward.1} parent=0 // pred_check
    _
  $region7: #{convmixer_forward.1} parent=0 // pred_check_branch
    %16 = sbr.rel (0) target = $region9
  $region8: #{convmixer_forward.1} parent=0 // pred_region
    _
  $region9: #{convmixer_forward.1} parent=0 // pred_fallthru
    _
  // Predicated region
  $region10: #{convmixer_forward.1} parent=0 // pred_check
    _
  $region11: #{convmixer_forward.1} parent=0 // pred_check_branch
    %18 = sbr.rel (0) target = $region13
  $region12: #{convmixer_forward.1} parent=0 // pred_region
    _
  $region13: #{convmixer_forward.1} parent=0 // pred_fallthru
    _
  // Predicated region
  $region14: #{convmixer_forward.1} parent=0 // pred_check
    _
  $region15: #{convmixer_forward.1} parent=0 // pred_check_branch
    %20 = sbr.rel (0) target = $region17
  $region16: #{convmixer_forward.1} parent=0 // pred_region
    _
  $region17: #{convmixer_forward.1} parent=0 // pred_fallthru
    _
  // Predicated region
  $region18: #{convmixer_forward.1} parent=0 // pred_check
    _
  $region19: #{convmixer_forward.1} parent=0 // pred_check_branch
    %22 = sbr.rel (0) target = $region21
  $region20: #{convmixer_forward.1} parent=0 // pred_region
    _
  $region21: #{convmixer_forward.1} parent=0 // pred_fallthru
    _
  // Predicated region
  $region22: #{convmixer_forward.1} parent=0 // pred_check
    _
  $region23: #{convmixer_forward.1} parent=0 // pred_check_branch
    %24 = sbr.rel (0) target = $region25
  $region24: #{convmixer_forward.1} parent=0 // pred_region
    _
  $region25: #{convmixer_forward.1} parent=0 // pred_fallthru
    _
  // Predicated region
  $region26: #{convmixer_forward.1} parent=0 // pred_check
    _
  $region27: #{convmixer_forward.1} parent=0 // pred_check_branch
    %26 = sbr.rel (0) target = $region29
  $region28: #{convmixer_forward.1} parent=0 // pred_region
    _
  $region29: #{convmixer_forward.1} parent=0 // pred_fallthru
    _
  // Predicated region
  $region30: #{convmixer_forward.1} parent=0 // pred_check
    _
  $region31: #{convmixer_forward.1} parent=0 // pred_check_branch
    %28 = sbr.rel (0) target = $region33
  $region32: #{convmixer_forward.1} parent=0 // pred_region
    _
  $region33: #{convmixer_forward.1} parent=0 // pred_fallthru
    _
  %30 = vst [vmem:[#allocation2] sm:$0xff] 0.0
  %31 = vst [vmem:[#allocation2 + $0x8] sm:$0xff] 0.0
  %32 = vst [vmem:[#allocation2 + $0x10] sm:$0xff] 0.0
  %33 = vst [vmem:[#allocation2 + $0x18] sm:$0xff] 0.0
  %34 = vst [vmem:[#allocation2 + $0x20] sm:$0xff] 0.0
  %35 = vst [vmem:[#allocation2 + $0x28] sm:$0xff] 0.0
  %36 = vst [vmem:[#allocation2 + $0x30] sm:$0xff] 0.0
  %37 = vst [vmem:[#allocation2 + $0x38] sm:$0xff] 0.0
  %38 = vst [vmem:[#allocation2 + $0x40] sm:$0xff] 0.0
  %39 = vst [vmem:[#allocation2 + $0x48] sm:$0xff] 0.0
  %40 = vst [vmem:[#allocation2 + $0x50] sm:$0xff] 0.0
  %41 = vst [vmem:[#allocation2 + $0x58] sm:$0xff] 0.0
  %v42 = vld [vmem:[%s2] sm:$0xff]
  %v43 = vld [vmem:[%s2 + $0x8] sm:$0xff]
  %v44 = vld [vmem:[%s2 + $0x10] sm:$0xff]
  %v45 = vld [vmem:[%s2 + $0x18] sm:$0xff]
  %v46 = vld [vmem:[%s1] sm:$0xf]
  %v47 = vld [vmem:[%s1 + $0x4] sm:$0xf]
  %v48 = vld [vmem:[%s1 + $0x8] sm:$0xf]
  %v49 = vld [vmem:[%s1 + $0xc] sm:$0xf]
  %v50 = vld [vmem:[%s0] sm:$0xf]
  %v51 = vld [vmem:[%s0 + $0x4] sm:$0x3]
  %53 = vset.pattern.permute.xlu0 0
  %54 = vperm.xlu0 %53, %v42
  %v55 = vpop.permute.xlu0 %54
  %58 = vset.pattern.permute.xlu0 0
  %59 = vperm.xlu0 %58, %v43
  %v60 = vpop.permute.xlu0 %59
  %63 = vset.pattern.permute.xlu0 0
  %64 = vperm.xlu0 %63, %v44
  %v65 = vpop.permute.xlu0 %64
  %68 = vset.pattern.permute.xlu0 0
  %69 = vperm.xlu0 %68, %v45
  %v70 = vpop.permute.xlu0 %69
  %v76 = vunpack.c.l.b16 %v46
  %v77 = vunpack.c.l.b16 %v47
  %v78 = vunpack.c.l.b16 %v48
  %v79 = vunpack.c.l.b16 %v49
  %v80 = vpack.c.b16 %v77, %v76
  %v81 = vpack.c.b16 %v79, %v78
  %v84 = vunpack.c.l.b16 %v50
  %v85 = vunpack.c.l.b16 %v51
  %v86 = vpack.c.b16 %v85, %v84
  %vm87 = vcmask 97280
  %v89 = vsel %vm87, %v80, 0
  %v92 = vsel %vm87, %v81, 0
  %vm94 = vcmask 1045504
  %v96 = vsel %vm94, %v86, 0
  %98 = vmatpush.bf16.msra.mxu0 0
  %99 = vmatpush.bf16.msra.mxu0 0
  %100 = vmatpush.bf16.msra.mxu0 0
  %101 = vmatpush.bf16.msra.mxu0 0
  %102 = vmatpush.bf16.msra.mxu0 0
  %103 = vmatpush.bf16.msra.mxu0 0
  %104 = vmatpush.bf16.msra.mxu0 0
  %105 = vmatpush.bf16.msra.mxu0 %v96
  %106 = vmatmul.bf16.gmra.mxu0 %v89
  %v107 = vpop.f32.mrf.mxu0
  %v108 = vadd.f32 %v55, %v107
  %v109 = vpop.f32.mrf.mxu0
  %v110 = vadd.f32 %v60, %v109
  %111 = vmatmul.bf16.gmra.mxu0 %v92
  %v112 = vpop.f32.mrf.mxu0
  %v113 = vadd.f32 %v65, %v112
  %v114 = vpop.f32.mrf.mxu0
  %v115 = vadd.f32 %v70, %v114
  %116 = vdwg.mxu0
  %v117 = vmul.f32 %v108, 0.70710677
  %v118 = vmul.f32 %v110, 0.70710677
  %v119 = vmul.f32 %v113, 0.70710677
  %v120 = vmul.f32 %v115, 0.70710677
  %v121 = vand.u32 2147483647, %v117
  %v122 = vand.u32 2147483647, %v118
  %v123 = vand.u32 2147483647, %v119
  %v124 = vand.u32 2147483647, %v120
  %v125 = vmul.f32 %v121, 0.3275911
  %v126 = vmul.f32 %v122, 0.3275911
  %v127 = vmul.f32 %v123, 0.3275911
  %v128 = vmul.f32 %v124, 0.3275911
  %v129 = vadd.f32 %v125, 1.0
  %v130 = vadd.f32 %v126, 1.0
  %v131 = vadd.f32 %v127, 1.0
  %v132 = vadd.f32 %v128, 1.0
  %v133 = vrcp.pop %v129
  %v134 = vmul.f32 %v129, %v133
  %v135 = vsub.f32 1.0, %v134
  %v136 = vmul.f32 %v133, %v135
  %v137 = vadd.f32 %v133, %v136
  %vm138 = vweird.f32 %v129
  %vm139 = vweird.f32 %v133
  %vm140 = vmor %vm138, %vm139
  %v141 = vsel %vm140, %v133, %v137
  %v142 = vand.u32 2147483647, %v129
  %vm143 = vcmp.eq.f32.partialorder %v142, 8.507059e+37
  %v144 = vand.u32 %v129, 2147483648
  %v145 = vor.u32 1.1754944e-38, %v144
  %v146 = vsel %vm143, %v145, %v141
  %v147 = vmul.f32 1.0, %v146
  %v148 = vrcp.pop %v130
  %v149 = vmul.f32 %v130, %v148
  %v150 = vsub.f32 1.0, %v149
  %v151 = vmul.f32 %v148, %v150
  %v152 = vadd.f32 %v148, %v151
  %vm153 = vweird.f32 %v130
  %vm154 = vweird.f32 %v148
  %vm155 = vmor %vm153, %vm154
  %v156 = vsel %vm155, %v148, %v152
  %v157 = vand.u32 2147483647, %v130
  %vm158 = vcmp.eq.f32.partialorder %v157, 8.507059e+37
  %v159 = vand.u32 %v130, 2147483648
  %v160 = vor.u32 1.1754944e-38, %v159
  %v161 = vsel %vm158, %v160, %v156
  %v162 = vmul.f32 1.0, %v161
  %v163 = vrcp.pop %v131
  %v164 = vmul.f32 %v131, %v163
  %v165 = vsub.f32 1.0, %v164
  %v166 = vmul.f32 %v163, %v165
  %v167 = vadd.f32 %v163, %v166
  %vm168 = vweird.f32 %v131
  %vm169 = vweird.f32 %v163
  %vm170 = vmor %vm168, %vm169
  %v171 = vsel %vm170, %v163, %v167
  %v172 = vand.u32 2147483647, %v131
  %vm173 = vcmp.eq.f32.partialorder %v172, 8.507059e+37
  %v174 = vand.u32 %v131, 2147483648
  %v175 = vor.u32 1.1754944e-38, %v174
  %v176 = vsel %vm173, %v175, %v171
  %v177 = vmul.f32 1.0, %v176
  %v178 = vrcp.pop %v132
  %v179 = vmul.f32 %v132, %v178
  %v180 = vsub.f32 1.0, %v179
  %v181 = vmul.f32 %v178, %v180
  %v182 = vadd.f32 %v178, %v181
  %vm183 = vweird.f32 %v132
  %vm184 = vweird.f32 %v178
  %vm185 = vmor %vm183, %vm184
  %v186 = vsel %vm185, %v178, %v182
  %v187 = vand.u32 2147483647, %v132
  %vm188 = vcmp.eq.f32.partialorder %v187, 8.507059e+37
  %v189 = vand.u32 %v132, 2147483648
  %v190 = vor.u32 1.1754944e-38, %v189
  %v191 = vsel %vm188, %v190, %v186
  %v192 = vmul.f32 1.0, %v191
  %v193 = vmul.f32 %v147, 1.0614054
  %v194 = vmul.f32 %v162, 1.0614054
  %v195 = vmul.f32 %v177, 1.0614054
  %v196 = vmul.f32 %v192, 1.0614054
  %v197 = vadd.f32 %v193, -1.4531521
  %v198 = vadd.f32 %v194, -1.4531521
  %v199 = vadd.f32 %v195, -1.4531521
  %v200 = vadd.f32 %v196, -1.4531521
  %v201 = vmul.f32 %v147, %v197
  %v202 = vmul.f32 %v162, %v198
  %v203 = vmul.f32 %v177, %v199
  %v204 = vmul.f32 %v192, %v200
  %v205 = vadd.f32 %v201, 1.4214138
  %v206 = vadd.f32 %v202, 1.4214138
  %v207 = vadd.f32 %v203, 1.4214138
  %v208 = vadd.f32 %v204, 1.4214138
  %v209 = vmul.f32 %v147, %v205
  %v210 = vmul.f32 %v162, %v206
  %v211 = vmul.f32 %v177, %v207
  %v212 = vmul.f32 %v192, %v208
  %v213 = vadd.f32 %v209, -0.28449672
  %v214 = vadd.f32 %v210, -0.28449672
  %v215 = vadd.f32 %v211, -0.28449672
  %v216 = vadd.f32 %v212, -0.28449672
  %v217 = vmul.f32 %v147, %v213
  %v218 = vmul.f32 %v162, %v214
  %v219 = vmul.f32 %v177, %v215
  %v220 = vmul.f32 %v192, %v216
  %v221 = vadd.f32 %v217, 0.2548296
  %v222 = vadd.f32 %v218, 0.2548296
  %v223 = vadd.f32 %v219, 0.2548296
  %v224 = vadd.f32 %v220, 0.2548296
  %v225 = vmul.f32 %v147, %v221
  %v226 = vmul.f32 %v162, %v222
  %v227 = vmul.f32 %v177, %v223
  %v228 = vmul.f32 %v192, %v224
  %v229 = vsub.f32 0.0, %v121
  %v230 = vsub.f32 0.0, %v122
  %v231 = vsub.f32 0.0, %v123
  %v232 = vsub.f32 0.0, %v124
  %v233 = vmul.f32 %v229, %v121
  %v234 = vmul.f32 %v230, %v122
  %v235 = vmul.f32 %v231, %v123
  %v236 = vmul.f32 %v232, %v124
  %v237 = vmul.f32 %v233, 1.442695
  %v238 = vpow.pop %v237
  %v239 = vmul.f32 %v234, 1.442695
  %v240 = vpow.pop %v239
  %v241 = vmul.f32 %v235, 1.442695
  %v242 = vpow.pop %v241
  %v243 = vmul.f32 %v236, 1.442695
  %v244 = vpow.pop %v243
  %v245 = vmul.f32 %v225, %v238
  %v246 = vmul.f32 %v226, %v240
  %v247 = vmul.f32 %v227, %v242
  %v248 = vmul.f32 %v228, %v244
  %v249 = vsub.f32 1.0, %v245
  %v250 = vsub.f32 1.0, %v246
  %v251 = vsub.f32 1.0, %v247
  %v252 = vsub.f32 1.0, %v248
  %vm253 = vcmp.ge.f32.partialorder %v117, 0.0
  %vm254 = vcmp.ge.f32.partialorder %v118, 0.0
  %vm255 = vcmp.ge.f32.partialorder %v119, 0.0
  %vm256 = vcmp.ge.f32.partialorder %v120, 0.0
  %v257 = vsub.f32 0.0, %v249
  %v258 = vsub.f32 0.0, %v250
  %v259 = vsub.f32 0.0, %v251
  %v260 = vsub.f32 0.0, %v252
  %v261 = vsel %vm253, %v249, %v257
  %v262 = vsel %vm254, %v250, %v258
  %v263 = vsel %vm255, %v251, %v259
  %v264 = vsel %vm256, %v252, %v260
  %v265 = vmul.f32 %v108, 0.5
  %v266 = vmul.f32 %v110, 0.5
  %v267 = vmul.f32 %v113, 0.5
  %v268 = vmul.f32 %v115, 0.5
  %v269 = vadd.f32 %v261, 1.0
  %v270 = vadd.f32 %v262, 1.0
  %v271 = vadd.f32 %v263, 1.0
  %v272 = vadd.f32 %v264, 1.0
  %v273 = vmul.f32 %v265, %v269
  %v274 = vmul.f32 %v266, %v270
  %v275 = vmul.f32 %v267, %v271
  %v276 = vmul.f32 %v268, %v272
  %277 = vadd.xlane.f32.xlu0 %v273
  %v278 = vpop.xlane.xlu0 %277
  %279 = vadd.xlane.f32.xlu0 %v274
  %v280 = vpop.xlane.xlu0 %279
  %281 = vadd.xlane.f32.xlu0 %v275
  %v282 = vpop.xlane.xlu0 %281
  %283 = vadd.xlane.f32.xlu0 %v276
  %v284 = vpop.xlane.xlu0 %283
  %v285 = vmul.f32 %v273, %v273
  %v286 = vmul.f32 %v274, %v274
  %v287 = vmul.f32 %v275, %v275
  %v288 = vmul.f32 %v276, %v276
  %289 = vadd.xlane.f32.xlu0 %v285
  %v290 = vpop.xlane.xlu0 %289
  %291 = vadd.xlane.f32.xlu0 %v286
  %v292 = vpop.xlane.xlu0 %291
  %293 = vadd.xlane.f32.xlu0 %v287
  %v294 = vpop.xlane.xlu0 %293
  %295 = vadd.xlane.f32.xlu0 %v288
  %v296 = vpop.xlane.xlu0 %295
  %v297 = vmul.f32 %v278, 0.0078125
  %v298 = vmul.f32 %v280, 0.0078125
  %v299 = vmul.f32 %v282, 0.0078125
  %v300 = vmul.f32 %v284, 0.0078125
  %v301 = vmul.f32 %v290, 0.0078125
  %v302 = vmul.f32 %v292, 0.0078125
  %v303 = vmul.f32 %v294, 0.0078125
  %v304 = vmul.f32 %v296, 0.0078125
  %v305 = vmul.f32 %v297, %v297
  %v306 = vmul.f32 %v298, %v298
  %v307 = vmul.f32 %v299, %v299
  %v308 = vmul.f32 %v300, %v300
  %v309 = vsub.f32 %v301, %v305
  %v310 = vsub.f32 %v302, %v306
  %v311 = vsub.f32 %v303, %v307
  %v312 = vsub.f32 %v304, %v308
  %v313 = vmax.f32 %v309, 0.0
  %v314 = vmax.f32 %v310, 0.0
  %v315 = vmax.f32 %v311, 0.0
  %v316 = vmax.f32 %v312, 0.0
  %v317 = vsub.f32 %v273, %v297
  %v318 = vsub.f32 %v274, %v298
  %v319 = vsub.f32 %v275, %v299
  %v320 = vsub.f32 %v276, %v300
  %v321 = vadd.f32 %v313, 1e-05
  %v322 = vadd.f32 %v314, 1e-05
  %v323 = vadd.f32 %v315, 1e-05
  %v324 = vadd.f32 %v316, 1e-05
  %v325 = vrsqrt.pop %v321
  %v326 = vmul.f32 %v325, %v321
  %v327 = vmul.f32 %v326, %v325
  %v328 = vmul.f32 0.5, %v327
  %v329 = vsub.f32 1.5, %v328
  %v330 = vmul.f32 %v325, %v329
  %vm331 = vweird.f32 %v321
  %vm332 = vweird.f32 %v325
  %vm333 = vmor %vm331, %vm332
  %v334 = vsel %vm333, %v325, %v330
  %v335 = vrsqrt.pop %v322
  %v336 = vmul.f32 %v335, %v322
  %v337 = vmul.f32 %v336, %v335
  %v338 = vmul.f32 0.5, %v337
  %v339 = vsub.f32 1.5, %v338
  %v340 = vmul.f32 %v335, %v339
  %vm341 = vweird.f32 %v322
  %vm342 = vweird.f32 %v335
  %vm343 = vmor %vm341, %vm342
  %v344 = vsel %vm343, %v335, %v340
  %v345 = vrsqrt.pop %v323
  %v346 = vmul.f32 %v345, %v323
  %v347 = vmul.f32 %v346, %v345
  %v348 = vmul.f32 0.5, %v347
  %v349 = vsub.f32 1.5, %v348
  %v350 = vmul.f32 %v345, %v349
  %vm351 = vweird.f32 %v323
  %vm352 = vweird.f32 %v345
  %vm353 = vmor %vm351, %vm352
  %v354 = vsel %vm353, %v345, %v350
  %v355 = vrsqrt.pop %v324
  %v356 = vmul.f32 %v355, %v324
  %v357 = vmul.f32 %v356, %v355
  %v358 = vmul.f32 0.5, %v357
  %v359 = vsub.f32 1.5, %v358
  %v360 = vmul.f32 %v355, %v359
  %vm361 = vweird.f32 %v324
  %vm362 = vweird.f32 %v355
  %vm363 = vmor %vm361, %vm362
  %v364 = vsel %vm363, %v355, %v360
  %v365 = vmul.f32 %v42, %v334
  %v366 = vmul.f32 %v43, %v344
  %v367 = vmul.f32 %v44, %v354
  %v368 = vmul.f32 %v45, %v364
  %370 = vset.pattern.permute.xlu0 1
  %371 = vperm.xlu0 %370, %v365
  %v372 = vpop.permute.xlu0 %371
  %375 = vset.pattern.permute.xlu0 1
  %376 = vperm.xlu0 %375, %v366
  %v377 = vpop.permute.xlu0 %376
  %380 = vset.pattern.permute.xlu0 1
  %381 = vperm.xlu0 %380, %v367
  %v382 = vpop.permute.xlu0 %381
  %385 = vset.pattern.permute.xlu0 1
  %386 = vperm.xlu0 %385, %v368
  %v387 = vpop.permute.xlu0 %386
  %v389 = vmul.f32 %v317, %v372
  %v390 = vmul.f32 %v318, %v377
  %v391 = vmul.f32 %v319, %v382
  %v392 = vmul.f32 %v320, %v387
  %393 = vset.pattern.permute.xlu0 2
  %394 = vperm.xlu0 %393, %v42
  %v395 = vpop.permute.xlu0 %394
  %397 = vset.pattern.permute.xlu0 2
  %398 = vperm.xlu0 %397, %v43
  %v399 = vpop.permute.xlu0 %398
  %401 = vset.pattern.permute.xlu0 2
  %402 = vperm.xlu0 %401, %v44
  %v403 = vpop.permute.xlu0 %402
  %405 = vset.pattern.permute.xlu0 2
  %406 = vperm.xlu0 %405, %v45
  %v407 = vpop.permute.xlu0 %406
  %v409 = vadd.f32 %v389, %v395
  %v410 = vadd.f32 %v390, %v399
  %v411 = vadd.f32 %v391, %v403
  %v412 = vadd.f32 %v392, %v407
  %413 = vst [vmem:[#allocation2 + $0x8] sm:$0xff] %v409
  %414 = vst [vmem:[#allocation2 + $0x20] sm:$0xff] %v410
  %415 = vst [vmem:[#allocation2 + $0x38] sm:$0xff] %v411
  %416 = vst [vmem:[#allocation2 + $0x50] sm:$0xff] %v412
  %v417 = vld [vmem:[%s3] sm:$0xff]
  %v418 = vld [vmem:[%s3 + $0x8] sm:$0xff]
  %v419 = vld [vmem:[%s3 + $0x10] sm:$0xff]
  %v420 = vld [vmem:[%s3 + $0x18] sm:$0xff]
  %v421 = vld [vmem:[#allocation2] sm:$0xff]
  %v422 = vld [vmem:[#allocation2 + $0x8] sm:$0xff]
  %v423 = vld [vmem:[#allocation2 + $0x18] sm:$0xff]
  %v424 = vld [vmem:[#allocation2 + $0x20] sm:$0xff]
  %v425 = vld [vmem:[#allocation2 + $0x30] sm:$0xff]
  %v426 = vld [vmem:[#allocation2 + $0x38] sm:$0xff]
  %v427 = vld [vmem:[#allocation2 + $0x48] sm:$0xff]
  %v428 = vld [vmem:[#allocation2 + $0x50] sm:$0xff]
  %v429 = vld [vmem:[%s4] sm:$0x1]
  %v430 = vperm.slane %v429, 0
  %432 = vrot.lane.b32.xlu0 %v430, 110
  %v433 = vpop.permute.xlu0 %432
  %v435 = vmul.f32 %v421, %v433
  %v436 = vmul.f32 %v422, %v433
  %v437 = vmul.f32 %v423, %v433
  %v438 = vmul.f32 %v424, %v433
  %v439 = vmul.f32 %v425, %v433
  %v440 = vmul.f32 %v426, %v433
  %v441 = vmul.f32 %v427, %v433
  %v442 = vmul.f32 %v428, %v433
  %444 = vset.pattern.permute.xlu0 0
  %445 = vperm.xlu0 %444, %v417
  %v446 = vpop.permute.xlu0 %445
  %449 = vset.pattern.permute.xlu0 0
  %450 = vperm.xlu0 %449, %v418
  %v451 = vpop.permute.xlu0 %450
  %454 = vset.pattern.permute.xlu0 0
  %455 = vperm.xlu0 %454, %v419
  %v456 = vpop.permute.xlu0 %455
  %459 = vset.pattern.permute.xlu0 0
  %460 = vperm.xlu0 %459, %v420
  %v461 = vpop.permute.xlu0 %460
  %v463 = vmul.f32 %v435, %v446
  %v464 = vmul.f32 %v436, %v446
  %v465 = vmul.f32 %v437, %v451
  %v466 = vmul.f32 %v438, %v451
  %v467 = vmul.f32 %v439, %v456
  %v468 = vmul.f32 %v440, %v456
  %v469 = vmul.f32 %v441, %v461
  %v470 = vmul.f32 %v442, %v461
  %v471 = vadd.f32 %v463, 0.0
  %v472 = vadd.f32 %v464, 0.0
  %v473 = vadd.f32 %v465, 0.0
  %v474 = vadd.f32 %v466, 0.0
  %v475 = vadd.f32 %v467, 0.0
  %v476 = vadd.f32 %v468, 0.0
  %v477 = vadd.f32 %v469, 0.0
  %v478 = vadd.f32 %v470, 0.0
  %v479 = vld [vmem:[%s4 + $0x1] sm:$0x1]
  %v480 = vperm.slane %v479, 0
  %482 = vrot.lane.b32.xlu0 %v480, 111
  %v483 = vpop.permute.xlu0 %482
  %v485 = vmul.f32 %v421, %v483
  %v486 = vmul.f32 %v422, %v483
  %v487 = vmul.f32 %v423, %v483
  %v488 = vmul.f32 %v424, %v483
  %v489 = vmul.f32 %v425, %v483
  %v490 = vmul.f32 %v426, %v483
  %v491 = vmul.f32 %v427, %v483
  %v492 = vmul.f32 %v428, %v483
  %493 = vset.pattern.permute.xlu0 1
  %494 = vperm.xlu0 %493, %v417
  %v495 = vpop.permute.xlu0 %494
  %497 = vset.pattern.permute.xlu0 1
  %498 = vperm.xlu0 %497, %v418
  %v499 = vpop.permute.xlu0 %498
  %501 = vset.pattern.permute.xlu0 1
  %502 = vperm.xlu0 %501, %v419
  %v503 = vpop.permute.xlu0 %502
  %505 = vset.pattern.permute.xlu0 1
  %506 = vperm.xlu0 %505, %v420
  %v507 = vpop.permute.xlu0 %506
  %v509 = vmul.f32 %v485, %v495
  %v510 = vmul.f32 %v486, %v495
  %v511 = vmul.f32 %v487, %v499
  %v512 = vmul.f32 %v488, %v499
  %v513 = vmul.f32 %v489, %v503
  %v514 = vmul.f32 %v490, %v503
  %v515 = vmul.f32 %v491, %v507
  %v516 = vmul.f32 %v492, %v507
  %525 = vrot.lane.b32.xlu0 %v509, 127
  %v526 = vpop.permute.xlu0 %525
  %527 = vrot.lane.b32.xlu0 %v510, 127
  %v528 = vpop.permute.xlu0 %527
  %529 = vrot.lane.b32.xlu0 %v511, 127
  %v530 = vpop.permute.xlu0 %529
  %531 = vrot.lane.b32.xlu0 %v512, 127
  %v532 = vpop.permute.xlu0 %531
  %533 = vrot.lane.b32.xlu0 %v513, 127
  %v534 = vpop.permute.xlu0 %533
  %535 = vrot.lane.b32.xlu0 %v514, 127
  %v536 = vpop.permute.xlu0 %535
  %537 = vrot.lane.b32.xlu0 %v515, 127
  %v538 = vpop.permute.xlu0 %537
  %539 = vrot.lane.b32.xlu0 %v516, 127
  %v540 = vpop.permute.xlu0 %539
  %vm541 = vcmask 1039360
  %v542 = vsel %vm541, %v526, %v528
  %v543 = vsel %vm541, %v530, %v532
  %v544 = vsel %vm541, %v534, %v536
  %v545 = vsel %vm541, %v538, %v540
  %v554 = vadd.f32 %v471, %v542
  %v555 = vadd.f32 %v472, %v528
  %v556 = vadd.f32 %v473, %v543
  %v557 = vadd.f32 %v474, %v532
  %v558 = vadd.f32 %v475, %v544
  %v559 = vadd.f32 %v476, %v536
  %v560 = vadd.f32 %v477, %v545
  %v561 = vadd.f32 %v478, %v540
  %v562 = vld [vmem:[%s4 + $0x2] sm:$0x1]
  %v563 = vperm.slane %v562, 0
  %565 = vrot.lane.b32.xlu0 %v563, 112
  %v566 = vpop.permute.xlu0 %565
  %v568 = vmul.f32 %v421, %v566
  %v569 = vmul.f32 %v422, %v566
  %v570 = vmul.f32 %v423, %v566
  %v571 = vmul.f32 %v424, %v566
  %v572 = vmul.f32 %v425, %v566
  %v573 = vmul.f32 %v426, %v566
  %v574 = vmul.f32 %v427, %v566
  %v575 = vmul.f32 %v428, %v566
  %576 = vset.pattern.permute.xlu0 2
  %577 = vperm.xlu0 %576, %v417
  %v578 = vpop.permute.xlu0 %577
  %580 = vset.pattern.permute.xlu0 2
  %581 = vperm.xlu0 %580, %v418
  %v582 = vpop.permute.xlu0 %581
  %584 = vset.pattern.permute.xlu0 2
  %585 = vperm.xlu0 %584, %v419
  %v586 = vpop.permute.xlu0 %585
  %588 = vset.pattern.permute.xlu0 2
  %589 = vperm.xlu0 %588, %v420
  %v590 = vpop.permute.xlu0 %589
  %v592 = vmul.f32 %v568, %v578
  %v593 = vmul.f32 %v569, %v578
  %v594 = vmul.f32 %v570, %v582
  %v595 = vmul.f32 %v571, %v582
  %v596 = vmul.f32 %v572, %v586
  %v597 = vmul.f32 %v573, %v586
  %v598 = vmul.f32 %v574, %v590
  %v599 = vmul.f32 %v575, %v590
  %608 = vrot.lane.b32.xlu0 %v592, 126
  %v609 = vpop.permute.xlu0 %608
  %610 = vrot.lane.b32.xlu0 %v593, 126
  %v611 = vpop.permute.xlu0 %610
  %612 = vrot.lane.b32.xlu0 %v594, 126
  %v613 = vpop.permute.xlu0 %612
  %614 = vrot.lane.b32.xlu0 %v595, 126
  %v615 = vpop.permute.xlu0 %614
  %616 = vrot.lane.b32.xlu0 %v596, 126
  %v617 = vpop.permute.xlu0 %616
  %618 = vrot.lane.b32.xlu0 %v597, 126
  %v619 = vpop.permute.xlu0 %618
  %620 = vrot.lane.b32.xlu0 %v598, 126
  %v621 = vpop.permute.xlu0 %620
  %622 = vrot.lane.b32.xlu0 %v599, 126
  %v623 = vpop.permute.xlu0 %622
  %vm624 = vcmask 1031168
  %v625 = vsel %vm624, %v609, %v611
  %v626 = vsel %vm624, %v613, %v615
  %v627 = vsel %vm624, %v617, %v619
  %v628 = vsel %vm624, %v621, %v623
  %v637 = vadd.f32 %v554, %v625
  %v638 = vadd.f32 %v555, %v611
  %v639 = vadd.f32 %v556, %v626
  %v640 = vadd.f32 %v557, %v615
  %v641 = vadd.f32 %v558, %v627
  %v642 = vadd.f32 %v559, %v619
  %v643 = vadd.f32 %v560, %v628
  %v644 = vadd.f32 %v561, %v623
  %v645 = vld [vmem:[%s4 + $0x3] sm:$0x1]
  %v646 = vperm.slane %v645, 0
  %648 = vrot.lane.b32.xlu0 %v646, 113
  %v649 = vpop.permute.xlu0 %648
  %v651 = vmul.f32 %v421, %v649
  %v652 = vmul.f32 %v422, %v649
  %v653 = vmul.f32 %v423, %v649
  %v654 = vmul.f32 %v424, %v649
  %v655 = vmul.f32 %v425, %v649
  %v656 = vmul.f32 %v426, %v649
  %v657 = vmul.f32 %v427, %v649
  %v658 = vmul.f32 %v428, %v649
  %659 = vset.pattern.permute.xlu0 3
  %660 = vperm.xlu0 %659, %v417
  %v661 = vpop.permute.xlu0 %660
  %663 = vset.pattern.permute.xlu0 3
  %664 = vperm.xlu0 %663, %v418
  %v665 = vpop.permute.xlu0 %664
  %667 = vset.pattern.permute.xlu0 3
  %668 = vperm.xlu0 %667, %v419
  %v669 = vpop.permute.xlu0 %668
  %671 = vset.pattern.permute.xlu0 3
  %672 = vperm.xlu0 %671, %v420
  %v673 = vpop.permute.xlu0 %672
  %v675 = vmul.f32 %v651, %v661
  %v676 = vmul.f32 %v652, %v661
  %v677 = vmul.f32 %v653, %v665
  %v678 = vmul.f32 %v654, %v665
  %v679 = vmul.f32 %v655, %v669
  %v680 = vmul.f32 %v656, %v669
  %v681 = vmul.f32 %v657, %v673
  %v682 = vmul.f32 %v658, %v673
  %691 = vrot.lane.b32.xlu0 %v675, 125
  %v692 = vpop.permute.xlu0 %691
  %693 = vrot.lane.b32.xlu0 %v676, 125
  %v694 = vpop.permute.xlu0 %693
  %695 = vrot.lane.b32.xlu0 %v677, 125
  %v696 = vpop.permute.xlu0 %695
  %697 = vrot.lane.b32.xlu0 %v678, 125
  %v698 = vpop.permute.xlu0 %697
  %699 = vrot.lane.b32.xlu0 %v679, 125
  %v700 = vpop.permute.xlu0 %699
  %701 = vrot.lane.b32.xlu0 %v680, 125
  %v702 = vpop.permute.xlu0 %701
  %703 = vrot.lane.b32.xlu0 %v681, 125
  %v704 = vpop.permute.xlu0 %703
  %705 = vrot.lane.b32.xlu0 %v682, 125
  %v706 = vpop.permute.xlu0 %705
  %vm707 = vcmask 1022976
  %v708 = vsel %vm707, %v692, %v694
  %v709 = vsel %vm707, %v696, %v698
  %v710 = vsel %vm707, %v700, %v702
  %v711 = vsel %vm707, %v704, %v706
  %v720 = vadd.f32 %v637, %v708
  %v721 = vadd.f32 %v638, %v694
  %v722 = vadd.f32 %v639, %v709
  %v723 = vadd.f32 %v640, %v698
  %v724 = vadd.f32 %v641, %v710
  %v725 = vadd.f32 %v642, %v702
  %v726 = vadd.f32 %v643, %v711
  %v727 = vadd.f32 %v644, %v706
  %v728 = vld [vmem:[%s4 + $0x4] sm:$0x1]
  %v729 = vperm.slane %v728, 0
  %731 = vrot.lane.b32.xlu0 %v729, 114
  %v732 = vpop.permute.xlu0 %731
  %v734 = vmul.f32 %v421, %v732
  %v735 = vmul.f32 %v422, %v732
  %v736 = vmul.f32 %v423, %v732
  %v737 = vmul.f32 %v424, %v732
  %v738 = vmul.f32 %v425, %v732
  %v739 = vmul.f32 %v426, %v732
  %v740 = vmul.f32 %v427, %v732
  %v741 = vmul.f32 %v428, %v732
  %742 = vset.pattern.permute.xlu0 4
  %743 = vperm.xlu0 %742, %v417
  %v744 = vpop.permute.xlu0 %743
  %746 = vset.pattern.permute.xlu0 4
  %747 = vperm.xlu0 %746, %v418
  %v748 = vpop.permute.xlu0 %747
  %750 = vset.pattern.permute.xlu0 4
  %751 = vperm.xlu0 %750, %v419
  %v752 = vpop.permute.xlu0 %751
  %754 = vset.pattern.permute.xlu0 4
  %755 = vperm.xlu0 %754, %v420
  %v756 = vpop.permute.xlu0 %755
  %v758 = vmul.f32 %v734, %v744
  %v759 = vmul.f32 %v735, %v744
  %v760 = vmul.f32 %v736, %v748
  %v761 = vmul.f32 %v737, %v748
  %v762 = vmul.f32 %v738, %v752
  %v763 = vmul.f32 %v739, %v752
  %v764 = vmul.f32 %v740, %v756
  %v765 = vmul.f32 %v741, %v756
  %774 = vrot.lane.b32.xlu0 %v758, 124
  %v775 = vpop.permute.xlu0 %774
  %776 = vrot.lane.b32.xlu0 %v759, 124
  %v777 = vpop.permute.xlu0 %776
  %778 = vrot.lane.b32.xlu0 %v760, 124
  %v779 = vpop.permute.xlu0 %778
  %780 = vrot.lane.b32.xlu0 %v761, 124
  %v781 = vpop.permute.xlu0 %780
  %782 = vrot.lane.b32.xlu0 %v762, 124
  %v783 = vpop.permute.xlu0 %782
  %784 = vrot.lane.b32.xlu0 %v763, 124
  %v785 = vpop.permute.xlu0 %784
  %786 = vrot.lane.b32.xlu0 %v764, 124
  %v787 = vpop.permute.xlu0 %786
  %788 = vrot.lane.b32.xlu0 %v765, 124
  %v789 = vpop.permute.xlu0 %788
  %vm790 = vcmask 1014784
  %v791 = vsel %vm790, %v775, %v777
  %v792 = vsel %vm790, %v779, %v781
  %v793 = vsel %vm790, %v783, %v785
  %v794 = vsel %vm790, %v787, %v789
  %v803 = vadd.f32 %v720, %v791
  %v804 = vadd.f32 %v721, %v777
  %v805 = vadd.f32 %v722, %v792
  %v806 = vadd.f32 %v723, %v781
  %v807 = vadd.f32 %v724, %v793
  %v808 = vadd.f32 %v725, %v785
  %v809 = vadd.f32 %v726, %v794
  %v810 = vadd.f32 %v727, %v789
  %v811 = vld [vmem:[%s4 + $0x5] sm:$0x1]
  %v812 = vperm.slane %v811, 0
  %814 = vrot.lane.b32.xlu0 %v812, 118
  %v815 = vpop.permute.xlu0 %814
  %v817 = vmul.f32 %v421, %v815
  %v818 = vmul.f32 %v422, %v815
  %v819 = vmul.f32 %v423, %v815
  %v820 = vmul.f32 %v424, %v815
  %v821 = vmul.f32 %v425, %v815
  %v822 = vmul.f32 %v426, %v815
  %v823 = vmul.f32 %v427, %v815
  %v824 = vmul.f32 %v428, %v815
  %825 = vset.pattern.permute.xlu0 5
  %826 = vperm.xlu0 %825, %v417
  %v827 = vpop.permute.xlu0 %826
  %829 = vset.pattern.permute.xlu0 5
  %830 = vperm.xlu0 %829, %v418
  %v831 = vpop.permute.xlu0 %830
  %833 = vset.pattern.permute.xlu0 5
  %834 = vperm.xlu0 %833, %v419
  %v835 = vpop.permute.xlu0 %834
  %837 = vset.pattern.permute.xlu0 5
  %838 = vperm.xlu0 %837, %v420
  %v839 = vpop.permute.xlu0 %838
  %v841 = vmul.f32 %v817, %v827
  %v842 = vmul.f32 %v818, %v827
  %v843 = vmul.f32 %v819, %v831
  %v844 = vmul.f32 %v820, %v831
  %v845 = vmul.f32 %v821, %v835
  %v846 = vmul.f32 %v822, %v835
  %v847 = vmul.f32 %v823, %v839
  %v848 = vmul.f32 %v824, %v839
  %857 = vrot.lane.b32.xlu0 %v841, 120
  %v858 = vpop.permute.xlu0 %857
  %859 = vrot.lane.b32.xlu0 %v842, 120
  %v860 = vpop.permute.xlu0 %859
  %861 = vrot.lane.b32.xlu0 %v843, 120
  %v862 = vpop.permute.xlu0 %861
  %863 = vrot.lane.b32.xlu0 %v844, 120
  %v864 = vpop.permute.xlu0 %863
  %865 = vrot.lane.b32.xlu0 %v845, 120
  %v866 = vpop.permute.xlu0 %865
  %867 = vrot.lane.b32.xlu0 %v846, 120
  %v868 = vpop.permute.xlu0 %867
  %869 = vrot.lane.b32.xlu0 %v847, 120
  %v870 = vpop.permute.xlu0 %869
  %871 = vrot.lane.b32.xlu0 %v848, 120
  %v872 = vpop.permute.xlu0 %871
  %vm873 = vcmask 982016
  %v874 = vsel %vm873, %v858, %v860
  %v875 = vsel %vm873, %v862, %v864
  %v876 = vsel %vm873, %v866, %v868
  %v877 = vsel %vm873, %v870, %v872
  %v886 = vadd.f32 %v803, %v874
  %v887 = vadd.f32 %v804, %v860
  %v888 = vadd.f32 %v805, %v875
  %v889 = vadd.f32 %v806, %v864
  %v890 = vadd.f32 %v807, %v876
  %v891 = vadd.f32 %v808, %v868
  %v892 = vadd.f32 %v809, %v877
  %v893 = vadd.f32 %v810, %v872
  %v894 = vld [vmem:[%s4 + $0x6] sm:$0x1]
  %v895 = vperm.slane %v894, 0
  %897 = vrot.lane.b32.xlu0 %v895, 119
  %v898 = vpop.permute.xlu0 %897
  %v900 = vmul.f32 %v421, %v898
  %v901 = vmul.f32 %v422, %v898
  %v902 = vmul.f32 %v423, %v898
  %v903 = vmul.f32 %v424, %v898
  %v904 = vmul.f32 %v425, %v898
  %v905 = vmul.f32 %v426, %v898
  %v906 = vmul.f32 %v427, %v898
  %v907 = vmul.f32 %v428, %v898
  %908 = vset.pattern.permute.xlu0 6
  %909 = vperm.xlu0 %908, %v417
  %v910 = vpop.permute.xlu0 %909
  %912 = vset.pattern.permute.xlu0 6
  %913 = vperm.xlu0 %912, %v418
  %v914 = vpop.permute.xlu0 %913
  %916 = vset.pattern.permute.xlu0 6
  %917 = vperm.xlu0 %916, %v419
  %v918 = vpop.permute.xlu0 %917
  %920 = vset.pattern.permute.xlu0 6
  %921 = vperm.xlu0 %920, %v420
  %v922 = vpop.permute.xlu0 %921
  %v924 = vmul.f32 %v900, %v910
  %v925 = vmul.f32 %v901, %v910
  %v926 = vmul.f32 %v902, %v914
  %v927 = vmul.f32 %v903, %v914
  %v928 = vmul.f32 %v904, %v918
  %v929 = vmul.f32 %v905, %v918
  %v930 = vmul.f32 %v906, %v922
  %v931 = vmul.f32 %v907, %v922
  %940 = vrot.lane.b32.xlu0 %v924, 119
  %v941 = vpop.permute.xlu0 %940
  %942 = vrot.lane.b32.xlu0 %v925, 119
  %v943 = vpop.permute.xlu0 %942
  %944 = vrot.lane.b32.xlu0 %v926, 119
  %v945 = vpop.permute.xlu0 %944
  %946 = vrot.lane.b32.xlu0 %v927, 119
  %v947 = vpop.permute.xlu0 %946
  %948 = vrot.lane.b32.xlu0 %v928, 119
  %v949 = vpop.permute.xlu0 %948
  %950 = vrot.lane.b32.xlu0 %v929, 119
  %v951 = vpop.permute.xlu0 %950
  %952 = vrot.lane.b32.xlu0 %v930, 119
  %v953 = vpop.permute.xlu0 %952
  %954 = vrot.lane.b32.xlu0 %v931, 119
  %v955 = vpop.permute.xlu0 %954
  %vm956 = vcmask 973824
  %v957 = vsel %vm956, %v941, %v943
  %v958 = vsel %vm956, %v945, %v947
  %v959 = vsel %vm956, %v949, %v951
  %v960 = vsel %vm956, %v953, %v955
  %v969 = vadd.f32 %v886, %v957
  %v970 = vadd.f32 %v887, %v943
  %v971 = vadd.f32 %v888, %v958
  %v972 = vadd.f32 %v889, %v947
  %v973 = vadd.f32 %v890, %v959
  %v974 = vadd.f32 %v891, %v951
  %v975 = vadd.f32 %v892, %v960
  %v976 = vadd.f32 %v893, %v955
  %v977 = vld [vmem:[%s4 + $0x7] sm:$0x1]
  %v978 = vperm.slane %v977, 0
  %980 = vrot.lane.b32.xlu0 %v978, 120
  %v981 = vpop.permute.xlu0 %980
  %v983 = vmul.f32 %v421, %v981
  %v984 = vmul.f32 %v422, %v981
  %v985 = vmul.f32 %v423, %v981
  %v986 = vmul.f32 %v424, %v981
  %v987 = vmul.f32 %v425, %v981
  %v988 = vmul.f32 %v426, %v981
  %v989 = vmul.f32 %v427, %v981
  %v990 = vmul.f32 %v428, %v981
  %991 = vset.pattern.permute.xlu0 7
  %992 = vperm.xlu0 %991, %v417
  %v993 = vpop.permute.xlu0 %992
  %995 = vset.pattern.permute.xlu0 7
  %996 = vperm.xlu0 %995, %v418
  %v997 = vpop.permute.xlu0 %996
  %999 = vset.pattern.permute.xlu0 7
  %1000 = vperm.xlu0 %999, %v419
  %v1001 = vpop.permute.xlu0 %1000
  %1003 = vset.pattern.permute.xlu0 7
  %1004 = vperm.xlu0 %1003, %v420
  %v1005 = vpop.permute.xlu0 %1004
  %v1007 = vmul.f32 %v983, %v993
  %v1008 = vmul.f32 %v984, %v993
  %v1009 = vmul.f32 %v985, %v997
  %v1010 = vmul.f32 %v986, %v997
  %v1011 = vmul.f32 %v987, %v1001
  %v1012 = vmul.f32 %v988, %v1001
  %v1013 = vmul.f32 %v989, %v1005
  %v1014 = vmul.f32 %v990, %v1005
  %1023 = vrot.lane.b32.xlu0 %v1007, 118
  %v1024 = vpop.permute.xlu0 %1023
  %1025 = vrot.lane.b32.xlu0 %v1008, 118
  %v1026 = vpop.permute.xlu0 %1025
  %1027 = vrot.lane.b32.xlu0 %v1009, 118
  %v1028 = vpop.permute.xlu0 %1027
  %1029 = vrot.lane.b32.xlu0 %v1010, 118
  %v1030 = vpop.permute.xlu0 %1029
  %1031 = vrot.lane.b32.xlu0 %v1011, 118
  %v1032 = vpop.permute.xlu0 %1031
  %1033 = vrot.lane.b32.xlu0 %v1012, 118
  %v1034 = vpop.permute.xlu0 %1033
  %1035 = vrot.lane.b32.xlu0 %v1013, 118
  %v1036 = vpop.permute.xlu0 %1035
  %1037 = vrot.lane.b32.xlu0 %v1014, 118
  %v1038 = vpop.permute.xlu0 %1037
  %vm1039 = vcmask 965632
  %v1040 = vsel %vm1039, %v1024, %v1026
  %v1041 = vsel %vm1039, %v1028, %v1030
  %v1042 = vsel %vm1039, %v1032, %v1034
  %v1043 = vsel %vm1039, %v1036, %v1038
  %v1052 = vadd.f32 %v969, %v1040
  %v1053 = vadd.f32 %v970, %v1026
  %v1054 = vadd.f32 %v971, %v1041
  %v1055 = vadd.f32 %v972, %v1030
  %v1056 = vadd.f32 %v973, %v1042
  %v1057 = vadd.f32 %v974, %v1034
  %v1058 = vadd.f32 %v975, %v1043
  %v1059 = vadd.f32 %v976, %v1038
  %v1060 = vld [vmem:[%s4 + $0x8] sm:$0x1]
  %v1061 = vperm.slane %v1060, 0
  %1063 = vrot.lane.b32.xlu0 %v1061, 121
  %v1064 = vpop.permute.xlu0 %1063
  %v1066 = vmul.f32 %v421, %v1064
  %v1067 = vmul.f32 %v422, %v1064
  %v1068 = vmul.f32 %v423, %v1064
  %v1069 = vmul.f32 %v424, %v1064
  %v1070 = vmul.f32 %v425, %v1064
  %v1071 = vmul.f32 %v426, %v1064
  %v1072 = vmul.f32 %v427, %v1064
  %v1073 = vmul.f32 %v428, %v1064
  %1074 = vset.pattern.permute.xlu0 8
  %1075 = vperm.xlu0 %1074, %v417
  %v1076 = vpop.permute.xlu0 %1075
  %1078 = vset.pattern.permute.xlu0 8
  %1079 = vperm.xlu0 %1078, %v418
  %v1080 = vpop.permute.xlu0 %1079
  %1082 = vset.pattern.permute.xlu0 8
  %1083 = vperm.xlu0 %1082, %v419
  %v1084 = vpop.permute.xlu0 %1083
  %1086 = vset.pattern.permute.xlu0 8
  %1087 = vperm.xlu0 %1086, %v420
  %v1088 = vpop.permute.xlu0 %1087
  %v1090 = vmul.f32 %v1066, %v1076
  %v1091 = vmul.f32 %v1067, %v1076
  %v1092 = vmul.f32 %v1068, %v1080
  %v1093 = vmul.f32 %v1069, %v1080
  %v1094 = vmul.f32 %v1070, %v1084
  %v1095 = vmul.f32 %v1071, %v1084
  %v1096 = vmul.f32 %v1072, %v1088
  %v1097 = vmul.f32 %v1073, %v1088
  %1106 = vrot.lane.b32.xlu0 %v1090, 117
  %v1107 = vpop.permute.xlu0 %1106
  %1108 = vrot.lane.b32.xlu0 %v1091, 117
  %v1109 = vpop.permute.xlu0 %1108
  %1110 = vrot.lane.b32.xlu0 %v1092, 117
  %v1111 = vpop.permute.xlu0 %1110
  %1112 = vrot.lane.b32.xlu0 %v1093, 117
  %v1113 = vpop.permute.xlu0 %1112
  %1114 = vrot.lane.b32.xlu0 %v1094, 117
  %v1115 = vpop.permute.xlu0 %1114
  %1116 = vrot.lane.b32.xlu0 %v1095, 117
  %v1117 = vpop.permute.xlu0 %1116
  %1118 = vrot.lane.b32.xlu0 %v1096, 117
  %v1119 = vpop.permute.xlu0 %1118
  %1120 = vrot.lane.b32.xlu0 %v1097, 117
  %v1121 = vpop.permute.xlu0 %1120
  %vm1122 = vcmask 957440
  %v1123 = vsel %vm1122, %v1107, %v1109
  %v1124 = vsel %vm1122, %v1111, %v1113
  %v1125 = vsel %vm1122, %v1115, %v1117
  %v1126 = vsel %vm1122, %v1119, %v1121
  %v1135 = vadd.f32 %v1052, %v1123
  %v1136 = vadd.f32 %v1053, %v1109
  %v1137 = vadd.f32 %v1054, %v1124
  %v1138 = vadd.f32 %v1055, %v1113
  %v1139 = vadd.f32 %v1056, %v1125
  %v1140 = vadd.f32 %v1057, %v1117
  %v1141 = vadd.f32 %v1058, %v1126
  %v1142 = vadd.f32 %v1059, %v1121
  %v1143 = vld [vmem:[%s4 + $0x9] sm:$0x1]
  %v1144 = vperm.slane %v1143, 0
  %1146 = vrot.lane.b32.xlu0 %v1144, 122
  %v1147 = vpop.permute.xlu0 %1146
  %v1149 = vmul.f32 %v421, %v1147
  %v1150 = vmul.f32 %v422, %v1147
  %v1151 = vmul.f32 %v423, %v1147
  %v1152 = vmul.f32 %v424, %v1147
  %v1153 = vmul.f32 %v425, %v1147
  %v1154 = vmul.f32 %v426, %v1147
  %v1155 = vmul.f32 %v427, %v1147
  %v1156 = vmul.f32 %v428, %v1147
  %1157 = vset.pattern.permute.xlu0 9
  %1158 = vperm.xlu0 %1157, %v417
  %v1159 = vpop.permute.xlu0 %1158
  %1161 = vset.pattern.permute.xlu0 9
  %1162 = vperm.xlu0 %1161, %v418
  %v1163 = vpop.permute.xlu0 %1162
  %1165 = vset.pattern.permute.xlu0 9
  %1166 = vperm.xlu0 %1165, %v419
  %v1167 = vpop.permute.xlu0 %1166
  %1169 = vset.pattern.permute.xlu0 9
  %1170 = vperm.xlu0 %1169, %v420
  %v1171 = vpop.permute.xlu0 %1170
  %v1173 = vmul.f32 %v1149, %v1159
  %v1174 = vmul.f32 %v1150, %v1159
  %v1175 = vmul.f32 %v1151, %v1163
  %v1176 = vmul.f32 %v1152, %v1163
  %v1177 = vmul.f32 %v1153, %v1167
  %v1178 = vmul.f32 %v1154, %v1167
  %v1179 = vmul.f32 %v1155, %v1171
  %v1180 = vmul.f32 %v1156, %v1171
  %1189 = vrot.lane.b32.xlu0 %v1173, 116
  %v1190 = vpop.permute.xlu0 %1189
  %1191 = vrot.lane.b32.xlu0 %v1174, 116
  %v1192 = vpop.permute.xlu0 %1191
  %1193 = vrot.lane.b32.xlu0 %v1175, 116
  %v1194 = vpop.permute.xlu0 %1193
  %1195 = vrot.lane.b32.xlu0 %v1176, 116
  %v1196 = vpop.permute.xlu0 %1195
  %1197 = vrot.lane.b32.xlu0 %v1177, 116
  %v1198 = vpop.permute.xlu0 %1197
  %1199 = vrot.lane.b32.xlu0 %v1178, 116
  %v1200 = vpop.permute.xlu0 %1199
  %1201 = vrot.lane.b32.xlu0 %v1179, 116
  %v1202 = vpop.permute.xlu0 %1201
  %1203 = vrot.lane.b32.xlu0 %v1180, 116
  %v1204 = vpop.permute.xlu0 %1203
  %vm1205 = vcmask 949248
  %v1206 = vsel %vm1205, %v1190, %v1192
  %v1207 = vsel %vm1205, %v1194, %v1196
  %v1208 = vsel %vm1205, %v1198, %v1200
  %v1209 = vsel %vm1205, %v1202, %v1204
  %v1218 = vadd.f32 %v1135, %v1206
  %v1219 = vadd.f32 %v1136, %v1192
  %v1220 = vadd.f32 %v1137, %v1207
  %v1221 = vadd.f32 %v1138, %v1196
  %v1222 = vadd.f32 %v1139, %v1208
  %v1223 = vadd.f32 %v1140, %v1200
  %v1224 = vadd.f32 %v1141, %v1209
  %v1225 = vadd.f32 %v1142, %v1204
  %v1226 = vld [vmem:[%s4 + $0xa] sm:$0x1]
  %v1227 = vperm.slane %v1226, 0
  %1229 = vrot.lane.b32.xlu0 %v1227, 126
  %v1230 = vpop.permute.xlu0 %1229
  %v1232 = vmul.f32 %v421, %v1230
  %v1233 = vmul.f32 %v422, %v1230
  %v1234 = vmul.f32 %v423, %v1230
  %v1235 = vmul.f32 %v424, %v1230
  %v1236 = vmul.f32 %v425, %v1230
  %v1237 = vmul.f32 %v426, %v1230
  %v1238 = vmul.f32 %v427, %v1230
  %v1239 = vmul.f32 %v428, %v1230
  %1240 = vset.pattern.permute.xlu0 10
  %1241 = vperm.xlu0 %1240, %v417
  %v1242 = vpop.permute.xlu0 %1241
  %1244 = vset.pattern.permute.xlu0 10
  %1245 = vperm.xlu0 %1244, %v418
  %v1246 = vpop.permute.xlu0 %1245
  %1248 = vset.pattern.permute.xlu0 10
  %1249 = vperm.xlu0 %1248, %v419
  %v1250 = vpop.permute.xlu0 %1249
  %1252 = vset.pattern.permute.xlu0 10
  %1253 = vperm.xlu0 %1252, %v420
  %v1254 = vpop.permute.xlu0 %1253
  %v1256 = vmul.f32 %v1232, %v1242
  %v1257 = vmul.f32 %v1233, %v1242
  %v1258 = vmul.f32 %v1234, %v1246
  %v1259 = vmul.f32 %v1235, %v1246
  %v1260 = vmul.f32 %v1236, %v1250
  %v1261 = vmul.f32 %v1237, %v1250
  %v1262 = vmul.f32 %v1238, %v1254
  %v1263 = vmul.f32 %v1239, %v1254
  %1272 = vrot.lane.b32.xlu0 %v1256, 112
  %v1273 = vpop.permute.xlu0 %1272
  %1274 = vrot.lane.b32.xlu0 %v1257, 112
  %v1275 = vpop.permute.xlu0 %1274
  %1276 = vrot.lane.b32.xlu0 %v1258, 112
  %v1277 = vpop.permute.xlu0 %1276
  %1278 = vrot.lane.b32.xlu0 %v1259, 112
  %v1279 = vpop.permute.xlu0 %1278
  %1280 = vrot.lane.b32.xlu0 %v1260, 112
  %v1281 = vpop.permute.xlu0 %1280
  %1282 = vrot.lane.b32.xlu0 %v1261, 112
  %v1283 = vpop.permute.xlu0 %1282
  %1284 = vrot.lane.b32.xlu0 %v1262, 112
  %v1285 = vpop.permute.xlu0 %1284
  %1286 = vrot.lane.b32.xlu0 %v1263, 112
  %v1287 = vpop.permute.xlu0 %1286
  %vm1288 = vcmask 916480
  %v1289 = vsel %vm1288, %v1273, %v1275
  %v1290 = vsel %vm1288, %v1277, %v1279
  %v1291 = vsel %vm1288, %v1281, %v1283
  %v1292 = vsel %vm1288, %v1285, %v1287
  %v1301 = vadd.f32 %v1218, %v1289
  %v1302 = vadd.f32 %v1219, %v1275
  %v1303 = vadd.f32 %v1220, %v1290
  %v1304 = vadd.f32 %v1221, %v1279
  %v1305 = vadd.f32 %v1222, %v1291
  %v1306 = vadd.f32 %v1223, %v1283
  %v1307 = vadd.f32 %v1224, %v1292
  %v1308 = vadd.f32 %v1225, %v1287
  %v1309 = vld [vmem:[%s4 + $0xb] sm:$0x1]
  %v1310 = vperm.slane %v1309, 0
  %1312 = vrot.lane.b32.xlu0 %v1310, 127
  %v1313 = vpop.permute.xlu0 %1312
  %v1315 = vmul.f32 %v421, %v1313
  %v1316 = vmul.f32 %v422, %v1313
  %v1317 = vmul.f32 %v423, %v1313
  %v1318 = vmul.f32 %v424, %v1313
  %v1319 = vmul.f32 %v425, %v1313
  %v1320 = vmul.f32 %v426, %v1313
  %v1321 = vmul.f32 %v427, %v1313
  %v1322 = vmul.f32 %v428, %v1313
  %1323 = vset.pattern.permute.xlu0 11
  %1324 = vperm.xlu0 %1323, %v417
  %v1325 = vpop.permute.xlu0 %1324
  %1327 = vset.pattern.permute.xlu0 11
  %1328 = vperm.xlu0 %1327, %v418
  %v1329 = vpop.permute.xlu0 %1328
  %1331 = vset.pattern.permute.xlu0 11
  %1332 = vperm.xlu0 %1331, %v419
  %v1333 = vpop.permute.xlu0 %1332
  %1335 = vset.pattern.permute.xlu0 11
  %1336 = vperm.xlu0 %1335, %v420
  %v1337 = vpop.permute.xlu0 %1336
  %v1339 = vmul.f32 %v1315, %v1325
  %v1340 = vmul.f32 %v1316, %v1325
  %v1341 = vmul.f32 %v1317, %v1329
  %v1342 = vmul.f32 %v1318, %v1329
  %v1343 = vmul.f32 %v1319, %v1333
  %v1344 = vmul.f32 %v1320, %v1333
  %v1345 = vmul.f32 %v1321, %v1337
  %v1346 = vmul.f32 %v1322, %v1337
  %1355 = vrot.lane.b32.xlu0 %v1339, 111
  %v1356 = vpop.permute.xlu0 %1355
  %1357 = vrot.lane.b32.xlu0 %v1340, 111
  %v1358 = vpop.permute.xlu0 %1357
  %1359 = vrot.lane.b32.xlu0 %v1341, 111
  %v1360 = vpop.permute.xlu0 %1359
  %1361 = vrot.lane.b32.xlu0 %v1342, 111
  %v1362 = vpop.permute.xlu0 %1361
  %1363 = vrot.lane.b32.xlu0 %v1343, 111
  %v1364 = vpop.permute.xlu0 %1363
  %1365 = vrot.lane.b32.xlu0 %v1344, 111
  %v1366 = vpop.permute.xlu0 %1365
  %1367 = vrot.lane.b32.xlu0 %v1345, 111
  %v1368 = vpop.permute.xlu0 %1367
  %1369 = vrot.lane.b32.xlu0 %v1346, 111
  %v1370 = vpop.permute.xlu0 %1369
  %vm1371 = vcmask 908288
  %v1372 = vsel %vm1371, %v1356, %v1358
  %v1373 = vsel %vm1371, %v1360, %v1362
  %v1374 = vsel %vm1371, %v1364, %v1366
  %v1375 = vsel %vm1371, %v1368, %v1370
  %v1384 = vadd.f32 %v1301, %v1372
  %v1385 = vadd.f32 %v1302, %v1358
  %v1386 = vadd.f32 %v1303, %v1373
  %v1387 = vadd.f32 %v1304, %v1362
  %v1388 = vadd.f32 %v1305, %v1374
  %v1389 = vadd.f32 %v1306, %v1366
  %v1390 = vadd.f32 %v1307, %v1375
  %v1391 = vadd.f32 %v1308, %v1370
  %v1392 = vld [vmem:[%s4 + $0xc] sm:$0x1]
  %v1393 = vperm.slane %v1392, 0
  %v1394 = vmul.f32 %v422, %v1393
  %v1395 = vmul.f32 %v424, %v1393
  %v1396 = vmul.f32 %v426, %v1393
  %v1397 = vmul.f32 %v428, %v1393
  %1398 = vset.pattern.permute.xlu0 12
  %1399 = vperm.xlu0 %1398, %v417
  %v1400 = vpop.permute.xlu0 %1399
  %1402 = vset.pattern.permute.xlu0 12
  %1403 = vperm.xlu0 %1402, %v418
  %v1404 = vpop.permute.xlu0 %1403
  %1406 = vset.pattern.permute.xlu0 12
  %1407 = vperm.xlu0 %1406, %v419
  %v1408 = vpop.permute.xlu0 %1407
  %1410 = vset.pattern.permute.xlu0 12
  %1411 = vperm.xlu0 %1410, %v420
  %v1412 = vpop.permute.xlu0 %1411
  %v1414 = vmul.f32 %v1394, %v1400
  %v1415 = vmul.f32 %v1395, %v1404
  %v1416 = vmul.f32 %v1396, %v1408
  %v1417 = vmul.f32 %v1397, %v1412
  %1422 = vrot.lane.b32.xlu0 %v1414, 110
  %v1423 = vpop.permute.xlu0 %1422
  %1424 = vrot.lane.b32.xlu0 %v1415, 110
  %v1425 = vpop.permute.xlu0 %1424
  %1426 = vrot.lane.b32.xlu0 %v1416, 110
  %v1427 = vpop.permute.xlu0 %1426
  %1428 = vrot.lane.b32.xlu0 %v1417, 110
  %v1429 = vpop.permute.xlu0 %1428
  %v1434 = vadd.f32 %v1384, %v1423
  %v1435 = vadd.f32 %v1385, %v1423
  %v1436 = vadd.f32 %v1386, %v1425
  %v1437 = vadd.f32 %v1387, %v1425
  %v1438 = vadd.f32 %v1388, %v1427
  %v1439 = vadd.f32 %v1389, %v1427
  %v1440 = vadd.f32 %v1390, %v1429
  %v1441 = vadd.f32 %v1391, %v1429
  %v1442 = vld [vmem:[#allocation2 + $0x8] sm:$0xff]
  %v1443 = vld [vmem:[#allocation2 + $0x10] sm:$0xff]
  %v1444 = vld [vmem:[#allocation2 + $0x20] sm:$0xff]
  %v1445 = vld [vmem:[#allocation2 + $0x28] sm:$0xff]
  %v1446 = vld [vmem:[#allocation2 + $0x38] sm:$0xff]
  %v1447 = vld [vmem:[#allocation2 + $0x40] sm:$0xff]
  %v1448 = vld [vmem:[#allocation2 + $0x50] sm:$0xff]
  %v1449 = vld [vmem:[#allocation2 + $0x58] sm:$0xff]
  %v1450 = vld [vmem:[%s4 + $0xd] sm:$0x1]
  %v1451 = vperm.slane %v1450, 0
  %1453 = vrot.lane.b32.xlu0 %v1451, 1
  %v1454 = vpop.permute.xlu0 %1453
  %v1456 = vmul.f32 %v1442, %v1454
  %v1457 = vmul.f32 %v1443, %v1454
  %v1458 = vmul.f32 %v1444, %v1454
  %v1459 = vmul.f32 %v1445, %v1454
  %v1460 = vmul.f32 %v1446, %v1454
  %v1461 = vmul.f32 %v1447, %v1454
  %v1462 = vmul.f32 %v1448, %v1454
  %v1463 = vmul.f32 %v1449, %v1454
  %1464 = vset.pattern.permute.xlu0 13
  %1465 = vperm.xlu0 %1464, %v417
  %v1466 = vpop.permute.xlu0 %1465
  %1468 = vset.pattern.permute.xlu0 13
  %1469 = vperm.xlu0 %1468, %v418
  %v1470 = vpop.permute.xlu0 %1469
  %1472 = vset.pattern.permute.xlu0 13
  %1473 = vperm.xlu0 %1472, %v419
  %v1474 = vpop.permute.xlu0 %1473
  %1476 = vset.pattern.permute.xlu0 13
  %1477 = vperm.xlu0 %1476, %v420
  %v1478 = vpop.permute.xlu0 %1477
  %v1480 = vmul.f32 %v1456, %v1466
  %v1481 = vmul.f32 %v1457, %v1466
  %v1482 = vmul.f32 %v1458, %v1470
  %v1483 = vmul.f32 %v1459, %v1470
  %v1484 = vmul.f32 %v1460, %v1474
  %v1485 = vmul.f32 %v1461, %v1474
  %v1486 = vmul.f32 %v1462, %v1478
  %v1487 = vmul.f32 %v1463, %v1478
  %1496 = vrot.lane.b32.xlu0 %v1480, 109
  %v1497 = vpop.permute.xlu0 %1496
  %1498 = vrot.lane.b32.xlu0 %v1481, 109
  %v1499 = vpop.permute.xlu0 %1498
  %1500 = vrot.lane.b32.xlu0 %v1482, 109
  %v1501 = vpop.permute.xlu0 %1500
  %1502 = vrot.lane.b32.xlu0 %v1483, 109
  %v1503 = vpop.permute.xlu0 %1502
  %1504 = vrot.lane.b32.xlu0 %v1484, 109
  %v1505 = vpop.permute.xlu0 %1504
  %1506 = vrot.lane.b32.xlu0 %v1485, 109
  %v1507 = vpop.permute.xlu0 %1506
  %1508 = vrot.lane.b32.xlu0 %v1486, 109
  %v1509 = vpop.permute.xlu0 %1508
  %1510 = vrot.lane.b32.xlu0 %v1487, 109
  %v1511 = vpop.permute.xlu0 %1510
  %vm1512 = vcmask 891904
  %v1513 = vsel %vm1512, %v1497, %v1499
  %v1514 = vsel %vm1512, %v1501, %v1503
  %v1515 = vsel %vm1512, %v1505, %v1507
  %v1516 = vsel %vm1512, %v1509, %v1511
  %v1525 = vadd.f32 %v1434, %v1497
  %v1526 = vadd.f32 %v1435, %v1513
  %v1527 = vadd.f32 %v1436, %v1501
  %v1528 = vadd.f32 %v1437, %v1514
  %v1529 = vadd.f32 %v1438, %v1505
  %v1530 = vadd.f32 %v1439, %v1515
  %v1531 = vadd.f32 %v1440, %v1509
  %v1532 = vadd.f32 %v1441, %v1516
  %v1533 = vld [vmem:[%s4 + $0xe] sm:$0x1]
  %v1534 = vperm.slane %v1533, 0
  %1536 = vrot.lane.b32.xlu0 %v1534, 2
  %v1537 = vpop.permute.xlu0 %1536
  %v1539 = vmul.f32 %v1442, %v1537
  %v1540 = vmul.f32 %v1443, %v1537
  %v1541 = vmul.f32 %v1444, %v1537
  %v1542 = vmul.f32 %v1445, %v1537
  %v1543 = vmul.f32 %v1446, %v1537
  %v1544 = vmul.f32 %v1447, %v1537
  %v1545 = vmul.f32 %v1448, %v1537
  %v1546 = vmul.f32 %v1449, %v1537
  %1547 = vset.pattern.permute.xlu0 14
  %1548 = vperm.xlu0 %1547, %v417
  %v1549 = vpop.permute.xlu0 %1548
  %1551 = vset.pattern.permute.xlu0 14
  %1552 = vperm.xlu0 %1551, %v418
  %v1553 = vpop.permute.xlu0 %1552
  %1555 = vset.pattern.permute.xlu0 14
  %1556 = vperm.xlu0 %1555, %v419
  %v1557 = vpop.permute.xlu0 %1556
  %1559 = vset.pattern.permute.xlu0 14
  %1560 = vperm.xlu0 %1559, %v420
  %v1561 = vpop.permute.xlu0 %1560
  %v1563 = vmul.f32 %v1539, %v1549
  %v1564 = vmul.f32 %v1540, %v1549
  %v1565 = vmul.f32 %v1541, %v1553
  %v1566 = vmul.f32 %v1542, %v1553
  %v1567 = vmul.f32 %v1543, %v1557
  %v1568 = vmul.f32 %v1544, %v1557
  %v1569 = vmul.f32 %v1545, %v1561
  %v1570 = vmul.f32 %v1546, %v1561
  %1579 = vrot.lane.b32.xlu0 %v1563, 108
  %v1580 = vpop.permute.xlu0 %1579
  %1581 = vrot.lane.b32.xlu0 %v1564, 108
  %v1582 = vpop.permute.xlu0 %1581
  %1583 = vrot.lane.b32.xlu0 %v1565, 108
  %v1584 = vpop.permute.xlu0 %1583
  %1585 = vrot.lane.b32.xlu0 %v1566, 108
  %v1586 = vpop.permute.xlu0 %1585
  %1587 = vrot.lane.b32.xlu0 %v1567, 108
  %v1588 = vpop.permute.xlu0 %1587
  %1589 = vrot.lane.b32.xlu0 %v1568, 108
  %v1590 = vpop.permute.xlu0 %1589
  %1591 = vrot.lane.b32.xlu0 %v1569, 108
  %v1592 = vpop.permute.xlu0 %1591
  %1593 = vrot.lane.b32.xlu0 %v1570, 108
  %v1594 = vpop.permute.xlu0 %1593
  %vm1595 = vcmask 883712
  %v1596 = vsel %vm1595, %v1580, %v1582
  %v1597 = vsel %vm1595, %v1584, %v1586
  %v1598 = vsel %vm1595, %v1588, %v1590
  %v1599 = vsel %vm1595, %v1592, %v1594
  %v1608 = vadd.f32 %v1525, %v1580
  %v1609 = vadd.f32 %v1526, %v1596
  %v1610 = vadd.f32 %v1527, %v1584
  %v1611 = vadd.f32 %v1528, %v1597
  %v1612 = vadd.f32 %v1529, %v1588
  %v1613 = vadd.f32 %v1530, %v1598
  %v1614 = vadd.f32 %v1531, %v1592
  %v1615 = vadd.f32 %v1532, %v1599
  %v1616 = vld [vmem:[%s4 + $0xf] sm:$0x1]
  %v1617 = vperm.slane %v1616, 0
  %1619 = vrot.lane.b32.xlu0 %v1617, 6
  %v1620 = vpop.permute.xlu0 %1619
  %v1622 = vmul.f32 %v1442, %v1620
  %v1623 = vmul.f32 %v1443, %v1620
  %v1624 = vmul.f32 %v1444, %v1620
  %v1625 = vmul.f32 %v1445, %v1620
  %v1626 = vmul.f32 %v1446, %v1620
  %v1627 = vmul.f32 %v1447, %v1620
  %v1628 = vmul.f32 %v1448, %v1620
  %v1629 = vmul.f32 %v1449, %v1620
  %1630 = vset.pattern.permute.xlu0 15
  %1631 = vperm.xlu0 %1630, %v417
  %v1632 = vpop.permute.xlu0 %1631
  %1634 = vset.pattern.permute.xlu0 15
  %1635 = vperm.xlu0 %1634, %v418
  %v1636 = vpop.permute.xlu0 %1635
  %1638 = vset.pattern.permute.xlu0 15
  %1639 = vperm.xlu0 %1638, %v419
  %v1640 = vpop.permute.xlu0 %1639
  %1642 = vset.pattern.permute.xlu0 15
  %1643 = vperm.xlu0 %1642, %v420
  %v1644 = vpop.permute.xlu0 %1643
  %v1646 = vmul.f32 %v1622, %v1632
  %v1647 = vmul.f32 %v1623, %v1632
  %v1648 = vmul.f32 %v1624, %v1636
  %v1649 = vmul.f32 %v1625, %v1636
  %v1650 = vmul.f32 %v1626, %v1640
  %v1651 = vmul.f32 %v1627, %v1640
  %v1652 = vmul.f32 %v1628, %v1644
  %v1653 = vmul.f32 %v1629, %v1644
  %1662 = vrot.lane.b32.xlu0 %v1646, 104
  %v1663 = vpop.permute.xlu0 %1662
  %1664 = vrot.lane.b32.xlu0 %v1647, 104
  %v1665 = vpop.permute.xlu0 %1664
  %1666 = vrot.lane.b32.xlu0 %v1648, 104
  %v1667 = vpop.permute.xlu0 %1666
  %1668 = vrot.lane.b32.xlu0 %v1649, 104
  %v1669 = vpop.permute.xlu0 %1668
  %1670 = vrot.lane.b32.xlu0 %v1650, 104
  %v1671 = vpop.permute.xlu0 %1670
  %1672 = vrot.lane.b32.xlu0 %v1651, 104
  %v1673 = vpop.permute.xlu0 %1672
  %1674 = vrot.lane.b32.xlu0 %v1652, 104
  %v1675 = vpop.permute.xlu0 %1674
  %1676 = vrot.lane.b32.xlu0 %v1653, 104
  %v1677 = vpop.permute.xlu0 %1676
  %vm1678 = vcmask 850944
  %v1679 = vsel %vm1678, %v1663, %v1665
  %v1680 = vsel %vm1678, %v1667, %v1669
  %v1681 = vsel %vm1678, %v1671, %v1673
  %v1682 = vsel %vm1678, %v1675, %v1677
  %v1691 = vadd.f32 %v1608, %v1663
  %v1692 = vadd.f32 %v1609, %v1679
  %v1693 = vadd.f32 %v1610, %v1667
  %v1694 = vadd.f32 %v1611, %v1680
  %v1695 = vadd.f32 %v1612, %v1671
  %v1696 = vadd.f32 %v1613, %v1681
  %v1697 = vadd.f32 %v1614, %v1675
  %v1698 = vadd.f32 %v1615, %v1682
  %v1699 = vld [vmem:[%s4 + $0x10] sm:$0x1]
  %v1700 = vperm.slane %v1699, 0
  %1702 = vrot.lane.b32.xlu0 %v1700, 7
  %v1703 = vpop.permute.xlu0 %1702
  %v1705 = vmul.f32 %v1442, %v1703
  %v1706 = vmul.f32 %v1443, %v1703
  %v1707 = vmul.f32 %v1444, %v1703
  %v1708 = vmul.f32 %v1445, %v1703
  %v1709 = vmul.f32 %v1446, %v1703
  %v1710 = vmul.f32 %v1447, %v1703
  %v1711 = vmul.f32 %v1448, %v1703
  %v1712 = vmul.f32 %v1449, %v1703
  %1713 = vset.pattern.permute.xlu0 16
  %1714 = vperm.xlu0 %1713, %v417
  %v1715 = vpop.permute.xlu0 %1714
  %1717 = vset.pattern.permute.xlu0 16
  %1718 = vperm.xlu0 %1717, %v418
  %v1719 = vpop.permute.xlu0 %1718
  %1721 = vset.pattern.permute.xlu0 16
  %1722 = vperm.xlu0 %1721, %v419
  %v1723 = vpop.permute.xlu0 %1722
  %1725 = vset.pattern.permute.xlu0 16
  %1726 = vperm.xlu0 %1725, %v420
  %v1727 = vpop.permute.xlu0 %1726
  %v1729 = vmul.f32 %v1705, %v1715
  %v1730 = vmul.f32 %v1706, %v1715
  %v1731 = vmul.f32 %v1707, %v1719
  %v1732 = vmul.f32 %v1708, %v1719
  %v1733 = vmul.f32 %v1709, %v1723
  %v1734 = vmul.f32 %v1710, %v1723
  %v1735 = vmul.f32 %v1711, %v1727
  %v1736 = vmul.f32 %v1712, %v1727
  %1745 = vrot.lane.b32.xlu0 %v1729, 103
  %v1746 = vpop.permute.xlu0 %1745
  %1747 = vrot.lane.b32.xlu0 %v1730, 103
  %v1748 = vpop.permute.xlu0 %1747
  %1749 = vrot.lane.b32.xlu0 %v1731, 103
  %v1750 = vpop.permute.xlu0 %1749
  %1751 = vrot.lane.b32.xlu0 %v1732, 103
  %v1752 = vpop.permute.xlu0 %1751
  %1753 = vrot.lane.b32.xlu0 %v1733, 103
  %v1754 = vpop.permute.xlu0 %1753
  %1755 = vrot.lane.b32.xlu0 %v1734, 103
  %v1756 = vpop.permute.xlu0 %1755
  %1757 = vrot.lane.b32.xlu0 %v1735, 103
  %v1758 = vpop.permute.xlu0 %1757
  %1759 = vrot.lane.b32.xlu0 %v1736, 103
  %v1760 = vpop.permute.xlu0 %1759
  %vm1761 = vcmask 842752
  %v1762 = vsel %vm1761, %v1746, %v1748
  %v1763 = vsel %vm1761, %v1750, %v1752
  %v1764 = vsel %vm1761, %v1754, %v1756
  %v1765 = vsel %vm1761, %v1758, %v1760
  %v1774 = vadd.f32 %v1691, %v1746
  %v1775 = vadd.f32 %v1692, %v1762
  %v1776 = vadd.f32 %v1693, %v1750
  %v1777 = vadd.f32 %v1694, %v1763
  %v1778 = vadd.f32 %v1695, %v1754
  %v1779 = vadd.f32 %v1696, %v1764
  %v1780 = vadd.f32 %v1697, %v1758
  %v1781 = vadd.f32 %v1698, %v1765
  %v1782 = vld [vmem:[%s4 + $0x11] sm:$0x1]
  %v1783 = vperm.slane %v1782, 0
  %1785 = vrot.lane.b32.xlu0 %v1783, 8
  %v1786 = vpop.permute.xlu0 %1785
  %v1788 = vmul.f32 %v1442, %v1786
  %v1789 = vmul.f32 %v1443, %v1786
  %v1790 = vmul.f32 %v1444, %v1786
  %v1791 = vmul.f32 %v1445, %v1786
  %v1792 = vmul.f32 %v1446, %v1786
  %v1793 = vmul.f32 %v1447, %v1786
  %v1794 = vmul.f32 %v1448, %v1786
  %v1795 = vmul.f32 %v1449, %v1786
  %1796 = vset.pattern.permute.xlu0 17
  %1797 = vperm.xlu0 %1796, %v417
  %v1798 = vpop.permute.xlu0 %1797
  %1800 = vset.pattern.permute.xlu0 17
  %1801 = vperm.xlu0 %1800, %v418
  %v1802 = vpop.permute.xlu0 %1801
  %1804 = vset.pattern.permute.xlu0 17
  %1805 = vperm.xlu0 %1804, %v419
  %v1806 = vpop.permute.xlu0 %1805
  %1808 = vset.pattern.permute.xlu0 17
  %1809 = vperm.xlu0 %1808, %v420
  %v1810 = vpop.permute.xlu0 %1809
  %v1812 = vmul.f32 %v1788, %v1798
  %v1813 = vmul.f32 %v1789, %v1798
  %v1814 = vmul.f32 %v1790, %v1802
  %v1815 = vmul.f32 %v1791, %v1802
  %v1816 = vmul.f32 %v1792, %v1806
  %v1817 = vmul.f32 %v1793, %v1806
  %v1818 = vmul.f32 %v1794, %v1810
  %v1819 = vmul.f32 %v1795, %v1810
  %1828 = vrot.lane.b32.xlu0 %v1812, 102
  %v1829 = vpop.permute.xlu0 %1828
  %1830 = vrot.lane.b32.xlu0 %v1813, 102
  %v1831 = vpop.permute.xlu0 %1830
  %1832 = vrot.lane.b32.xlu0 %v1814, 102
  %v1833 = vpop.permute.xlu0 %1832
  %1834 = vrot.lane.b32.xlu0 %v1815, 102
  %v1835 = vpop.permute.xlu0 %1834
  %1836 = vrot.lane.b32.xlu0 %v1816, 102
  %v1837 = vpop.permute.xlu0 %1836
  %1838 = vrot.lane.b32.xlu0 %v1817, 102
  %v1839 = vpop.permute.xlu0 %1838
  %1840 = vrot.lane.b32.xlu0 %v1818, 102
  %v1841 = vpop.permute.xlu0 %1840
  %1842 = vrot.lane.b32.xlu0 %v1819, 102
  %v1843 = vpop.permute.xlu0 %1842
  %vm1844 = vcmask 834560
  %v1845 = vsel %vm1844, %v1829, %v1831
  %v1846 = vsel %vm1844, %v1833, %v1835
  %v1847 = vsel %vm1844, %v1837, %v1839
  %v1848 = vsel %vm1844, %v1841, %v1843
  %v1857 = vadd.f32 %v1774, %v1829
  %v1858 = vadd.f32 %v1775, %v1845
  %v1859 = vadd.f32 %v1776, %v1833
  %v1860 = vadd.f32 %v1777, %v1846
  %v1861 = vadd.f32 %v1778, %v1837
  %v1862 = vadd.f32 %v1779, %v1847
  %v1863 = vadd.f32 %v1780, %v1841
  %v1864 = vadd.f32 %v1781, %v1848
  %v1865 = vld [vmem:[%s4 + $0x12] sm:$0x1]
  %v1866 = vperm.slane %v1865, 0
  %1868 = vrot.lane.b32.xlu0 %v1866, 9
  %v1869 = vpop.permute.xlu0 %1868
  %v1871 = vmul.f32 %v1442, %v1869
  %v1872 = vmul.f32 %v1443, %v1869
  %v1873 = vmul.f32 %v1444, %v1869
  %v1874 = vmul.f32 %v1445, %v1869
  %v1875 = vmul.f32 %v1446, %v1869
  %v1876 = vmul.f32 %v1447, %v1869
  %v1877 = vmul.f32 %v1448, %v1869
  %v1878 = vmul.f32 %v1449, %v1869
  %1879 = vset.pattern.permute.xlu0 18
  %1880 = vperm.xlu0 %1879, %v417
  %v1881 = vpop.permute.xlu0 %1880
  %1883 = vset.pattern.permute.xlu0 18
  %1884 = vperm.xlu0 %1883, %v418
  %v1885 = vpop.permute.xlu0 %1884
  %1887 = vset.pattern.permute.xlu0 18
  %1888 = vperm.xlu0 %1887, %v419
  %v1889 = vpop.permute.xlu0 %1888
  %1891 = vset.pattern.permute.xlu0 18
  %1892 = vperm.xlu0 %1891, %v420
  %v1893 = vpop.permute.xlu0 %1892
  %v1895 = vmul.f32 %v1871, %v1881
  %v1896 = vmul.f32 %v1872, %v1881
  %v1897 = vmul.f32 %v1873, %v1885
  %v1898 = vmul.f32 %v1874, %v1885
  %v1899 = vmul.f32 %v1875, %v1889
  %v1900 = vmul.f32 %v1876, %v1889
  %v1901 = vmul.f32 %v1877, %v1893
  %v1902 = vmul.f32 %v1878, %v1893
  %1911 = vrot.lane.b32.xlu0 %v1895, 101
  %v1912 = vpop.permute.xlu0 %1911
  %1913 = vrot.lane.b32.xlu0 %v1896, 101
  %v1914 = vpop.permute.xlu0 %1913
  %1915 = vrot.lane.b32.xlu0 %v1897, 101
  %v1916 = vpop.permute.xlu0 %1915
  %1917 = vrot.lane.b32.xlu0 %v1898, 101
  %v1918 = vpop.permute.xlu0 %1917
  %1919 = vrot.lane.b32.xlu0 %v1899, 101
  %v1920 = vpop.permute.xlu0 %1919
  %1921 = vrot.lane.b32.xlu0 %v1900, 101
  %v1922 = vpop.permute.xlu0 %1921
  %1923 = vrot.lane.b32.xlu0 %v1901, 101
  %v1924 = vpop.permute.xlu0 %1923
  %1925 = vrot.lane.b32.xlu0 %v1902, 101
  %v1926 = vpop.permute.xlu0 %1925
  %vm1927 = vcmask 826368
  %v1928 = vsel %vm1927, %v1912, %v1914
  %v1929 = vsel %vm1927, %v1916, %v1918
  %v1930 = vsel %vm1927, %v1920, %v1922
  %v1931 = vsel %vm1927, %v1924, %v1926
  %v1940 = vadd.f32 %v1857, %v1912
  %v1941 = vadd.f32 %v1858, %v1928
  %v1942 = vadd.f32 %v1859, %v1916
  %v1943 = vadd.f32 %v1860, %v1929
  %v1944 = vadd.f32 %v1861, %v1920
  %v1945 = vadd.f32 %v1862, %v1930
  %v1946 = vadd.f32 %v1863, %v1924
  %v1947 = vadd.f32 %v1864, %v1931
  %v1948 = vld [vmem:[%s4 + $0x13] sm:$0x1]
  %v1949 = vperm.slane %v1948, 0
  %1951 = vrot.lane.b32.xlu0 %v1949, 10
  %v1952 = vpop.permute.xlu0 %1951
  %v1954 = vmul.f32 %v1442, %v1952
  %v1955 = vmul.f32 %v1443, %v1952
  %v1956 = vmul.f32 %v1444, %v1952
  %v1957 = vmul.f32 %v1445, %v1952
  %v1958 = vmul.f32 %v1446, %v1952
  %v1959 = vmul.f32 %v1447, %v1952
  %v1960 = vmul.f32 %v1448, %v1952
  %v1961 = vmul.f32 %v1449, %v1952
  %1962 = vset.pattern.permute.xlu0 19
  %1963 = vperm.xlu0 %1962, %v417
  %v1964 = vpop.permute.xlu0 %1963
  %1966 = vset.pattern.permute.xlu0 19
  %1967 = vperm.xlu0 %1966, %v418
  %v1968 = vpop.permute.xlu0 %1967
  %1970 = vset.pattern.permute.xlu0 19
  %1971 = vperm.xlu0 %1970, %v419
  %v1972 = vpop.permute.xlu0 %1971
  %1974 = vset.pattern.permute.xlu0 19
  %1975 = vperm.xlu0 %1974, %v420
  %v1976 = vpop.permute.xlu0 %1975
  %v1978 = vmul.f32 %v1954, %v1964
  %v1979 = vmul.f32 %v1955, %v1964
  %v1980 = vmul.f32 %v1956, %v1968
  %v1981 = vmul.f32 %v1957, %v1968
  %v1982 = vmul.f32 %v1958, %v1972
  %v1983 = vmul.f32 %v1959, %v1972
  %v1984 = vmul.f32 %v1960, %v1976
  %v1985 = vmul.f32 %v1961, %v1976
  %1994 = vrot.lane.b32.xlu0 %v1978, 100
  %v1995 = vpop.permute.xlu0 %1994
  %1996 = vrot.lane.b32.xlu0 %v1979, 100
  %v1997 = vpop.permute.xlu0 %1996
  %1998 = vrot.lane.b32.xlu0 %v1980, 100
  %v1999 = vpop.permute.xlu0 %1998
  %2000 = vrot.lane.b32.xlu0 %v1981, 100
  %v2001 = vpop.permute.xlu0 %2000
  %2002 = vrot.lane.b32.xlu0 %v1982, 100
  %v2003 = vpop.permute.xlu0 %2002
  %2004 = vrot.lane.b32.xlu0 %v1983, 100
  %v2005 = vpop.permute.xlu0 %2004
  %2006 = vrot.lane.b32.xlu0 %v1984, 100
  %v2007 = vpop.permute.xlu0 %2006
  %2008 = vrot.lane.b32.xlu0 %v1985, 100
  %v2009 = vpop.permute.xlu0 %2008
  %vm2010 = vcmask 818176
  %v2011 = vsel %vm2010, %v1995, %v1997
  %v2012 = vsel %vm2010, %v1999, %v2001
  %v2013 = vsel %vm2010, %v2003, %v2005
  %v2014 = vsel %vm2010, %v2007, %v2009
  %v2023 = vadd.f32 %v1940, %v1995
  %v2024 = vadd.f32 %v1941, %v2011
  %v2025 = vadd.f32 %v1942, %v1999
  %v2026 = vadd.f32 %v1943, %v2012
  %v2027 = vadd.f32 %v1944, %v2003
  %v2028 = vadd.f32 %v1945, %v2013
  %v2029 = vadd.f32 %v1946, %v2007
  %v2030 = vadd.f32 %v1947, %v2014
  %v2031 = vld [vmem:[%s4 + $0x14] sm:$0x1]
  %v2032 = vperm.slane %v2031, 0
  %2034 = vrot.lane.b32.xlu0 %v2032, 14
  %v2035 = vpop.permute.xlu0 %2034
  %v2037 = vmul.f32 %v1442, %v2035
  %v2038 = vmul.f32 %v1443, %v2035
  %v2039 = vmul.f32 %v1444, %v2035
  %v2040 = vmul.f32 %v1445, %v2035
  %v2041 = vmul.f32 %v1446, %v2035
  %v2042 = vmul.f32 %v1447, %v2035
  %v2043 = vmul.f32 %v1448, %v2035
  %v2044 = vmul.f32 %v1449, %v2035
  %2045 = vset.pattern.permute.xlu0 20
  %2046 = vperm.xlu0 %2045, %v417
  %v2047 = vpop.permute.xlu0 %2046
  %2049 = vset.pattern.permute.xlu0 20
  %2050 = vperm.xlu0 %2049, %v418
  %v2051 = vpop.permute.xlu0 %2050
  %2053 = vset.pattern.permute.xlu0 20
  %2054 = vperm.xlu0 %2053, %v419
  %v2055 = vpop.permute.xlu0 %2054
  %2057 = vset.pattern.permute.xlu0 20
  %2058 = vperm.xlu0 %2057, %v420
  %v2059 = vpop.permute.xlu0 %2058
  %v2061 = vmul.f32 %v2037, %v2047
  %v2062 = vmul.f32 %v2038, %v2047
  %v2063 = vmul.f32 %v2039, %v2051
  %v2064 = vmul.f32 %v2040, %v2051
  %v2065 = vmul.f32 %v2041, %v2055
  %v2066 = vmul.f32 %v2042, %v2055
  %v2067 = vmul.f32 %v2043, %v2059
  %v2068 = vmul.f32 %v2044, %v2059
  %2077 = vrot.lane.b32.xlu0 %v2061, 96
  %v2078 = vpop.permute.xlu0 %2077
  %2079 = vrot.lane.b32.xlu0 %v2062, 96
  %v2080 = vpop.permute.xlu0 %2079
  %2081 = vrot.lane.b32.xlu0 %v2063, 96
  %v2082 = vpop.permute.xlu0 %2081
  %2083 = vrot.lane.b32.xlu0 %v2064, 96
  %v2084 = vpop.permute.xlu0 %2083
  %2085 = vrot.lane.b32.xlu0 %v2065, 96
  %v2086 = vpop.permute.xlu0 %2085
  %2087 = vrot.lane.b32.xlu0 %v2066, 96
  %v2088 = vpop.permute.xlu0 %2087
  %2089 = vrot.lane.b32.xlu0 %v2067, 96
  %v2090 = vpop.permute.xlu0 %2089
  %2091 = vrot.lane.b32.xlu0 %v2068, 96
  %v2092 = vpop.permute.xlu0 %2091
  %vm2093 = vcmask 785408
  %v2094 = vsel %vm2093, %v2078, %v2080
  %v2095 = vsel %vm2093, %v2082, %v2084
  %v2096 = vsel %vm2093, %v2086, %v2088
  %v2097 = vsel %vm2093, %v2090, %v2092
  %v2106 = vadd.f32 %v2023, %v2078
  %v2107 = vadd.f32 %v2024, %v2094
  %v2108 = vadd.f32 %v2025, %v2082
  %v2109 = vadd.f32 %v2026, %v2095
  %v2110 = vadd.f32 %v2027, %v2086
  %v2111 = vadd.f32 %v2028, %v2096
  %v2112 = vadd.f32 %v2029, %v2090
  %v2113 = vadd.f32 %v2030, %v2097
  %v2114 = vld [vmem:[%s4 + $0x15] sm:$0x1]
  %v2115 = vperm.slane %v2114, 0
  %2117 = vrot.lane.b32.xlu0 %v2115, 15
  %v2118 = vpop.permute.xlu0 %2117
  %v2120 = vmul.f32 %v1442, %v2118
  %v2121 = vmul.f32 %v1443, %v2118
  %v2122 = vmul.f32 %v1444, %v2118
  %v2123 = vmul.f32 %v1445, %v2118
  %v2124 = vmul.f32 %v1446, %v2118
  %v2125 = vmul.f32 %v1447, %v2118
  %v2126 = vmul.f32 %v1448, %v2118
  %v2127 = vmul.f32 %v1449, %v2118
  %2128 = vset.pattern.permute.xlu0 21
  %2129 = vperm.xlu0 %2128, %v417
  %v2130 = vpop.permute.xlu0 %2129
  %2132 = vset.pattern.permute.xlu0 21
  %2133 = vperm.xlu0 %2132, %v418
  %v2134 = vpop.permute.xlu0 %2133
  %2136 = vset.pattern.permute.xlu0 21
  %2137 = vperm.xlu0 %2136, %v419
  %v2138 = vpop.permute.xlu0 %2137
  %2140 = vset.pattern.permute.xlu0 21
  %2141 = vperm.xlu0 %2140, %v420
  %v2142 = vpop.permute.xlu0 %2141
  %v2144 = vmul.f32 %v2120, %v2130
  %v2145 = vmul.f32 %v2121, %v2130
  %v2146 = vmul.f32 %v2122, %v2134
  %v2147 = vmul.f32 %v2123, %v2134
  %v2148 = vmul.f32 %v2124, %v2138
  %v2149 = vmul.f32 %v2125, %v2138
  %v2150 = vmul.f32 %v2126, %v2142
  %v2151 = vmul.f32 %v2127, %v2142
  %2160 = vrot.lane.b32.xlu0 %v2144, 95
  %v2161 = vpop.permute.xlu0 %2160
  %2162 = vrot.lane.b32.xlu0 %v2145, 95
  %v2163 = vpop.permute.xlu0 %2162
  %2164 = vrot.lane.b32.xlu0 %v2146, 95
  %v2165 = vpop.permute.xlu0 %2164
  %2166 = vrot.lane.b32.xlu0 %v2147, 95
  %v2167 = vpop.permute.xlu0 %2166
  %2168 = vrot.lane.b32.xlu0 %v2148, 95
  %v2169 = vpop.permute.xlu0 %2168
  %2170 = vrot.lane.b32.xlu0 %v2149, 95
  %v2171 = vpop.permute.xlu0 %2170
  %2172 = vrot.lane.b32.xlu0 %v2150, 95
  %v2173 = vpop.permute.xlu0 %2172
  %2174 = vrot.lane.b32.xlu0 %v2151, 95
  %v2175 = vpop.permute.xlu0 %2174
  %vm2176 = vcmask 777216
  %v2177 = vsel %vm2176, %v2161, %v2163
  %v2178 = vsel %vm2176, %v2165, %v2167
  %v2179 = vsel %vm2176, %v2169, %v2171
  %v2180 = vsel %vm2176, %v2173, %v2175
  %v2189 = vadd.f32 %v2106, %v2161
  %v2190 = vadd.f32 %v2107, %v2177
  %v2191 = vadd.f32 %v2108, %v2165
  %v2192 = vadd.f32 %v2109, %v2178
  %v2193 = vadd.f32 %v2110, %v2169
  %v2194 = vadd.f32 %v2111, %v2179
  %v2195 = vadd.f32 %v2112, %v2173
  %v2196 = vadd.f32 %v2113, %v2180
  %v2197 = vld [vmem:[%s4 + $0x16] sm:$0x1]
  %v2198 = vperm.slane %v2197, 0
  %2200 = vrot.lane.b32.xlu0 %v2198, 16
  %v2201 = vpop.permute.xlu0 %2200
  %v2203 = vmul.f32 %v1442, %v2201
  %v2204 = vmul.f32 %v1443, %v2201
  %v2205 = vmul.f32 %v1444, %v2201
  %v2206 = vmul.f32 %v1445, %v2201
  %v2207 = vmul.f32 %v1446, %v2201
  %v2208 = vmul.f32 %v1447, %v2201
  %v2209 = vmul.f32 %v1448, %v2201
  %v2210 = vmul.f32 %v1449, %v2201
  %2211 = vset.pattern.permute.xlu0 22
  %2212 = vperm.xlu0 %2211, %v417
  %v2213 = vpop.permute.xlu0 %2212
  %2215 = vset.pattern.permute.xlu0 22
  %2216 = vperm.xlu0 %2215, %v418
  %v2217 = vpop.permute.xlu0 %2216
  %2219 = vset.pattern.permute.xlu0 22
  %2220 = vperm.xlu0 %2219, %v419
  %v2221 = vpop.permute.xlu0 %2220
  %2223 = vset.pattern.permute.xlu0 22
  %2224 = vperm.xlu0 %2223, %v420
  %v2225 = vpop.permute.xlu0 %2224
  %v2227 = vmul.f32 %v2203, %v2213
  %v2228 = vmul.f32 %v2204, %v2213
  %v2229 = vmul.f32 %v2205, %v2217
  %v2230 = vmul.f32 %v2206, %v2217
  %v2231 = vmul.f32 %v2207, %v2221
  %v2232 = vmul.f32 %v2208, %v2221
  %v2233 = vmul.f32 %v2209, %v2225
  %v2234 = vmul.f32 %v2210, %v2225
  %2243 = vrot.lane.b32.xlu0 %v2227, 94
  %v2244 = vpop.permute.xlu0 %2243
  %2245 = vrot.lane.b32.xlu0 %v2228, 94
  %v2246 = vpop.permute.xlu0 %2245
  %2247 = vrot.lane.b32.xlu0 %v2229, 94
  %v2248 = vpop.permute.xlu0 %2247
  %2249 = vrot.lane.b32.xlu0 %v2230, 94
  %v2250 = vpop.permute.xlu0 %2249
  %2251 = vrot.lane.b32.xlu0 %v2231, 94
  %v2252 = vpop.permute.xlu0 %2251
  %2253 = vrot.lane.b32.xlu0 %v2232, 94
  %v2254 = vpop.permute.xlu0 %2253
  %2255 = vrot.lane.b32.xlu0 %v2233, 94
  %v2256 = vpop.permute.xlu0 %2255
  %2257 = vrot.lane.b32.xlu0 %v2234, 94
  %v2258 = vpop.permute.xlu0 %2257
  %vm2259 = vcmask 769024
  %v2260 = vsel %vm2259, %v2244, %v2246
  %v2261 = vsel %vm2259, %v2248, %v2250
  %v2262 = vsel %vm2259, %v2252, %v2254
  %v2263 = vsel %vm2259, %v2256, %v2258
  %v2272 = vadd.f32 %v2189, %v2244
  %v2273 = vadd.f32 %v2190, %v2260
  %v2274 = vadd.f32 %v2191, %v2248
  %v2275 = vadd.f32 %v2192, %v2261
  %v2276 = vadd.f32 %v2193, %v2252
  %v2277 = vadd.f32 %v2194, %v2262
  %v2278 = vadd.f32 %v2195, %v2256
  %v2279 = vadd.f32 %v2196, %v2263
  %v2280 = vld [vmem:[%s4 + $0x17] sm:$0x1]
  %v2281 = vperm.slane %v2280, 0
  %2283 = vrot.lane.b32.xlu0 %v2281, 17
  %v2284 = vpop.permute.xlu0 %2283
  %v2286 = vmul.f32 %v1442, %v2284
  %v2287 = vmul.f32 %v1443, %v2284
  %v2288 = vmul.f32 %v1444, %v2284
  %v2289 = vmul.f32 %v1445, %v2284
  %v2290 = vmul.f32 %v1446, %v2284
  %v2291 = vmul.f32 %v1447, %v2284
  %v2292 = vmul.f32 %v1448, %v2284
  %v2293 = vmul.f32 %v1449, %v2284
  %2294 = vset.pattern.permute.xlu0 23
  %2295 = vperm.xlu0 %2294, %v417
  %v2296 = vpop.permute.xlu0 %2295
  %2298 = vset.pattern.permute.xlu0 23
  %2299 = vperm.xlu0 %2298, %v418
  %v2300 = vpop.permute.xlu0 %2299
  %2302 = vset.pattern.permute.xlu0 23
  %2303 = vperm.xlu0 %2302, %v419
  %v2304 = vpop.permute.xlu0 %2303
  %2306 = vset.pattern.permute.xlu0 23
  %2307 = vperm.xlu0 %2306, %v420
  %v2308 = vpop.permute.xlu0 %2307
  %v2310 = vmul.f32 %v2286, %v2296
  %v2311 = vmul.f32 %v2287, %v2296
  %v2312 = vmul.f32 %v2288, %v2300
  %v2313 = vmul.f32 %v2289, %v2300
  %v2314 = vmul.f32 %v2290, %v2304
  %v2315 = vmul.f32 %v2291, %v2304
  %v2316 = vmul.f32 %v2292, %v2308
  %v2317 = vmul.f32 %v2293, %v2308
  %2326 = vrot.lane.b32.xlu0 %v2310, 93
  %v2327 = vpop.permute.xlu0 %2326
  %2328 = vrot.lane.b32.xlu0 %v2311, 93
  %v2329 = vpop.permute.xlu0 %2328
  %2330 = vrot.lane.b32.xlu0 %v2312, 93
  %v2331 = vpop.permute.xlu0 %2330
  %2332 = vrot.lane.b32.xlu0 %v2313, 93
  %v2333 = vpop.permute.xlu0 %2332
  %2334 = vrot.lane.b32.xlu0 %v2314, 93
  %v2335 = vpop.permute.xlu0 %2334
  %2336 = vrot.lane.b32.xlu0 %v2315, 93
  %v2337 = vpop.permute.xlu0 %2336
  %2338 = vrot.lane.b32.xlu0 %v2316, 93
  %v2339 = vpop.permute.xlu0 %2338
  %2340 = vrot.lane.b32.xlu0 %v2317, 93
  %v2341 = vpop.permute.xlu0 %2340
  %vm2342 = vcmask 760832
  %v2343 = vsel %vm2342, %v2327, %v2329
  %v2344 = vsel %vm2342, %v2331, %v2333
  %v2345 = vsel %vm2342, %v2335, %v2337
  %v2346 = vsel %vm2342, %v2339, %v2341
  %v2355 = vadd.f32 %v2272, %v2327
  %v2356 = vadd.f32 %v2273, %v2343
  %v2357 = vadd.f32 %v2274, %v2331
  %v2358 = vadd.f32 %v2275, %v2344
  %v2359 = vadd.f32 %v2276, %v2335
  %v2360 = vadd.f32 %v2277, %v2345
  %v2361 = vadd.f32 %v2278, %v2339
  %v2362 = vadd.f32 %v2279, %v2346
  %v2363 = vld [vmem:[%s4 + $0x18] sm:$0x1]
  %v2364 = vperm.slane %v2363, 0
  %2366 = vrot.lane.b32.xlu0 %v2364, 18
  %v2367 = vpop.permute.xlu0 %2366
  %v2369 = vmul.f32 %v1442, %v2367
  %v2370 = vmul.f32 %v1443, %v2367
  %v2371 = vmul.f32 %v1444, %v2367
  %v2372 = vmul.f32 %v1445, %v2367
  %v2373 = vmul.f32 %v1446, %v2367
  %v2374 = vmul.f32 %v1447, %v2367
  %v2375 = vmul.f32 %v1448, %v2367
  %v2376 = vmul.f32 %v1449, %v2367
  %2377 = vset.pattern.permute.xlu0 24
  %2378 = vperm.xlu0 %2377, %v417
  %v2379 = vpop.permute.xlu0 %2378
  %2381 = vset.pattern.permute.xlu0 24
  %2382 = vperm.xlu0 %2381, %v418
  %v2383 = vpop.permute.xlu0 %2382
  %2385 = vset.pattern.permute.xlu0 24
  %2386 = vperm.xlu0 %2385, %v419
  %v2387 = vpop.permute.xlu0 %2386
  %2389 = vset.pattern.permute.xlu0 24
  %2390 = vperm.xlu0 %2389, %v420
  %v2391 = vpop.permute.xlu0 %2390
  %v2393 = vmul.f32 %v2369, %v2379
  %v2394 = vmul.f32 %v2370, %v2379
  %v2395 = vmul.f32 %v2371, %v2383
  %v2396 = vmul.f32 %v2372, %v2383
  %v2397 = vmul.f32 %v2373, %v2387
  %v2398 = vmul.f32 %v2374, %v2387
  %v2399 = vmul.f32 %v2375, %v2391
  %v2400 = vmul.f32 %v2376, %v2391
  %2409 = vrot.lane.b32.xlu0 %v2393, 92
  %v2410 = vpop.permute.xlu0 %2409
  %2411 = vrot.lane.b32.xlu0 %v2394, 92
  %v2412 = vpop.permute.xlu0 %2411
  %2413 = vrot.lane.b32.xlu0 %v2395, 92
  %v2414 = vpop.permute.xlu0 %2413
  %2415 = vrot.lane.b32.xlu0 %v2396, 92
  %v2416 = vpop.permute.xlu0 %2415
  %2417 = vrot.lane.b32.xlu0 %v2397, 92
  %v2418 = vpop.permute.xlu0 %2417
  %2419 = vrot.lane.b32.xlu0 %v2398, 92
  %v2420 = vpop.permute.xlu0 %2419
  %2421 = vrot.lane.b32.xlu0 %v2399, 92
  %v2422 = vpop.permute.xlu0 %2421
  %2423 = vrot.lane.b32.xlu0 %v2400, 92
  %v2424 = vpop.permute.xlu0 %2423
  %vm2425 = vcmask 752640
  %v2426 = vsel %vm2425, %v2410, %v2412
  %v2427 = vsel %vm2425, %v2414, %v2416
  %v2428 = vsel %vm2425, %v2418, %v2420
  %v2429 = vsel %vm2425, %v2422, %v2424
  %v2438 = vadd.f32 %v2355, %v2410
  %v2439 = vadd.f32 %v2356, %v2426
  %v2440 = vadd.f32 %v2357, %v2414
  %v2441 = vadd.f32 %v2358, %v2427
  %v2442 = vadd.f32 %v2359, %v2418
  %v2443 = vadd.f32 %v2360, %v2428
  %v2444 = vadd.f32 %v2361, %v2422
  %v2445 = vadd.f32 %v2362, %v2429
  %2446 = vset.pattern.permute.xlu0 3
  %2447 = vperm.xlu0 %2446, %v42
  %v2448 = vpop.permute.xlu0 %2447
  %2450 = vset.pattern.permute.xlu0 3
  %2451 = vperm.xlu0 %2450, %v43
  %v2452 = vpop.permute.xlu0 %2451
  %2454 = vset.pattern.permute.xlu0 3
  %2455 = vperm.xlu0 %2454, %v44
  %v2456 = vpop.permute.xlu0 %2455
  %2458 = vset.pattern.permute.xlu0 3
  %2459 = vperm.xlu0 %2458, %v45
  %v2460 = vpop.permute.xlu0 %2459
  %v2462 = vadd.f32 %v2438, %v2448
  %v2463 = vadd.f32 %v2439, %v2448
  %v2464 = vadd.f32 %v2440, %v2452
  %v2465 = vadd.f32 %v2441, %v2452
  %v2466 = vadd.f32 %v2442, %v2456
  %v2467 = vadd.f32 %v2443, %v2456
  %v2468 = vadd.f32 %v2444, %v2460
  %v2469 = vadd.f32 %v2445, %v2460
  %2478 = vrot.lane.b32.xlu0 %v2462, 18
  %v2479 = vpop.permute.xlu0 %2478
  %2480 = vrot.lane.b32.xlu0 %v2463, 18
  %v2481 = vpop.permute.xlu0 %2480
  %2482 = vrot.lane.b32.xlu0 %v2464, 18
  %v2483 = vpop.permute.xlu0 %2482
  %2484 = vrot.lane.b32.xlu0 %v2465, 18
  %v2485 = vpop.permute.xlu0 %2484
  %2486 = vrot.lane.b32.xlu0 %v2466, 18
  %v2487 = vpop.permute.xlu0 %2486
  %2488 = vrot.lane.b32.xlu0 %v2467, 18
  %v2489 = vpop.permute.xlu0 %2488
  %2490 = vrot.lane.b32.xlu0 %v2468, 18
  %v2491 = vpop.permute.xlu0 %2490
  %2492 = vrot.lane.b32.xlu0 %v2469, 18
  %v2493 = vpop.permute.xlu0 %2492
  %vm2494 = vcmask 146432
  %v2495 = vsel %vm2494, %v2479, %v2481
  %v2496 = vsel %vm2494, %v2483, %v2485
  %v2497 = vsel %vm2494, %v2487, %v2489
  %v2498 = vsel %vm2494, %v2491, %v2493
  %2503 = vadd.xlane.f32.xlu0 %v2495
  %v2504 = vpop.xlane.xlu0 %2503
  %2505 = vadd.xlane.f32.xlu0 %v2496
  %v2506 = vpop.xlane.xlu0 %2505
  %2507 = vadd.xlane.f32.xlu0 %v2497
  %v2508 = vpop.xlane.xlu0 %2507
  %2509 = vadd.xlane.f32.xlu0 %v2498
  %v2510 = vpop.xlane.xlu0 %2509
  %v2511 = vmul.f32 %v2462, %v2462
  %v2512 = vmul.f32 %v2463, %v2463
  %v2513 = vmul.f32 %v2464, %v2464
  %v2514 = vmul.f32 %v2465, %v2465
  %v2515 = vmul.f32 %v2466, %v2466
  %v2516 = vmul.f32 %v2467, %v2467
  %v2517 = vmul.f32 %v2468, %v2468
  %v2518 = vmul.f32 %v2469, %v2469
  %2527 = vrot.lane.b32.xlu0 %v2511, 18
  %v2528 = vpop.permute.xlu0 %2527
  %2529 = vrot.lane.b32.xlu0 %v2512, 18
  %v2530 = vpop.permute.xlu0 %2529
  %2531 = vrot.lane.b32.xlu0 %v2513, 18
  %v2532 = vpop.permute.xlu0 %2531
  %2533 = vrot.lane.b32.xlu0 %v2514, 18
  %v2534 = vpop.permute.xlu0 %2533
  %2535 = vrot.lane.b32.xlu0 %v2515, 18
  %v2536 = vpop.permute.xlu0 %2535
  %2537 = vrot.lane.b32.xlu0 %v2516, 18
  %v2538 = vpop.permute.xlu0 %2537
  %2539 = vrot.lane.b32.xlu0 %v2517, 18
  %v2540 = vpop.permute.xlu0 %2539
  %2541 = vrot.lane.b32.xlu0 %v2518, 18
  %v2542 = vpop.permute.xlu0 %2541
  %v2543 = vsel %vm2494, %v2528, %v2530
  %v2544 = vsel %vm2494, %v2532, %v2534
  %v2545 = vsel %vm2494, %v2536, %v2538
  %v2546 = vsel %vm2494, %v2540, %v2542
  %2551 = vadd.xlane.f32.xlu0 %v2543
  %v2552 = vpop.xlane.xlu0 %2551
  %2553 = vadd.xlane.f32.xlu0 %v2544
  %v2554 = vpop.xlane.xlu0 %2553
  %2555 = vadd.xlane.f32.xlu0 %v2545
  %v2556 = vpop.xlane.xlu0 %2555
  %2557 = vadd.xlane.f32.xlu0 %v2546
  %v2558 = vpop.xlane.xlu0 %2557
  %v2559 = vmul.f32 %v2504, 0.0078125
  %v2560 = vmul.f32 %v2506, 0.0078125
  %v2561 = vmul.f32 %v2508, 0.0078125
  %v2562 = vmul.f32 %v2510, 0.0078125
  %v2563 = vmul.f32 %v2552, 0.0078125
  %v2564 = vmul.f32 %v2554, 0.0078125
  %v2565 = vmul.f32 %v2556, 0.0078125
  %v2566 = vmul.f32 %v2558, 0.0078125
  %v2567 = vmul.f32 %v2559, %v2559
  %v2568 = vmul.f32 %v2560, %v2560
  %v2569 = vmul.f32 %v2561, %v2561
  %v2570 = vmul.f32 %v2562, %v2562
  %v2571 = vsub.f32 %v2563, %v2567
  %v2572 = vsub.f32 %v2564, %v2568
  %v2573 = vsub.f32 %v2565, %v2569
  %v2574 = vsub.f32 %v2566, %v2570
  %v2575 = vmax.f32 %v2571, 0.0
  %v2576 = vmax.f32 %v2572, 0.0
  %v2577 = vmax.f32 %v2573, 0.0
  %v2578 = vmax.f32 %v2574, 0.0
  %v2579 = vsub.f32 %v2462, %v2559
  %v2580 = vsub.f32 %v2463, %v2559
  %v2581 = vsub.f32 %v2464, %v2560
  %v2582 = vsub.f32 %v2465, %v2560
  %v2583 = vsub.f32 %v2466, %v2561
  %v2584 = vsub.f32 %v2467, %v2561
  %v2585 = vsub.f32 %v2468, %v2562
  %v2586 = vsub.f32 %v2469, %v2562
  %v2587 = vadd.f32 %v2575, 1e-05
  %v2588 = vadd.f32 %v2576, 1e-05
  %v2589 = vadd.f32 %v2577, 1e-05
  %v2590 = vadd.f32 %v2578, 1e-05
  %v2591 = vrsqrt.pop %v2587
  %v2592 = vmul.f32 %v2591, %v2587
  %v2593 = vmul.f32 %v2592, %v2591
  %v2594 = vmul.f32 0.5, %v2593
  %v2595 = vsub.f32 1.5, %v2594
  %v2596 = vmul.f32 %v2591, %v2595
  %vm2597 = vweird.f32 %v2587
  %vm2598 = vweird.f32 %v2591
  %vm2599 = vmor %vm2597, %vm2598
  %v2600 = vsel %vm2599, %v2591, %v2596
  %v2601 = vrsqrt.pop %v2588
  %v2602 = vmul.f32 %v2601, %v2588
  %v2603 = vmul.f32 %v2602, %v2601
  %v2604 = vmul.f32 0.5, %v2603
  %v2605 = vsub.f32 1.5, %v2604
  %v2606 = vmul.f32 %v2601, %v2605
  %vm2607 = vweird.f32 %v2588
  %vm2608 = vweird.f32 %v2601
  %vm2609 = vmor %vm2607, %vm2608
  %v2610 = vsel %vm2609, %v2601, %v2606
  %v2611 = vrsqrt.pop %v2589
  %v2612 = vmul.f32 %v2611, %v2589
  %v2613 = vmul.f32 %v2612, %v2611
  %v2614 = vmul.f32 0.5, %v2613
  %v2615 = vsub.f32 1.5, %v2614
  %v2616 = vmul.f32 %v2611, %v2615
  %vm2617 = vweird.f32 %v2589
  %vm2618 = vweird.f32 %v2611
  %vm2619 = vmor %vm2617, %vm2618
  %v2620 = vsel %vm2619, %v2611, %v2616
  %v2621 = vrsqrt.pop %v2590
  %v2622 = vmul.f32 %v2621, %v2590
  %v2623 = vmul.f32 %v2622, %v2621
  %v2624 = vmul.f32 0.5, %v2623
  %v2625 = vsub.f32 1.5, %v2624
  %v2626 = vmul.f32 %v2621, %v2625
  %vm2627 = vweird.f32 %v2590
  %vm2628 = vweird.f32 %v2621
  %vm2629 = vmor %vm2627, %vm2628
  %v2630 = vsel %vm2629, %v2621, %v2626
  %v2631 = vmul.f32 %v42, %v2600
  %v2632 = vmul.f32 %v43, %v2610
  %v2633 = vmul.f32 %v44, %v2620
  %v2634 = vmul.f32 %v45, %v2630
  %2636 = vset.pattern.permute.xlu0 4
  %2637 = vperm.xlu0 %2636, %v2631
  %v2638 = vpop.permute.xlu0 %2637
  %2641 = vset.pattern.permute.xlu0 4
  %2642 = vperm.xlu0 %2641, %v2632
  %v2643 = vpop.permute.xlu0 %2642
  %2646 = vset.pattern.permute.xlu0 4
  %2647 = vperm.xlu0 %2646, %v2633
  %v2648 = vpop.permute.xlu0 %2647
  %2651 = vset.pattern.permute.xlu0 4
  %2652 = vperm.xlu0 %2651, %v2634
  %v2653 = vpop.permute.xlu0 %2652
  %v2655 = vmul.f32 %v2579, %v2638
  %v2656 = vmul.f32 %v2580, %v2638
  %v2657 = vmul.f32 %v2581, %v2643
  %v2658 = vmul.f32 %v2582, %v2643
  %v2659 = vmul.f32 %v2583, %v2648
  %v2660 = vmul.f32 %v2584, %v2648
  %v2661 = vmul.f32 %v2585, %v2653
  %v2662 = vmul.f32 %v2586, %v2653
  %2663 = vset.pattern.permute.xlu0 5
  %2664 = vperm.xlu0 %2663, %v42
  %v2665 = vpop.permute.xlu0 %2664
  %2667 = vset.pattern.permute.xlu0 5
  %2668 = vperm.xlu0 %2667, %v43
  %v2669 = vpop.permute.xlu0 %2668
  %2671 = vset.pattern.permute.xlu0 5
  %2672 = vperm.xlu0 %2671, %v44
  %v2673 = vpop.permute.xlu0 %2672
  %2675 = vset.pattern.permute.xlu0 5
  %2676 = vperm.xlu0 %2675, %v45
  %v2677 = vpop.permute.xlu0 %2676
  %v2679 = vadd.f32 %v2655, %v2665
  %v2680 = vadd.f32 %v2656, %v2665
  %v2681 = vadd.f32 %v2657, %v2669
  %v2682 = vadd.f32 %v2658, %v2669
  %v2683 = vadd.f32 %v2659, %v2673
  %v2684 = vadd.f32 %v2660, %v2673
  %v2685 = vadd.f32 %v2661, %v2677
  %v2686 = vadd.f32 %v2662, %v2677
  %2691 = vrot.lane.b32.xlu0 %v409, 110
  %v2692 = vpop.permute.xlu0 %2691
  %2693 = vrot.lane.b32.xlu0 %v410, 110
  %v2694 = vpop.permute.xlu0 %2693
  %2695 = vrot.lane.b32.xlu0 %v411, 110
  %v2696 = vpop.permute.xlu0 %2695
  %2697 = vrot.lane.b32.xlu0 %v412, 110
  %v2698 = vpop.permute.xlu0 %2697
  %v2703 = vadd.f32 %v2679, %v2692
  %v2704 = vadd.f32 %v2680, %v2692
  %v2705 = vadd.f32 %v2681, %v2694
  %v2706 = vadd.f32 %v2682, %v2694
  %v2707 = vadd.f32 %v2683, %v2696
  %v2708 = vadd.f32 %v2684, %v2696
  %v2709 = vadd.f32 %v2685, %v2698
  %v2710 = vadd.f32 %v2686, %v2698
  %v2711 = vld [vmem:[%s5] sm:$0xf]
  %v2712 = vld [vmem:[%s5 + $0x4] sm:$0xf]
  %v2713 = vld [vmem:[%s5 + $0x8] sm:$0xf]
  %v2714 = vld [vmem:[%s5 + $0xc] sm:$0xf]
  %v2715 = vpack.c.bf16 %v2705, %v2703
  %v2716 = vpack.c.bf16 %v2706, %v2704
  %v2717 = vpack.c.bf16 %v2709, %v2707
  %v2718 = vpack.c.bf16 %v2710, %v2708
  %2719 = vset.pattern.permute.xlu0 6
  %2720 = vperm.xlu0 %2719, %v42
  %v2721 = vpop.permute.xlu0 %2720
  %2723 = vset.pattern.permute.xlu0 6
  %2724 = vperm.xlu0 %2723, %v43
  %v2725 = vpop.permute.xlu0 %2724
  %2727 = vset.pattern.permute.xlu0 6
  %2728 = vperm.xlu0 %2727, %v44
  %v2729 = vpop.permute.xlu0 %2728
  %2731 = vset.pattern.permute.xlu0 6
  %2732 = vperm.xlu0 %2731, %v45
  %v2733 = vpop.permute.xlu0 %2732
  %v2739 = vunpack.c.l.b16 %v2711
  %v2740 = vunpack.c.l.b16 %v2712
  %v2741 = vunpack.c.l.b16 %v2713
  %v2742 = vunpack.c.l.b16 %v2714
  %v2743 = vpack.c.b16 %v2740, %v2739
  %v2744 = vpack.c.b16 %v2742, %v2741
  %2749 = vrot.lane.b32.xlu0 %v2715, 18
  %v2750 = vpop.permute.xlu0 %2749
  %2751 = vrot.lane.b32.xlu0 %v2716, 18
  %v2752 = vpop.permute.xlu0 %2751
  %2753 = vrot.lane.b32.xlu0 %v2717, 18
  %v2754 = vpop.permute.xlu0 %2753
  %2755 = vrot.lane.b32.xlu0 %v2718, 18
  %v2756 = vpop.permute.xlu0 %2755
  %vm2757 = vcmask 146432
  %v2758 = vsel %vm2757, %v2750, %v2752
  %v2759 = vsel %vm2757, %v2754, %v2756
  %vm2762 = vcmask 261120
  %v2764 = vsel %vm2762, %v2743, 0
  %v2767 = vsel %vm2762, %v2744, 0
  %2769 = vmatpush.bf16.msra.mxu0 0
  %2770 = vmatpush.bf16.msra.mxu0 0
  %2771 = vmatpush.bf16.msra.mxu0 0
  %2772 = vmatpush.bf16.msra.mxu0 0
  %2773 = vmatpush.bf16.msra.mxu0 0
  %2774 = vmatpush.bf16.msra.mxu0 0
  %2775 = vmatpush.bf16.msra.mxu0 %v2759
  %2776 = vmatpush.bf16.msra.mxu0 %v2758
  %2777 = vmatmul.bf16.gmra.mxu0 %v2764
  %v2778 = vpop.f32.mrf.mxu0
  %v2779 = vadd.f32 %v2721, %v2778
  %v2780 = vpop.f32.mrf.mxu0
  %v2781 = vadd.f32 %v2725, %v2780
  %2782 = vmatmul.bf16.gmra.mxu0 %v2767
  %v2783 = vpop.f32.mrf.mxu0
  %v2784 = vadd.f32 %v2729, %v2783
  %v2785 = vpop.f32.mrf.mxu0
  %v2786 = vadd.f32 %v2733, %v2785
  %2787 = vdwg.mxu0
  %v2788 = vmul.f32 %v2779, 0.70710677
  %v2789 = vmul.f32 %v2781, 0.70710677
  %v2790 = vmul.f32 %v2784, 0.70710677
  %v2791 = vmul.f32 %v2786, 0.70710677
  %v2792 = vand.u32 2147483647, %v2788
  %v2793 = vand.u32 2147483647, %v2789
  %v2794 = vand.u32 2147483647, %v2790
  %v2795 = vand.u32 2147483647, %v2791
  %v2796 = vmul.f32 %v2792, 0.3275911
  %v2797 = vmul.f32 %v2793, 0.3275911
  %v2798 = vmul.f32 %v2794, 0.3275911
  %v2799 = vmul.f32 %v2795, 0.3275911
  %v2800 = vadd.f32 %v2796, 1.0
  %v2801 = vadd.f32 %v2797, 1.0
  %v2802 = vadd.f32 %v2798, 1.0
  %v2803 = vadd.f32 %v2799, 1.0
  %v2804 = vrcp.pop %v2800
  %v2805 = vmul.f32 %v2800, %v2804
  %v2806 = vsub.f32 1.0, %v2805
  %v2807 = vmul.f32 %v2804, %v2806
  %v2808 = vadd.f32 %v2804, %v2807
  %vm2809 = vweird.f32 %v2800
  %vm2810 = vweird.f32 %v2804
  %vm2811 = vmor %vm2809, %vm2810
  %v2812 = vsel %vm2811, %v2804, %v2808
  %v2813 = vand.u32 2147483647, %v2800
  %vm2814 = vcmp.eq.f32.partialorder %v2813, 8.507059e+37
  %v2815 = vand.u32 %v2800, 2147483648
  %v2816 = vor.u32 1.1754944e-38, %v2815
  %v2817 = vsel %vm2814, %v2816, %v2812
  %v2818 = vmul.f32 1.0, %v2817
  %v2819 = vrcp.pop %v2801
  %v2820 = vmul.f32 %v2801, %v2819
  %v2821 = vsub.f32 1.0, %v2820
  %v2822 = vmul.f32 %v2819, %v2821
  %v2823 = vadd.f32 %v2819, %v2822
  %vm2824 = vweird.f32 %v2801
  %vm2825 = vweird.f32 %v2819
  %vm2826 = vmor %vm2824, %vm2825
  %v2827 = vsel %vm2826, %v2819, %v2823
  %v2828 = vand.u32 2147483647, %v2801
  %vm2829 = vcmp.eq.f32.partialorder %v2828, 8.507059e+37
  %v2830 = vand.u32 %v2801, 2147483648
  %v2831 = vor.u32 1.1754944e-38, %v2830
  %v2832 = vsel %vm2829, %v2831, %v2827
  %v2833 = vmul.f32 1.0, %v2832
  %v2834 = vrcp.pop %v2802
  %v2835 = vmul.f32 %v2802, %v2834
  %v2836 = vsub.f32 1.0, %v2835
  %v2837 = vmul.f32 %v2834, %v2836
  %v2838 = vadd.f32 %v2834, %v2837
  %vm2839 = vweird.f32 %v2802
  %vm2840 = vweird.f32 %v2834
  %vm2841 = vmor %vm2839, %vm2840
  %v2842 = vsel %vm2841, %v2834, %v2838
  %v2843 = vand.u32 2147483647, %v2802
  %vm2844 = vcmp.eq.f32.partialorder %v2843, 8.507059e+37
  %v2845 = vand.u32 %v2802, 2147483648
  %v2846 = vor.u32 1.1754944e-38, %v2845
  %v2847 = vsel %vm2844, %v2846, %v2842
  %v2848 = vmul.f32 1.0, %v2847
  %v2849 = vrcp.pop %v2803
  %v2850 = vmul.f32 %v2803, %v2849
  %v2851 = vsub.f32 1.0, %v2850
  %v2852 = vmul.f32 %v2849, %v2851
  %v2853 = vadd.f32 %v2849, %v2852
  %vm2854 = vweird.f32 %v2803
  %vm2855 = vweird.f32 %v2849
  %vm2856 = vmor %vm2854, %vm2855
  %v2857 = vsel %vm2856, %v2849, %v2853
  %v2858 = vand.u32 2147483647, %v2803
  %vm2859 = vcmp.eq.f32.partialorder %v2858, 8.507059e+37
  %v2860 = vand.u32 %v2803, 2147483648
  %v2861 = vor.u32 1.1754944e-38, %v2860
  %v2862 = vsel %vm2859, %v2861, %v2857
  %v2863 = vmul.f32 1.0, %v2862
  %v2864 = vmul.f32 %v2818, 1.0614054
  %v2865 = vmul.f32 %v2833, 1.0614054
  %v2866 = vmul.f32 %v2848, 1.0614054
  %v2867 = vmul.f32 %v2863, 1.0614054
  %v2868 = vadd.f32 %v2864, -1.4531521
  %v2869 = vadd.f32 %v2865, -1.4531521
  %v2870 = vadd.f32 %v2866, -1.4531521
  %v2871 = vadd.f32 %v2867, -1.4531521
  %v2872 = vmul.f32 %v2818, %v2868
  %v2873 = vmul.f32 %v2833, %v2869
  %v2874 = vmul.f32 %v2848, %v2870
  %v2875 = vmul.f32 %v2863, %v2871
  %v2876 = vadd.f32 %v2872, 1.4214138
  %v2877 = vadd.f32 %v2873, 1.4214138
  %v2878 = vadd.f32 %v2874, 1.4214138
  %v2879 = vadd.f32 %v2875, 1.4214138
  %v2880 = vmul.f32 %v2818, %v2876
  %v2881 = vmul.f32 %v2833, %v2877
  %v2882 = vmul.f32 %v2848, %v2878
  %v2883 = vmul.f32 %v2863, %v2879
  %v2884 = vadd.f32 %v2880, -0.28449672
  %v2885 = vadd.f32 %v2881, -0.28449672
  %v2886 = vadd.f32 %v2882, -0.28449672
  %v2887 = vadd.f32 %v2883, -0.28449672
  %v2888 = vmul.f32 %v2818, %v2884
  %v2889 = vmul.f32 %v2833, %v2885
  %v2890 = vmul.f32 %v2848, %v2886
  %v2891 = vmul.f32 %v2863, %v2887
  %v2892 = vadd.f32 %v2888, 0.2548296
  %v2893 = vadd.f32 %v2889, 0.2548296
  %v2894 = vadd.f32 %v2890, 0.2548296
  %v2895 = vadd.f32 %v2891, 0.2548296
  %v2896 = vmul.f32 %v2818, %v2892
  %v2897 = vmul.f32 %v2833, %v2893
  %v2898 = vmul.f32 %v2848, %v2894
  %v2899 = vmul.f32 %v2863, %v2895
  %v2900 = vsub.f32 0.0, %v2792
  %v2901 = vsub.f32 0.0, %v2793
  %v2902 = vsub.f32 0.0, %v2794
  %v2903 = vsub.f32 0.0, %v2795
  %v2904 = vmul.f32 %v2900, %v2792
  %v2905 = vmul.f32 %v2901, %v2793
  %v2906 = vmul.f32 %v2902, %v2794
  %v2907 = vmul.f32 %v2903, %v2795
  %v2908 = vmul.f32 %v2904, 1.442695
  %v2909 = vpow.pop %v2908
  %v2910 = vmul.f32 %v2905, 1.442695
  %v2911 = vpow.pop %v2910
  %v2912 = vmul.f32 %v2906, 1.442695
  %v2913 = vpow.pop %v2912
  %v2914 = vmul.f32 %v2907, 1.442695
  %v2915 = vpow.pop %v2914
  %v2916 = vmul.f32 %v2896, %v2909
  %v2917 = vmul.f32 %v2897, %v2911
  %v2918 = vmul.f32 %v2898, %v2913
  %v2919 = vmul.f32 %v2899, %v2915
  %v2920 = vsub.f32 1.0, %v2916
  %v2921 = vsub.f32 1.0, %v2917
  %v2922 = vsub.f32 1.0, %v2918
  %v2923 = vsub.f32 1.0, %v2919
  %vm2924 = vcmp.ge.f32.partialorder %v2788, 0.0
  %vm2925 = vcmp.ge.f32.partialorder %v2789, 0.0
  %vm2926 = vcmp.ge.f32.partialorder %v2790, 0.0
  %vm2927 = vcmp.ge.f32.partialorder %v2791, 0.0
  %v2928 = vsub.f32 0.0, %v2920
  %v2929 = vsub.f32 0.0, %v2921
  %v2930 = vsub.f32 0.0, %v2922
  %v2931 = vsub.f32 0.0, %v2923
  %v2932 = vsel %vm2924, %v2920, %v2928
  %v2933 = vsel %vm2925, %v2921, %v2929
  %v2934 = vsel %vm2926, %v2922, %v2930
  %v2935 = vsel %vm2927, %v2923, %v2931
  %v2936 = vmul.f32 %v2779, 0.5
  %v2937 = vmul.f32 %v2781, 0.5
  %v2938 = vmul.f32 %v2784, 0.5
  %v2939 = vmul.f32 %v2786, 0.5
  %v2940 = vadd.f32 %v2932, 1.0
  %v2941 = vadd.f32 %v2933, 1.0
  %v2942 = vadd.f32 %v2934, 1.0
  %v2943 = vadd.f32 %v2935, 1.0
  %v2944 = vmul.f32 %v2936, %v2940
  %v2945 = vmul.f32 %v2937, %v2941
  %v2946 = vmul.f32 %v2938, %v2942
  %v2947 = vmul.f32 %v2939, %v2943
  %2948 = vadd.xlane.f32.xlu0 %v2944
  %v2949 = vpop.xlane.xlu0 %2948
  %2950 = vadd.xlane.f32.xlu0 %v2945
  %v2951 = vpop.xlane.xlu0 %2950
  %2952 = vadd.xlane.f32.xlu0 %v2946
  %v2953 = vpop.xlane.xlu0 %2952
  %2954 = vadd.xlane.f32.xlu0 %v2947
  %v2955 = vpop.xlane.xlu0 %2954
  %v2956 = vmul.f32 %v2944, %v2944
  %v2957 = vmul.f32 %v2945, %v2945
  %v2958 = vmul.f32 %v2946, %v2946
  %v2959 = vmul.f32 %v2947, %v2947
  %2960 = vadd.xlane.f32.xlu0 %v2956
  %v2961 = vpop.xlane.xlu0 %2960
  %2962 = vadd.xlane.f32.xlu0 %v2957
  %v2963 = vpop.xlane.xlu0 %2962
  %2964 = vadd.xlane.f32.xlu0 %v2958
  %v2965 = vpop.xlane.xlu0 %2964
  %2966 = vadd.xlane.f32.xlu0 %v2959
  %v2967 = vpop.xlane.xlu0 %2966
  %v2968 = vmul.f32 %v2949, 0.0078125
  %v2969 = vmul.f32 %v2951, 0.0078125
  %v2970 = vmul.f32 %v2953, 0.0078125
  %v2971 = vmul.f32 %v2955, 0.0078125
  %v2972 = vmul.f32 %v2961, 0.0078125
  %v2973 = vmul.f32 %v2963, 0.0078125
  %v2974 = vmul.f32 %v2965, 0.0078125
  %v2975 = vmul.f32 %v2967, 0.0078125
  %v2976 = vmul.f32 %v2968, %v2968
  %v2977 = vmul.f32 %v2969, %v2969
  %v2978 = vmul.f32 %v2970, %v2970
  %v2979 = vmul.f32 %v2971, %v2971
  %v2980 = vsub.f32 %v2972, %v2976
  %v2981 = vsub.f32 %v2973, %v2977
  %v2982 = vsub.f32 %v2974, %v2978
  %v2983 = vsub.f32 %v2975, %v2979
  %v2984 = vmax.f32 %v2980, 0.0
  %v2985 = vmax.f32 %v2981, 0.0
  %v2986 = vmax.f32 %v2982, 0.0
  %v2987 = vmax.f32 %v2983, 0.0
  %v2988 = vsub.f32 %v2944, %v2968
  %v2989 = vsub.f32 %v2945, %v2969
  %v2990 = vsub.f32 %v2946, %v2970
  %v2991 = vsub.f32 %v2947, %v2971
  %v2992 = vadd.f32 %v2984, 1e-05
  %v2993 = vadd.f32 %v2985, 1e-05
  %v2994 = vadd.f32 %v2986, 1e-05
  %v2995 = vadd.f32 %v2987, 1e-05
  %v2996 = vrsqrt.pop %v2992
  %v2997 = vmul.f32 %v2996, %v2992
  %v2998 = vmul.f32 %v2997, %v2996
  %v2999 = vmul.f32 0.5, %v2998
  %v3000 = vsub.f32 1.5, %v2999
  %v3001 = vmul.f32 %v2996, %v3000
  %vm3002 = vweird.f32 %v2992
  %vm3003 = vweird.f32 %v2996
  %vm3004 = vmor %vm3002, %vm3003
  %v3005 = vsel %vm3004, %v2996, %v3001
  %v3006 = vrsqrt.pop %v2993
  %v3007 = vmul.f32 %v3006, %v2993
  %v3008 = vmul.f32 %v3007, %v3006
  %v3009 = vmul.f32 0.5, %v3008
  %v3010 = vsub.f32 1.5, %v3009
  %v3011 = vmul.f32 %v3006, %v3010
  %vm3012 = vweird.f32 %v2993
  %vm3013 = vweird.f32 %v3006
  %vm3014 = vmor %vm3012, %vm3013
  %v3015 = vsel %vm3014, %v3006, %v3011
  %v3016 = vrsqrt.pop %v2994
  %v3017 = vmul.f32 %v3016, %v2994
  %v3018 = vmul.f32 %v3017, %v3016
  %v3019 = vmul.f32 0.5, %v3018
  %v3020 = vsub.f32 1.5, %v3019
  %v3021 = vmul.f32 %v3016, %v3020
  %vm3022 = vweird.f32 %v2994
  %vm3023 = vweird.f32 %v3016
  %vm3024 = vmor %vm3022, %vm3023
  %v3025 = vsel %vm3024, %v3016, %v3021
  %v3026 = vrsqrt.pop %v2995
  %v3027 = vmul.f32 %v3026, %v2995
  %v3028 = vmul.f32 %v3027, %v3026
  %v3029 = vmul.f32 0.5, %v3028
  %v3030 = vsub.f32 1.5, %v3029
  %v3031 = vmul.f32 %v3026, %v3030
  %vm3032 = vweird.f32 %v2995
  %vm3033 = vweird.f32 %v3026
  %vm3034 = vmor %vm3032, %vm3033
  %v3035 = vsel %vm3034, %v3026, %v3031
  %v3036 = vmul.f32 %v42, %v3005
  %v3037 = vmul.f32 %v43, %v3015
  %v3038 = vmul.f32 %v44, %v3025
  %v3039 = vmul.f32 %v45, %v3035
  %3041 = vset.pattern.permute.xlu0 7
  %3042 = vperm.xlu0 %3041, %v3036
  %v3043 = vpop.permute.xlu0 %3042
  %3046 = vset.pattern.permute.xlu0 7
  %3047 = vperm.xlu0 %3046, %v3037
  %v3048 = vpop.permute.xlu0 %3047
  %3051 = vset.pattern.permute.xlu0 7
  %3052 = vperm.xlu0 %3051, %v3038
  %v3053 = vpop.permute.xlu0 %3052
  %3056 = vset.pattern.permute.xlu0 7
  %3057 = vperm.xlu0 %3056, %v3039
  %v3058 = vpop.permute.xlu0 %3057
  %v3060 = vmul.f32 %v2988, %v3043
  %v3061 = vmul.f32 %v2989, %v3048
  %v3062 = vmul.f32 %v2990, %v3053
  %v3063 = vmul.f32 %v2991, %v3058
  %3064 = vset.pattern.permute.xlu0 8
  %3065 = vperm.xlu0 %3064, %v42
  %v3066 = vpop.permute.xlu0 %3065
  %3068 = vset.pattern.permute.xlu0 8
  %3069 = vperm.xlu0 %3068, %v43
  %v3070 = vpop.permute.xlu0 %3069
  %3072 = vset.pattern.permute.xlu0 8
  %3073 = vperm.xlu0 %3072, %v44
  %v3074 = vpop.permute.xlu0 %3073
  %3076 = vset.pattern.permute.xlu0 8
  %3077 = vperm.xlu0 %3076, %v45
  %v3078 = vpop.permute.xlu0 %3077
  %v3080 = vadd.f32 %v3060, %v3066
  %v3081 = vadd.f32 %v3061, %v3070
  %v3082 = vadd.f32 %v3062, %v3074
  %v3083 = vadd.f32 %v3063, %v3078
  %3084 = vst [vmem:[#allocation2 + $0x8] sm:$0xff] %v3080
  %3085 = vst [vmem:[#allocation2 + $0x20] sm:$0xff] %v3081
  %3086 = vst [vmem:[#allocation2 + $0x38] sm:$0xff] %v3082
  %3087 = vst [vmem:[#allocation2 + $0x50] sm:$0xff] %v3083
  %s3088 = scalar_lea.vmem %s3, 32
  %v3089 = vld [vmem:[%s3088] sm:$0xff]
  %v3090 = vld [vmem:[%s3088 + $0x8] sm:$0xff]
  %v3091 = vld [vmem:[%s3088 + $0x10] sm:$0xff]
  %v3092 = vld [vmem:[%s3088 + $0x18] sm:$0xff]
  %v3093 = vld [vmem:[#allocation2] sm:$0xff]
  %v3094 = vld [vmem:[#allocation2 + $0x8] sm:$0xff]
  %v3095 = vld [vmem:[#allocation2 + $0x18] sm:$0xff]
  %v3096 = vld [vmem:[#allocation2 + $0x20] sm:$0xff]
  %v3097 = vld [vmem:[#allocation2 + $0x30] sm:$0xff]
  %v3098 = vld [vmem:[#allocation2 + $0x38] sm:$0xff]
  %v3099 = vld [vmem:[#allocation2 + $0x48] sm:$0xff]
  %v3100 = vld [vmem:[#allocation2 + $0x50] sm:$0xff]
  %v3101 = vld [vmem:[%s4] sm:$0x1]
  %v3102 = vperm.slane %v3101, 0
  %3104 = vrot.lane.b32.xlu0 %v3102, 110
  %v3105 = vpop.permute.xlu0 %3104
  %v3107 = vmul.f32 %v3093, %v3105
  %v3108 = vmul.f32 %v3094, %v3105
  %v3109 = vmul.f32 %v3095, %v3105
  %v3110 = vmul.f32 %v3096, %v3105
  %v3111 = vmul.f32 %v3097, %v3105
  %v3112 = vmul.f32 %v3098, %v3105
  %v3113 = vmul.f32 %v3099, %v3105
  %v3114 = vmul.f32 %v3100, %v3105
  %3116 = vset.pattern.permute.xlu0 0
  %3117 = vperm.xlu0 %3116, %v3089
  %v3118 = vpop.permute.xlu0 %3117
  %3121 = vset.pattern.permute.xlu0 0
  %3122 = vperm.xlu0 %3121, %v3090
  %v3123 = vpop.permute.xlu0 %3122
  %3126 = vset.pattern.permute.xlu0 0
  %3127 = vperm.xlu0 %3126, %v3091
  %v3128 = vpop.permute.xlu0 %3127
  %3131 = vset.pattern.permute.xlu0 0
  %3132 = vperm.xlu0 %3131, %v3092
  %v3133 = vpop.permute.xlu0 %3132
  %v3135 = vmul.f32 %v3107, %v3118
  %v3136 = vmul.f32 %v3108, %v3118
  %v3137 = vmul.f32 %v3109, %v3123
  %v3138 = vmul.f32 %v3110, %v3123
  %v3139 = vmul.f32 %v3111, %v3128
  %v3140 = vmul.f32 %v3112, %v3128
  %v3141 = vmul.f32 %v3113, %v3133
  %v3142 = vmul.f32 %v3114, %v3133
  %v3143 = vadd.f32 %v3135, 0.0
  %v3144 = vadd.f32 %v3136, 0.0
  %v3145 = vadd.f32 %v3137, 0.0
  %v3146 = vadd.f32 %v3138, 0.0
  %v3147 = vadd.f32 %v3139, 0.0
  %v3148 = vadd.f32 %v3140, 0.0
  %v3149 = vadd.f32 %v3141, 0.0
  %v3150 = vadd.f32 %v3142, 0.0
  %v3151 = vld [vmem:[%s4 + $0x1] sm:$0x1]
  %v3152 = vperm.slane %v3151, 0
  %3154 = vrot.lane.b32.xlu0 %v3152, 111
  %v3155 = vpop.permute.xlu0 %3154
  %v3157 = vmul.f32 %v3093, %v3155
  %v3158 = vmul.f32 %v3094, %v3155
  %v3159 = vmul.f32 %v3095, %v3155
  %v3160 = vmul.f32 %v3096, %v3155
  %v3161 = vmul.f32 %v3097, %v3155
  %v3162 = vmul.f32 %v3098, %v3155
  %v3163 = vmul.f32 %v3099, %v3155
  %v3164 = vmul.f32 %v3100, %v3155
  %3165 = vset.pattern.permute.xlu0 1
  %3166 = vperm.xlu0 %3165, %v3089
  %v3167 = vpop.permute.xlu0 %3166
  %3169 = vset.pattern.permute.xlu0 1
  %3170 = vperm.xlu0 %3169, %v3090
  %v3171 = vpop.permute.xlu0 %3170
  %3173 = vset.pattern.permute.xlu0 1
  %3174 = vperm.xlu0 %3173, %v3091
  %v3175 = vpop.permute.xlu0 %3174
  %3177 = vset.pattern.permute.xlu0 1
  %3178 = vperm.xlu0 %3177, %v3092
  %v3179 = vpop.permute.xlu0 %3178
  %v3181 = vmul.f32 %v3157, %v3167
  %v3182 = vmul.f32 %v3158, %v3167
  %v3183 = vmul.f32 %v3159, %v3171
  %v3184 = vmul.f32 %v3160, %v3171
  %v3185 = vmul.f32 %v3161, %v3175
  %v3186 = vmul.f32 %v3162, %v3175
  %v3187 = vmul.f32 %v3163, %v3179
  %v3188 = vmul.f32 %v3164, %v3179
  %3197 = vrot.lane.b32.xlu0 %v3181, 127
  %v3198 = vpop.permute.xlu0 %3197
  %3199 = vrot.lane.b32.xlu0 %v3182, 127
  %v3200 = vpop.permute.xlu0 %3199
  %3201 = vrot.lane.b32.xlu0 %v3183, 127
  %v3202 = vpop.permute.xlu0 %3201
  %3203 = vrot.lane.b32.xlu0 %v3184, 127
  %v3204 = vpop.permute.xlu0 %3203
  %3205 = vrot.lane.b32.xlu0 %v3185, 127
  %v3206 = vpop.permute.xlu0 %3205
  %3207 = vrot.lane.b32.xlu0 %v3186, 127
  %v3208 = vpop.permute.xlu0 %3207
  %3209 = vrot.lane.b32.xlu0 %v3187, 127
  %v3210 = vpop.permute.xlu0 %3209
  %3211 = vrot.lane.b32.xlu0 %v3188, 127
  %v3212 = vpop.permute.xlu0 %3211
  %v3213 = vsel %vm541, %v3198, %v3200
  %v3214 = vsel %vm541, %v3202, %v3204
  %v3215 = vsel %vm541, %v3206, %v3208
  %v3216 = vsel %vm541, %v3210, %v3212
  %v3225 = vadd.f32 %v3143, %v3213
  %v3226 = vadd.f32 %v3144, %v3200
  %v3227 = vadd.f32 %v3145, %v3214
  %v3228 = vadd.f32 %v3146, %v3204
  %v3229 = vadd.f32 %v3147, %v3215
  %v3230 = vadd.f32 %v3148, %v3208
  %v3231 = vadd.f32 %v3149, %v3216
  %v3232 = vadd.f32 %v3150, %v3212
  %v3233 = vld [vmem:[%s4 + $0x2] sm:$0x1]
  %v3234 = vperm.slane %v3233, 0
  %3236 = vrot.lane.b32.xlu0 %v3234, 112
  %v3237 = vpop.permute.xlu0 %3236
  %v3239 = vmul.f32 %v3093, %v3237
  %v3240 = vmul.f32 %v3094, %v3237
  %v3241 = vmul.f32 %v3095, %v3237
  %v3242 = vmul.f32 %v3096, %v3237
  %v3243 = vmul.f32 %v3097, %v3237
  %v3244 = vmul.f32 %v3098, %v3237
  %v3245 = vmul.f32 %v3099, %v3237
  %v3246 = vmul.f32 %v3100, %v3237
  %3247 = vset.pattern.permute.xlu0 2
  %3248 = vperm.xlu0 %3247, %v3089
  %v3249 = vpop.permute.xlu0 %3248
  %3251 = vset.pattern.permute.xlu0 2
  %3252 = vperm.xlu0 %3251, %v3090
  %v3253 = vpop.permute.xlu0 %3252
  %3255 = vset.pattern.permute.xlu0 2
  %3256 = vperm.xlu0 %3255, %v3091
  %v3257 = vpop.permute.xlu0 %3256
  %3259 = vset.pattern.permute.xlu0 2
  %3260 = vperm.xlu0 %3259, %v3092
  %v3261 = vpop.permute.xlu0 %3260
  %v3263 = vmul.f32 %v3239, %v3249
  %v3264 = vmul.f32 %v3240, %v3249
  %v3265 = vmul.f32 %v3241, %v3253
  %v3266 = vmul.f32 %v3242, %v3253
  %v3267 = vmul.f32 %v3243, %v3257
  %v3268 = vmul.f32 %v3244, %v3257
  %v3269 = vmul.f32 %v3245, %v3261
  %v3270 = vmul.f32 %v3246, %v3261
  %3279 = vrot.lane.b32.xlu0 %v3263, 126
  %v3280 = vpop.permute.xlu0 %3279
  %3281 = vrot.lane.b32.xlu0 %v3264, 126
  %v3282 = vpop.permute.xlu0 %3281
  %3283 = vrot.lane.b32.xlu0 %v3265, 126
  %v3284 = vpop.permute.xlu0 %3283
  %3285 = vrot.lane.b32.xlu0 %v3266, 126
  %v3286 = vpop.permute.xlu0 %3285
  %3287 = vrot.lane.b32.xlu0 %v3267, 126
  %v3288 = vpop.permute.xlu0 %3287
  %3289 = vrot.lane.b32.xlu0 %v3268, 126
  %v3290 = vpop.permute.xlu0 %3289
  %3291 = vrot.lane.b32.xlu0 %v3269, 126
  %v3292 = vpop.permute.xlu0 %3291
  %3293 = vrot.lane.b32.xlu0 %v3270, 126
  %v3294 = vpop.permute.xlu0 %3293
  %v3295 = vsel %vm624, %v3280, %v3282
  %v3296 = vsel %vm624, %v3284, %v3286
  %v3297 = vsel %vm624, %v3288, %v3290
  %v3298 = vsel %vm624, %v3292, %v3294
  %v3307 = vadd.f32 %v3225, %v3295
  %v3308 = vadd.f32 %v3226, %v3282
  %v3309 = vadd.f32 %v3227, %v3296
  %v3310 = vadd.f32 %v3228, %v3286
  %v3311 = vadd.f32 %v3229, %v3297
  %v3312 = vadd.f32 %v3230, %v3290
  %v3313 = vadd.f32 %v3231, %v3298
  %v3314 = vadd.f32 %v3232, %v3294
  %v3315 = vld [vmem:[%s4 + $0x3] sm:$0x1]
  %v3316 = vperm.slane %v3315, 0
  %3318 = vrot.lane.b32.xlu0 %v3316, 113
  %v3319 = vpop.permute.xlu0 %3318
  %v3321 = vmul.f32 %v3093, %v3319
  %v3322 = vmul.f32 %v3094, %v3319
  %v3323 = vmul.f32 %v3095, %v3319
  %v3324 = vmul.f32 %v3096, %v3319
  %v3325 = vmul.f32 %v3097, %v3319
  %v3326 = vmul.f32 %v3098, %v3319
  %v3327 = vmul.f32 %v3099, %v3319
  %v3328 = vmul.f32 %v3100, %v3319
  %3329 = vset.pattern.permute.xlu0 3
  %3330 = vperm.xlu0 %3329, %v3089
  %v3331 = vpop.permute.xlu0 %3330
  %3333 = vset.pattern.permute.xlu0 3
  %3334 = vperm.xlu0 %3333, %v3090
  %v3335 = vpop.permute.xlu0 %3334
  %3337 = vset.pattern.permute.xlu0 3
  %3338 = vperm.xlu0 %3337, %v3091
  %v3339 = vpop.permute.xlu0 %3338
  %3341 = vset.pattern.permute.xlu0 3
  %3342 = vperm.xlu0 %3341, %v3092
  %v3343 = vpop.permute.xlu0 %3342
  %v3345 = vmul.f32 %v3321, %v3331
  %v3346 = vmul.f32 %v3322, %v3331
  %v3347 = vmul.f32 %v3323, %v3335
  %v3348 = vmul.f32 %v3324, %v3335
  %v3349 = vmul.f32 %v3325, %v3339
  %v3350 = vmul.f32 %v3326, %v3339
  %v3351 = vmul.f32 %v3327, %v3343
  %v3352 = vmul.f32 %v3328, %v3343
  %3361 = vrot.lane.b32.xlu0 %v3345, 125
  %v3362 = vpop.permute.xlu0 %3361
  %3363 = vrot.lane.b32.xlu0 %v3346, 125
  %v3364 = vpop.permute.xlu0 %3363
  %3365 = vrot.lane.b32.xlu0 %v3347, 125
  %v3366 = vpop.permute.xlu0 %3365
  %3367 = vrot.lane.b32.xlu0 %v3348, 125
  %v3368 = vpop.permute.xlu0 %3367
  %3369 = vrot.lane.b32.xlu0 %v3349, 125
  %v3370 = vpop.permute.xlu0 %3369
  %3371 = vrot.lane.b32.xlu0 %v3350, 125
  %v3372 = vpop.permute.xlu0 %3371
  %3373 = vrot.lane.b32.xlu0 %v3351, 125
  %v3374 = vpop.permute.xlu0 %3373
  %3375 = vrot.lane.b32.xlu0 %v3352, 125
  %v3376 = vpop.permute.xlu0 %3375
  %v3377 = vsel %vm707, %v3362, %v3364
  %v3378 = vsel %vm707, %v3366, %v3368
  %v3379 = vsel %vm707, %v3370, %v3372
  %v3380 = vsel %vm707, %v3374, %v3376
  %v3389 = vadd.f32 %v3307, %v3377
  %v3390 = vadd.f32 %v3308, %v3364
  %v3391 = vadd.f32 %v3309, %v3378
  %v3392 = vadd.f32 %v3310, %v3368
  %v3393 = vadd.f32 %v3311, %v3379
  %v3394 = vadd.f32 %v3312, %v3372
  %v3395 = vadd.f32 %v3313, %v3380
  %v3396 = vadd.f32 %v3314, %v3376
  %v3397 = vld [vmem:[%s4 + $0x4] sm:$0x1]
  %v3398 = vperm.slane %v3397, 0
  %3400 = vrot.lane.b32.xlu0 %v3398, 114
  %v3401 = vpop.permute.xlu0 %3400
  %v3403 = vmul.f32 %v3093, %v3401
  %v3404 = vmul.f32 %v3094, %v3401
  %v3405 = vmul.f32 %v3095, %v3401
  %v3406 = vmul.f32 %v3096, %v3401
  %v3407 = vmul.f32 %v3097, %v3401
  %v3408 = vmul.f32 %v3098, %v3401
  %v3409 = vmul.f32 %v3099, %v3401
  %v3410 = vmul.f32 %v3100, %v3401
  %3411 = vset.pattern.permute.xlu0 4
  %3412 = vperm.xlu0 %3411, %v3089
  %v3413 = vpop.permute.xlu0 %3412
  %3415 = vset.pattern.permute.xlu0 4
  %3416 = vperm.xlu0 %3415, %v3090
  %v3417 = vpop.permute.xlu0 %3416
  %3419 = vset.pattern.permute.xlu0 4
  %3420 = vperm.xlu0 %3419, %v3091
  %v3421 = vpop.permute.xlu0 %3420
  %3423 = vset.pattern.permute.xlu0 4
  %3424 = vperm.xlu0 %3423, %v3092
  %v3425 = vpop.permute.xlu0 %3424
  %v3427 = vmul.f32 %v3403, %v3413
  %v3428 = vmul.f32 %v3404, %v3413
  %v3429 = vmul.f32 %v3405, %v3417
  %v3430 = vmul.f32 %v3406, %v3417
  %v3431 = vmul.f32 %v3407, %v3421
  %v3432 = vmul.f32 %v3408, %v3421
  %v3433 = vmul.f32 %v3409, %v3425
  %v3434 = vmul.f32 %v3410, %v3425
  %3443 = vrot.lane.b32.xlu0 %v3427, 124
  %v3444 = vpop.permute.xlu0 %3443
  %3445 = vrot.lane.b32.xlu0 %v3428, 124
  %v3446 = vpop.permute.xlu0 %3445
  %3447 = vrot.lane.b32.xlu0 %v3429, 124
  %v3448 = vpop.permute.xlu0 %3447
  %3449 = vrot.lane.b32.xlu0 %v3430, 124
  %v3450 = vpop.permute.xlu0 %3449
  %3451 = vrot.lane.b32.xlu0 %v3431, 124
  %v3452 = vpop.permute.xlu0 %3451
  %3453 = vrot.lane.b32.xlu0 %v3432, 124
  %v3454 = vpop.permute.xlu0 %3453
  %3455 = vrot.lane.b32.xlu0 %v3433, 124
  %v3456 = vpop.permute.xlu0 %3455
  %3457 = vrot.lane.b32.xlu0 %v3434, 124
  %v3458 = vpop.permute.xlu0 %3457
  %v3459 = vsel %vm790, %v3444, %v3446
  %v3460 = vsel %vm790, %v3448, %v3450
  %v3461 = vsel %vm790, %v3452, %v3454
  %v3462 = vsel %vm790, %v3456, %v3458
  %v3471 = vadd.f32 %v3389, %v3459
  %v3472 = vadd.f32 %v3390, %v3446
  %v3473 = vadd.f32 %v3391, %v3460
  %v3474 = vadd.f32 %v3392, %v3450
  %v3475 = vadd.f32 %v3393, %v3461
  %v3476 = vadd.f32 %v3394, %v3454
  %v3477 = vadd.f32 %v3395, %v3462
  %v3478 = vadd.f32 %v3396, %v3458
  %v3479 = vld [vmem:[%s4 + $0x5] sm:$0x1]
  %v3480 = vperm.slane %v3479, 0
  %3482 = vrot.lane.b32.xlu0 %v3480, 118
  %v3483 = vpop.permute.xlu0 %3482
  %v3485 = vmul.f32 %v3093, %v3483
  %v3486 = vmul.f32 %v3094, %v3483
  %v3487 = vmul.f32 %v3095, %v3483
  %v3488 = vmul.f32 %v3096, %v3483
  %v3489 = vmul.f32 %v3097, %v3483
  %v3490 = vmul.f32 %v3098, %v3483
  %v3491 = vmul.f32 %v3099, %v3483
  %v3492 = vmul.f32 %v3100, %v3483
  %3493 = vset.pattern.permute.xlu0 5
  %3494 = vperm.xlu0 %3493, %v3089
  %v3495 = vpop.permute.xlu0 %3494
  %3497 = vset.pattern.permute.xlu0 5
  %3498 = vperm.xlu0 %3497, %v3090
  %v3499 = vpop.permute.xlu0 %3498
  %3501 = vset.pattern.permute.xlu0 5
  %3502 = vperm.xlu0 %3501, %v3091
  %v3503 = vpop.permute.xlu0 %3502
  %3505 = vset.pattern.permute.xlu0 5
  %3506 = vperm.xlu0 %3505, %v3092
  %v3507 = vpop.permute.xlu0 %3506
  %v3509 = vmul.f32 %v3485, %v3495
  %v3510 = vmul.f32 %v3486, %v3495
  %v3511 = vmul.f32 %v3487, %v3499
  %v3512 = vmul.f32 %v3488, %v3499
  %v3513 = vmul.f32 %v3489, %v3503
  %v3514 = vmul.f32 %v3490, %v3503
  %v3515 = vmul.f32 %v3491, %v3507
  %v3516 = vmul.f32 %v3492, %v3507
  %3525 = vrot.lane.b32.xlu0 %v3509, 120
  %v3526 = vpop.permute.xlu0 %3525
  %3527 = vrot.lane.b32.xlu0 %v3510, 120
  %v3528 = vpop.permute.xlu0 %3527
  %3529 = vrot.lane.b32.xlu0 %v3511, 120
  %v3530 = vpop.permute.xlu0 %3529
  %3531 = vrot.lane.b32.xlu0 %v3512, 120
  %v3532 = vpop.permute.xlu0 %3531
  %3533 = vrot.lane.b32.xlu0 %v3513, 120
  %v3534 = vpop.permute.xlu0 %3533
  %3535 = vrot.lane.b32.xlu0 %v3514, 120
  %v3536 = vpop.permute.xlu0 %3535
  %3537 = vrot.lane.b32.xlu0 %v3515, 120
  %v3538 = vpop.permute.xlu0 %3537
  %3539 = vrot.lane.b32.xlu0 %v3516, 120
  %v3540 = vpop.permute.xlu0 %3539
  %v3541 = vsel %vm873, %v3526, %v3528
  %v3542 = vsel %vm873, %v3530, %v3532
  %v3543 = vsel %vm873, %v3534, %v3536
  %v3544 = vsel %vm873, %v3538, %v3540
  %v3553 = vadd.f32 %v3471, %v3541
  %v3554 = vadd.f32 %v3472, %v3528
  %v3555 = vadd.f32 %v3473, %v3542
  %v3556 = vadd.f32 %v3474, %v3532
  %v3557 = vadd.f32 %v3475, %v3543
  %v3558 = vadd.f32 %v3476, %v3536
  %v3559 = vadd.f32 %v3477, %v3544
  %v3560 = vadd.f32 %v3478, %v3540
  %v3561 = vld [vmem:[%s4 + $0x6] sm:$0x1]
  %v3562 = vperm.slane %v3561, 0
  %3564 = vrot.lane.b32.xlu0 %v3562, 119
  %v3565 = vpop.permute.xlu0 %3564
  %v3567 = vmul.f32 %v3093, %v3565
  %v3568 = vmul.f32 %v3094, %v3565
  %v3569 = vmul.f32 %v3095, %v3565
  %v3570 = vmul.f32 %v3096, %v3565
  %v3571 = vmul.f32 %v3097, %v3565
  %v3572 = vmul.f32 %v3098, %v3565
  %v3573 = vmul.f32 %v3099, %v3565
  %v3574 = vmul.f32 %v3100, %v3565
  %3575 = vset.pattern.permute.xlu0 6
  %3576 = vperm.xlu0 %3575, %v3089
  %v3577 = vpop.permute.xlu0 %3576
  %3579 = vset.pattern.permute.xlu0 6
  %3580 = vperm.xlu0 %3579, %v3090
  %v3581 = vpop.permute.xlu0 %3580
  %3583 = vset.pattern.permute.xlu0 6
  %3584 = vperm.xlu0 %3583, %v3091
  %v3585 = vpop.permute.xlu0 %3584
  %3587 = vset.pattern.permute.xlu0 6
  %3588 = vperm.xlu0 %3587, %v3092
  %v3589 = vpop.permute.xlu0 %3588
  %v3591 = vmul.f32 %v3567, %v3577
  %v3592 = vmul.f32 %v3568, %v3577
  %v3593 = vmul.f32 %v3569, %v3581
  %v3594 = vmul.f32 %v3570, %v3581
  %v3595 = vmul.f32 %v3571, %v3585
  %v3596 = vmul.f32 %v3572, %v3585
  %v3597 = vmul.f32 %v3573, %v3589
  %v3598 = vmul.f32 %v3574, %v3589
  %3607 = vrot.lane.b32.xlu0 %v3591, 119
  %v3608 = vpop.permute.xlu0 %3607
  %3609 = vrot.lane.b32.xlu0 %v3592, 119
  %v3610 = vpop.permute.xlu0 %3609
  %3611 = vrot.lane.b32.xlu0 %v3593, 119
  %v3612 = vpop.permute.xlu0 %3611
  %3613 = vrot.lane.b32.xlu0 %v3594, 119
  %v3614 = vpop.permute.xlu0 %3613
  %3615 = vrot.lane.b32.xlu0 %v3595, 119
  %v3616 = vpop.permute.xlu0 %3615
  %3617 = vrot.lane.b32.xlu0 %v3596, 119
  %v3618 = vpop.permute.xlu0 %3617
  %3619 = vrot.lane.b32.xlu0 %v3597, 119
  %v3620 = vpop.permute.xlu0 %3619
  %3621 = vrot.lane.b32.xlu0 %v3598, 119
  %v3622 = vpop.permute.xlu0 %3621
  %v3623 = vsel %vm956, %v3608, %v3610
  %v3624 = vsel %vm956, %v3612, %v3614
  %v3625 = vsel %vm956, %v3616, %v3618
  %v3626 = vsel %vm956, %v3620, %v3622
  %v3635 = vadd.f32 %v3553, %v3623
  %v3636 = vadd.f32 %v3554, %v3610
  %v3637 = vadd.f32 %v3555, %v3624
  %v3638 = vadd.f32 %v3556, %v3614
  %v3639 = vadd.f32 %v3557, %v3625
  %v3640 = vadd.f32 %v3558, %v3618
  %v3641 = vadd.f32 %v3559, %v3626
  %v3642 = vadd.f32 %v3560, %v3622
  %v3643 = vld [vmem:[%s4 + $0x7] sm:$0x1]
  %v3644 = vperm.slane %v3643, 0
  %3646 = vrot.lane.b32.xlu0 %v3644, 120
  %v3647 = vpop.permute.xlu0 %3646
  %v3649 = vmul.f32 %v3093, %v3647
  %v3650 = vmul.f32 %v3094, %v3647
  %v3651 = vmul.f32 %v3095, %v3647
  %v3652 = vmul.f32 %v3096, %v3647
  %v3653 = vmul.f32 %v3097, %v3647
  %v3654 = vmul.f32 %v3098, %v3647
  %v3655 = vmul.f32 %v3099, %v3647
  %v3656 = vmul.f32 %v3100, %v3647
  %3657 = vset.pattern.permute.xlu0 7
  %3658 = vperm.xlu0 %3657, %v3089
  %v3659 = vpop.permute.xlu0 %3658
  %3661 = vset.pattern.permute.xlu0 7
  %3662 = vperm.xlu0 %3661, %v3090
  %v3663 = vpop.permute.xlu0 %3662
  %3665 = vset.pattern.permute.xlu0 7
  %3666 = vperm.xlu0 %3665, %v3091
  %v3667 = vpop.permute.xlu0 %3666
  %3669 = vset.pattern.permute.xlu0 7
  %3670 = vperm.xlu0 %3669, %v3092
  %v3671 = vpop.permute.xlu0 %3670
  %v3673 = vmul.f32 %v3649, %v3659
  %v3674 = vmul.f32 %v3650, %v3659
  %v3675 = vmul.f32 %v3651, %v3663
  %v3676 = vmul.f32 %v3652, %v3663
  %v3677 = vmul.f32 %v3653, %v3667
  %v3678 = vmul.f32 %v3654, %v3667
  %v3679 = vmul.f32 %v3655, %v3671
  %v3680 = vmul.f32 %v3656, %v3671
  %3689 = vrot.lane.b32.xlu0 %v3673, 118
  %v3690 = vpop.permute.xlu0 %3689
  %3691 = vrot.lane.b32.xlu0 %v3674, 118
  %v3692 = vpop.permute.xlu0 %3691
  %3693 = vrot.lane.b32.xlu0 %v3675, 118
  %v3694 = vpop.permute.xlu0 %3693
  %3695 = vrot.lane.b32.xlu0 %v3676, 118
  %v3696 = vpop.permute.xlu0 %3695
  %3697 = vrot.lane.b32.xlu0 %v3677, 118
  %v3698 = vpop.permute.xlu0 %3697
  %3699 = vrot.lane.b32.xlu0 %v3678, 118
  %v3700 = vpop.permute.xlu0 %3699
  %3701 = vrot.lane.b32.xlu0 %v3679, 118
  %v3702 = vpop.permute.xlu0 %3701
  %3703 = vrot.lane.b32.xlu0 %v3680, 118
  %v3704 = vpop.permute.xlu0 %3703
  %v3705 = vsel %vm1039, %v3690, %v3692
  %v3706 = vsel %vm1039, %v3694, %v3696
  %v3707 = vsel %vm1039, %v3698, %v3700
  %v3708 = vsel %vm1039, %v3702, %v3704
  %v3717 = vadd.f32 %v3635, %v3705
  %v3718 = vadd.f32 %v3636, %v3692
  %v3719 = vadd.f32 %v3637, %v3706
  %v3720 = vadd.f32 %v3638, %v3696
  %v3721 = vadd.f32 %v3639, %v3707
  %v3722 = vadd.f32 %v3640, %v3700
  %v3723 = vadd.f32 %v3641, %v3708
  %v3724 = vadd.f32 %v3642, %v3704
  %v3725 = vld [vmem:[%s4 + $0x8] sm:$0x1]
  %v3726 = vperm.slane %v3725, 0
  %3728 = vrot.lane.b32.xlu0 %v3726, 121
  %v3729 = vpop.permute.xlu0 %3728
  %v3731 = vmul.f32 %v3093, %v3729
  %v3732 = vmul.f32 %v3094, %v3729
  %v3733 = vmul.f32 %v3095, %v3729
  %v3734 = vmul.f32 %v3096, %v3729
  %v3735 = vmul.f32 %v3097, %v3729
  %v3736 = vmul.f32 %v3098, %v3729
  %v3737 = vmul.f32 %v3099, %v3729
  %v3738 = vmul.f32 %v3100, %v3729
  %3739 = vset.pattern.permute.xlu0 8
  %3740 = vperm.xlu0 %3739, %v3089
  %v3741 = vpop.permute.xlu0 %3740
  %3743 = vset.pattern.permute.xlu0 8
  %3744 = vperm.xlu0 %3743, %v3090
  %v3745 = vpop.permute.xlu0 %3744
  %3747 = vset.pattern.permute.xlu0 8
  %3748 = vperm.xlu0 %3747, %v3091
  %v3749 = vpop.permute.xlu0 %3748
  %3751 = vset.pattern.permute.xlu0 8
  %3752 = vperm.xlu0 %3751, %v3092
  %v3753 = vpop.permute.xlu0 %3752
  %v3755 = vmul.f32 %v3731, %v3741
  %v3756 = vmul.f32 %v3732, %v3741
  %v3757 = vmul.f32 %v3733, %v3745
  %v3758 = vmul.f32 %v3734, %v3745
  %v3759 = vmul.f32 %v3735, %v3749
  %v3760 = vmul.f32 %v3736, %v3749
  %v3761 = vmul.f32 %v3737, %v3753
  %v3762 = vmul.f32 %v3738, %v3753
  %3771 = vrot.lane.b32.xlu0 %v3755, 117
  %v3772 = vpop.permute.xlu0 %3771
  %3773 = vrot.lane.b32.xlu0 %v3756, 117
  %v3774 = vpop.permute.xlu0 %3773
  %3775 = vrot.lane.b32.xlu0 %v3757, 117
  %v3776 = vpop.permute.xlu0 %3775
  %3777 = vrot.lane.b32.xlu0 %v3758, 117
  %v3778 = vpop.permute.xlu0 %3777
  %3779 = vrot.lane.b32.xlu0 %v3759, 117
  %v3780 = vpop.permute.xlu0 %3779
  %3781 = vrot.lane.b32.xlu0 %v3760, 117
  %v3782 = vpop.permute.xlu0 %3781
  %3783 = vrot.lane.b32.xlu0 %v3761, 117
  %v3784 = vpop.permute.xlu0 %3783
  %3785 = vrot.lane.b32.xlu0 %v3762, 117
  %v3786 = vpop.permute.xlu0 %3785
  %v3787 = vsel %vm1122, %v3772, %v3774
  %v3788 = vsel %vm1122, %v3776, %v3778
  %v3789 = vsel %vm1122, %v3780, %v3782
  %v3790 = vsel %vm1122, %v3784, %v3786
  %v3799 = vadd.f32 %v3717, %v3787
  %v3800 = vadd.f32 %v3718, %v3774
  %v3801 = vadd.f32 %v3719, %v3788
  %v3802 = vadd.f32 %v3720, %v3778
  %v3803 = vadd.f32 %v3721, %v3789
  %v3804 = vadd.f32 %v3722, %v3782
  %v3805 = vadd.f32 %v3723, %v3790
  %v3806 = vadd.f32 %v3724, %v3786
  %v3807 = vld [vmem:[%s4 + $0x9] sm:$0x1]
  %v3808 = vperm.slane %v3807, 0
  %3810 = vrot.lane.b32.xlu0 %v3808, 122
  %v3811 = vpop.permute.xlu0 %3810
  %v3813 = vmul.f32 %v3093, %v3811
  %v3814 = vmul.f32 %v3094, %v3811
  %v3815 = vmul.f32 %v3095, %v3811
  %v3816 = vmul.f32 %v3096, %v3811
  %v3817 = vmul.f32 %v3097, %v3811
  %v3818 = vmul.f32 %v3098, %v3811
  %v3819 = vmul.f32 %v3099, %v3811
  %v3820 = vmul.f32 %v3100, %v3811
  %3821 = vset.pattern.permute.xlu0 9
  %3822 = vperm.xlu0 %3821, %v3089
  %v3823 = vpop.permute.xlu0 %3822
  %3825 = vset.pattern.permute.xlu0 9
  %3826 = vperm.xlu0 %3825, %v3090
  %v3827 = vpop.permute.xlu0 %3826
  %3829 = vset.pattern.permute.xlu0 9
  %3830 = vperm.xlu0 %3829, %v3091
  %v3831 = vpop.permute.xlu0 %3830
  %3833 = vset.pattern.permute.xlu0 9
  %3834 = vperm.xlu0 %3833, %v3092
  %v3835 = vpop.permute.xlu0 %3834
  %v3837 = vmul.f32 %v3813, %v3823
  %v3838 = vmul.f32 %v3814, %v3823
  %v3839 = vmul.f32 %v3815, %v3827
  %v3840 = vmul.f32 %v3816, %v3827
  %v3841 = vmul.f32 %v3817, %v3831
  %v3842 = vmul.f32 %v3818, %v3831
  %v3843 = vmul.f32 %v3819, %v3835
  %v3844 = vmul.f32 %v3820, %v3835
  %3853 = vrot.lane.b32.xlu0 %v3837, 116
  %v3854 = vpop.permute.xlu0 %3853
  %3855 = vrot.lane.b32.xlu0 %v3838, 116
  %v3856 = vpop.permute.xlu0 %3855
  %3857 = vrot.lane.b32.xlu0 %v3839, 116
  %v3858 = vpop.permute.xlu0 %3857
  %3859 = vrot.lane.b32.xlu0 %v3840, 116
  %v3860 = vpop.permute.xlu0 %3859
  %3861 = vrot.lane.b32.xlu0 %v3841, 116
  %v3862 = vpop.permute.xlu0 %3861
  %3863 = vrot.lane.b32.xlu0 %v3842, 116
  %v3864 = vpop.permute.xlu0 %3863
  %3865 = vrot.lane.b32.xlu0 %v3843, 116
  %v3866 = vpop.permute.xlu0 %3865
  %3867 = vrot.lane.b32.xlu0 %v3844, 116
  %v3868 = vpop.permute.xlu0 %3867
  %v3869 = vsel %vm1205, %v3854, %v3856
  %v3870 = vsel %vm1205, %v3858, %v3860
  %v3871 = vsel %vm1205, %v3862, %v3864
  %v3872 = vsel %vm1205, %v3866, %v3868
  %v3881 = vadd.f32 %v3799, %v3869
  %v3882 = vadd.f32 %v3800, %v3856
  %v3883 = vadd.f32 %v3801, %v3870
  %v3884 = vadd.f32 %v3802, %v3860
  %v3885 = vadd.f32 %v3803, %v3871
  %v3886 = vadd.f32 %v3804, %v3864
  %v3887 = vadd.f32 %v3805, %v3872
  %v3888 = vadd.f32 %v3806, %v3868
  %v3889 = vld [vmem:[%s4 + $0xa] sm:$0x1]
  %v3890 = vperm.slane %v3889, 0
  %3892 = vrot.lane.b32.xlu0 %v3890, 126
  %v3893 = vpop.permute.xlu0 %3892
  %v3895 = vmul.f32 %v3093, %v3893
  %v3896 = vmul.f32 %v3094, %v3893
  %v3897 = vmul.f32 %v3095, %v3893
  %v3898 = vmul.f32 %v3096, %v3893
  %v3899 = vmul.f32 %v3097, %v3893
  %v3900 = vmul.f32 %v3098, %v3893
  %v3901 = vmul.f32 %v3099, %v3893
  %v3902 = vmul.f32 %v3100, %v3893
  %3903 = vset.pattern.permute.xlu0 10
  %3904 = vperm.xlu0 %3903, %v3089
  %v3905 = vpop.permute.xlu0 %3904
  %3907 = vset.pattern.permute.xlu0 10
  %3908 = vperm.xlu0 %3907, %v3090
  %v3909 = vpop.permute.xlu0 %3908
  %3911 = vset.pattern.permute.xlu0 10
  %3912 = vperm.xlu0 %3911, %v3091
  %v3913 = vpop.permute.xlu0 %3912
  %3915 = vset.pattern.permute.xlu0 10
  %3916 = vperm.xlu0 %3915, %v3092
  %v3917 = vpop.permute.xlu0 %3916
  %v3919 = vmul.f32 %v3895, %v3905
  %v3920 = vmul.f32 %v3896, %v3905
  %v3921 = vmul.f32 %v3897, %v3909
  %v3922 = vmul.f32 %v3898, %v3909
  %v3923 = vmul.f32 %v3899, %v3913
  %v3924 = vmul.f32 %v3900, %v3913
  %v3925 = vmul.f32 %v3901, %v3917
  %v3926 = vmul.f32 %v3902, %v3917
  %3935 = vrot.lane.b32.xlu0 %v3919, 112
  %v3936 = vpop.permute.xlu0 %3935
  %3937 = vrot.lane.b32.xlu0 %v3920, 112
  %v3938 = vpop.permute.xlu0 %3937
  %3939 = vrot.lane.b32.xlu0 %v3921, 112
  %v3940 = vpop.permute.xlu0 %3939
  %3941 = vrot.lane.b32.xlu0 %v3922, 112
  %v3942 = vpop.permute.xlu0 %3941
  %3943 = vrot.lane.b32.xlu0 %v3923, 112
  %v3944 = vpop.permute.xlu0 %3943
  %3945 = vrot.lane.b32.xlu0 %v3924, 112
  %v3946 = vpop.permute.xlu0 %3945
  %3947 = vrot.lane.b32.xlu0 %v3925, 112
  %v3948 = vpop.permute.xlu0 %3947
  %3949 = vrot.lane.b32.xlu0 %v3926, 112
  %v3950 = vpop.permute.xlu0 %3949
  %v3951 = vsel %vm1288, %v3936, %v3938
  %v3952 = vsel %vm1288, %v3940, %v3942
  %v3953 = vsel %vm1288, %v3944, %v3946
  %v3954 = vsel %vm1288, %v3948, %v3950
  %v3963 = vadd.f32 %v3881, %v3951
  %v3964 = vadd.f32 %v3882, %v3938
  %v3965 = vadd.f32 %v3883, %v3952
  %v3966 = vadd.f32 %v3884, %v3942
  %v3967 = vadd.f32 %v3885, %v3953
  %v3968 = vadd.f32 %v3886, %v3946
  %v3969 = vadd.f32 %v3887, %v3954
  %v3970 = vadd.f32 %v3888, %v3950
  %v3971 = vld [vmem:[%s4 + $0xb] sm:$0x1]
  %v3972 = vperm.slane %v3971, 0
  %3974 = vrot.lane.b32.xlu0 %v3972, 127
  %v3975 = vpop.permute.xlu0 %3974
  %v3977 = vmul.f32 %v3093, %v3975
  %v3978 = vmul.f32 %v3094, %v3975
  %v3979 = vmul.f32 %v3095, %v3975
  %v3980 = vmul.f32 %v3096, %v3975
  %v3981 = vmul.f32 %v3097, %v3975
  %v3982 = vmul.f32 %v3098, %v3975
  %v3983 = vmul.f32 %v3099, %v3975
  %v3984 = vmul.f32 %v3100, %v3975
  %3985 = vset.pattern.permute.xlu0 11
  %3986 = vperm.xlu0 %3985, %v3089
  %v3987 = vpop.permute.xlu0 %3986
  %3989 = vset.pattern.permute.xlu0 11
  %3990 = vperm.xlu0 %3989, %v3090
  %v3991 = vpop.permute.xlu0 %3990
  %3993 = vset.pattern.permute.xlu0 11
  %3994 = vperm.xlu0 %3993, %v3091
  %v3995 = vpop.permute.xlu0 %3994
  %3997 = vset.pattern.permute.xlu0 11
  %3998 = vperm.xlu0 %3997, %v3092
  %v3999 = vpop.permute.xlu0 %3998
  %v4001 = vmul.f32 %v3977, %v3987
  %v4002 = vmul.f32 %v3978, %v3987
  %v4003 = vmul.f32 %v3979, %v3991
  %v4004 = vmul.f32 %v3980, %v3991
  %v4005 = vmul.f32 %v3981, %v3995
  %v4006 = vmul.f32 %v3982, %v3995
  %v4007 = vmul.f32 %v3983, %v3999
  %v4008 = vmul.f32 %v3984, %v3999
  %4017 = vrot.lane.b32.xlu0 %v4001, 111
  %v4018 = vpop.permute.xlu0 %4017
  %4019 = vrot.lane.b32.xlu0 %v4002, 111
  %v4020 = vpop.permute.xlu0 %4019
  %4021 = vrot.lane.b32.xlu0 %v4003, 111
  %v4022 = vpop.permute.xlu0 %4021
  %4023 = vrot.lane.b32.xlu0 %v4004, 111
  %v4024 = vpop.permute.xlu0 %4023
  %4025 = vrot.lane.b32.xlu0 %v4005, 111
  %v4026 = vpop.permute.xlu0 %4025
  %4027 = vrot.lane.b32.xlu0 %v4006, 111
  %v4028 = vpop.permute.xlu0 %4027
  %4029 = vrot.lane.b32.xlu0 %v4007, 111
  %v4030 = vpop.permute.xlu0 %4029
  %4031 = vrot.lane.b32.xlu0 %v4008, 111
  %v4032 = vpop.permute.xlu0 %4031
  %v4033 = vsel %vm1371, %v4018, %v4020
  %v4034 = vsel %vm1371, %v4022, %v4024
  %v4035 = vsel %vm1371, %v4026, %v4028
  %v4036 = vsel %vm1371, %v4030, %v4032
  %v4045 = vadd.f32 %v3963, %v4033
  %v4046 = vadd.f32 %v3964, %v4020
  %v4047 = vadd.f32 %v3965, %v4034
  %v4048 = vadd.f32 %v3966, %v4024
  %v4049 = vadd.f32 %v3967, %v4035
  %v4050 = vadd.f32 %v3968, %v4028
  %v4051 = vadd.f32 %v3969, %v4036
  %v4052 = vadd.f32 %v3970, %v4032
  %v4053 = vld [vmem:[%s4 + $0xc] sm:$0x1]
  %v4054 = vperm.slane %v4053, 0
  %v4055 = vmul.f32 %v3094, %v4054
  %v4056 = vmul.f32 %v3096, %v4054
  %v4057 = vmul.f32 %v3098, %v4054
  %v4058 = vmul.f32 %v3100, %v4054
  %4059 = vset.pattern.permute.xlu0 12
  %4060 = vperm.xlu0 %4059, %v3089
  %v4061 = vpop.permute.xlu0 %4060
  %4063 = vset.pattern.permute.xlu0 12
  %4064 = vperm.xlu0 %4063, %v3090
  %v4065 = vpop.permute.xlu0 %4064
  %4067 = vset.pattern.permute.xlu0 12
  %4068 = vperm.xlu0 %4067, %v3091
  %v4069 = vpop.permute.xlu0 %4068
  %4071 = vset.pattern.permute.xlu0 12
  %4072 = vperm.xlu0 %4071, %v3092
  %v4073 = vpop.permute.xlu0 %4072
  %v4075 = vmul.f32 %v4055, %v4061
  %v4076 = vmul.f32 %v4056, %v4065
  %v4077 = vmul.f32 %v4057, %v4069
  %v4078 = vmul.f32 %v4058, %v4073
  %4083 = vrot.lane.b32.xlu0 %v4075, 110
  %v4084 = vpop.permute.xlu0 %4083
  %4085 = vrot.lane.b32.xlu0 %v4076, 110
  %v4086 = vpop.permute.xlu0 %4085
  %4087 = vrot.lane.b32.xlu0 %v4077, 110
  %v4088 = vpop.permute.xlu0 %4087
  %4089 = vrot.lane.b32.xlu0 %v4078, 110
  %v4090 = vpop.permute.xlu0 %4089
  %v4095 = vadd.f32 %v4045, %v4084
  %v4096 = vadd.f32 %v4046, %v4084
  %v4097 = vadd.f32 %v4047, %v4086
  %v4098 = vadd.f32 %v4048, %v4086
  %v4099 = vadd.f32 %v4049, %v4088
  %v4100 = vadd.f32 %v4050, %v4088
  %v4101 = vadd.f32 %v4051, %v4090
  %v4102 = vadd.f32 %v4052, %v4090
  %v4103 = vld [vmem:[#allocation2 + $0x8] sm:$0xff]
  %v4104 = vld [vmem:[#allocation2 + $0x10] sm:$0xff]
  %v4105 = vld [vmem:[#allocation2 + $0x20] sm:$0xff]
  %v4106 = vld [vmem:[#allocation2 + $0x28] sm:$0xff]
  %v4107 = vld [vmem:[#allocation2 + $0x38] sm:$0xff]
  %v4108 = vld [vmem:[#allocation2 + $0x40] sm:$0xff]
  %v4109 = vld [vmem:[#allocation2 + $0x50] sm:$0xff]
  %v4110 = vld [vmem:[#allocation2 + $0x58] sm:$0xff]
  %v4111 = vld [vmem:[%s4 + $0xd] sm:$0x1]
  %v4112 = vperm.slane %v4111, 0
  %4114 = vrot.lane.b32.xlu0 %v4112, 1
  %v4115 = vpop.permute.xlu0 %4114
  %v4117 = vmul.f32 %v4103, %v4115
  %v4118 = vmul.f32 %v4104, %v4115
  %v4119 = vmul.f32 %v4105, %v4115
  %v4120 = vmul.f32 %v4106, %v4115
  %v4121 = vmul.f32 %v4107, %v4115
  %v4122 = vmul.f32 %v4108, %v4115
  %v4123 = vmul.f32 %v4109, %v4115
  %v4124 = vmul.f32 %v4110, %v4115
  %4125 = vset.pattern.permute.xlu0 13
  %4126 = vperm.xlu0 %4125, %v3089
  %v4127 = vpop.permute.xlu0 %4126
  %4129 = vset.pattern.permute.xlu0 13
  %4130 = vperm.xlu0 %4129, %v3090
  %v4131 = vpop.permute.xlu0 %4130
  %4133 = vset.pattern.permute.xlu0 13
  %4134 = vperm.xlu0 %4133, %v3091
  %v4135 = vpop.permute.xlu0 %4134
  %4137 = vset.pattern.permute.xlu0 13
  %4138 = vperm.xlu0 %4137, %v3092
  %v4139 = vpop.permute.xlu0 %4138
  %v4141 = vmul.f32 %v4117, %v4127
  %v4142 = vmul.f32 %v4118, %v4127
  %v4143 = vmul.f32 %v4119, %v4131
  %v4144 = vmul.f32 %v4120, %v4131
  %v4145 = vmul.f32 %v4121, %v4135
  %v4146 = vmul.f32 %v4122, %v4135
  %v4147 = vmul.f32 %v4123, %v4139
  %v4148 = vmul.f32 %v4124, %v4139
  %4157 = vrot.lane.b32.xlu0 %v4141, 109
  %v4158 = vpop.permute.xlu0 %4157
  %4159 = vrot.lane.b32.xlu0 %v4142, 109
  %v4160 = vpop.permute.xlu0 %4159
  %4161 = vrot.lane.b32.xlu0 %v4143, 109
  %v4162 = vpop.permute.xlu0 %4161
  %4163 = vrot.lane.b32.xlu0 %v4144, 109
  %v4164 = vpop.permute.xlu0 %4163
  %4165 = vrot.lane.b32.xlu0 %v4145, 109
  %v4166 = vpop.permute.xlu0 %4165
  %4167 = vrot.lane.b32.xlu0 %v4146, 109
  %v4168 = vpop.permute.xlu0 %4167
  %4169 = vrot.lane.b32.xlu0 %v4147, 109
  %v4170 = vpop.permute.xlu0 %4169
  %4171 = vrot.lane.b32.xlu0 %v4148, 109
  %v4172 = vpop.permute.xlu0 %4171
  %v4173 = vsel %vm1512, %v4158, %v4160
  %v4174 = vsel %vm1512, %v4162, %v4164
  %v4175 = vsel %vm1512, %v4166, %v4168
  %v4176 = vsel %vm1512, %v4170, %v4172
  %v4185 = vadd.f32 %v4095, %v4158
  %v4186 = vadd.f32 %v4096, %v4173
  %v4187 = vadd.f32 %v4097, %v4162
  %v4188 = vadd.f32 %v4098, %v4174
  %v4189 = vadd.f32 %v4099, %v4166
  %v4190 = vadd.f32 %v4100, %v4175
  %v4191 = vadd.f32 %v4101, %v4170
  %v4192 = vadd.f32 %v4102, %v4176
  %v4193 = vld [vmem:[%s4 + $0xe] sm:$0x1]
  %v4194 = vperm.slane %v4193, 0
  %4196 = vrot.lane.b32.xlu0 %v4194, 2
  %v4197 = vpop.permute.xlu0 %4196
  %v4199 = vmul.f32 %v4103, %v4197
  %v4200 = vmul.f32 %v4104, %v4197
  %v4201 = vmul.f32 %v4105, %v4197
  %v4202 = vmul.f32 %v4106, %v4197
  %v4203 = vmul.f32 %v4107, %v4197
  %v4204 = vmul.f32 %v4108, %v4197
  %v4205 = vmul.f32 %v4109, %v4197
  %v4206 = vmul.f32 %v4110, %v4197
  %4207 = vset.pattern.permute.xlu0 14
  %4208 = vperm.xlu0 %4207, %v3089
  %v4209 = vpop.permute.xlu0 %4208
  %4211 = vset.pattern.permute.xlu0 14
  %4212 = vperm.xlu0 %4211, %v3090
  %v4213 = vpop.permute.xlu0 %4212
  %4215 = vset.pattern.permute.xlu0 14
  %4216 = vperm.xlu0 %4215, %v3091
  %v4217 = vpop.permute.xlu0 %4216
  %4219 = vset.pattern.permute.xlu0 14
  %4220 = vperm.xlu0 %4219, %v3092
  %v4221 = vpop.permute.xlu0 %4220
  %v4223 = vmul.f32 %v4199, %v4209
  %v4224 = vmul.f32 %v4200, %v4209
  %v4225 = vmul.f32 %v4201, %v4213
  %v4226 = vmul.f32 %v4202, %v4213
  %v4227 = vmul.f32 %v4203, %v4217
  %v4228 = vmul.f32 %v4204, %v4217
  %v4229 = vmul.f32 %v4205, %v4221
  %v4230 = vmul.f32 %v4206, %v4221
  %4239 = vrot.lane.b32.xlu0 %v4223, 108
  %v4240 = vpop.permute.xlu0 %4239
  %4241 = vrot.lane.b32.xlu0 %v4224, 108
  %v4242 = vpop.permute.xlu0 %4241
  %4243 = vrot.lane.b32.xlu0 %v4225, 108
  %v4244 = vpop.permute.xlu0 %4243
  %4245 = vrot.lane.b32.xlu0 %v4226, 108
  %v4246 = vpop.permute.xlu0 %4245
  %4247 = vrot.lane.b32.xlu0 %v4227, 108
  %v4248 = vpop.permute.xlu0 %4247
  %4249 = vrot.lane.b32.xlu0 %v4228, 108
  %v4250 = vpop.permute.xlu0 %4249
  %4251 = vrot.lane.b32.xlu0 %v4229, 108
  %v4252 = vpop.permute.xlu0 %4251
  %4253 = vrot.lane.b32.xlu0 %v4230, 108
  %v4254 = vpop.permute.xlu0 %4253
  %v4255 = vsel %vm1595, %v4240, %v4242
  %v4256 = vsel %vm1595, %v4244, %v4246
  %v4257 = vsel %vm1595, %v4248, %v4250
  %v4258 = vsel %vm1595, %v4252, %v4254
  %v4267 = vadd.f32 %v4185, %v4240
  %v4268 = vadd.f32 %v4186, %v4255
  %v4269 = vadd.f32 %v4187, %v4244
  %v4270 = vadd.f32 %v4188, %v4256
  %v4271 = vadd.f32 %v4189, %v4248
  %v4272 = vadd.f32 %v4190, %v4257
  %v4273 = vadd.f32 %v4191, %v4252
  %v4274 = vadd.f32 %v4192, %v4258
  %v4275 = vld [vmem:[%s4 + $0xf] sm:$0x1]
  %v4276 = vperm.slane %v4275, 0
  %4278 = vrot.lane.b32.xlu0 %v4276, 6
  %v4279 = vpop.permute.xlu0 %4278
  %v4281 = vmul.f32 %v4103, %v4279
  %v4282 = vmul.f32 %v4104, %v4279
  %v4283 = vmul.f32 %v4105, %v4279
  %v4284 = vmul.f32 %v4106, %v4279
  %v4285 = vmul.f32 %v4107, %v4279
  %v4286 = vmul.f32 %v4108, %v4279
  %v4287 = vmul.f32 %v4109, %v4279
  %v4288 = vmul.f32 %v4110, %v4279
  %4289 = vset.pattern.permute.xlu0 15
  %4290 = vperm.xlu0 %4289, %v3089
  %v4291 = vpop.permute.xlu0 %4290
  %4293 = vset.pattern.permute.xlu0 15
  %4294 = vperm.xlu0 %4293, %v3090
  %v4295 = vpop.permute.xlu0 %4294
  %4297 = vset.pattern.permute.xlu0 15
  %4298 = vperm.xlu0 %4297, %v3091
  %v4299 = vpop.permute.xlu0 %4298
  %4301 = vset.pattern.permute.xlu0 15
  %4302 = vperm.xlu0 %4301, %v3092
  %v4303 = vpop.permute.xlu0 %4302
  %v4305 = vmul.f32 %v4281, %v4291
  %v4306 = vmul.f32 %v4282, %v4291
  %v4307 = vmul.f32 %v4283, %v4295
  %v4308 = vmul.f32 %v4284, %v4295
  %v4309 = vmul.f32 %v4285, %v4299
  %v4310 = vmul.f32 %v4286, %v4299
  %v4311 = vmul.f32 %v4287, %v4303
  %v4312 = vmul.f32 %v4288, %v4303
  %4321 = vrot.lane.b32.xlu0 %v4305, 104
  %v4322 = vpop.permute.xlu0 %4321
  %4323 = vrot.lane.b32.xlu0 %v4306, 104
  %v4324 = vpop.permute.xlu0 %4323
  %4325 = vrot.lane.b32.xlu0 %v4307, 104
  %v4326 = vpop.permute.xlu0 %4325
  %4327 = vrot.lane.b32.xlu0 %v4308, 104
  %v4328 = vpop.permute.xlu0 %4327
  %4329 = vrot.lane.b32.xlu0 %v4309, 104
  %v4330 = vpop.permute.xlu0 %4329
  %4331 = vrot.lane.b32.xlu0 %v4310, 104
  %v4332 = vpop.permute.xlu0 %4331
  %4333 = vrot.lane.b32.xlu0 %v4311, 104
  %v4334 = vpop.permute.xlu0 %4333
  %4335 = vrot.lane.b32.xlu0 %v4312, 104
  %v4336 = vpop.permute.xlu0 %4335
  %v4337 = vsel %vm1678, %v4322, %v4324
  %v4338 = vsel %vm1678, %v4326, %v4328
  %v4339 = vsel %vm1678, %v4330, %v4332
  %v4340 = vsel %vm1678, %v4334, %v4336
  %v4349 = vadd.f32 %v4267, %v4322
  %v4350 = vadd.f32 %v4268, %v4337
  %v4351 = vadd.f32 %v4269, %v4326
  %v4352 = vadd.f32 %v4270, %v4338
  %v4353 = vadd.f32 %v4271, %v4330
  %v4354 = vadd.f32 %v4272, %v4339
  %v4355 = vadd.f32 %v4273, %v4334
  %v4356 = vadd.f32 %v4274, %v4340
  %v4357 = vld [vmem:[%s4 + $0x10] sm:$0x1]
  %v4358 = vperm.slane %v4357, 0
  %4360 = vrot.lane.b32.xlu0 %v4358, 7
  %v4361 = vpop.permute.xlu0 %4360
  %v4363 = vmul.f32 %v4103, %v4361
  %v4364 = vmul.f32 %v4104, %v4361
  %v4365 = vmul.f32 %v4105, %v4361
  %v4366 = vmul.f32 %v4106, %v4361
  %v4367 = vmul.f32 %v4107, %v4361
  %v4368 = vmul.f32 %v4108, %v4361
  %v4369 = vmul.f32 %v4109, %v4361
  %v4370 = vmul.f32 %v4110, %v4361
  %4371 = vset.pattern.permute.xlu0 16
  %4372 = vperm.xlu0 %4371, %v3089
  %v4373 = vpop.permute.xlu0 %4372
  %4375 = vset.pattern.permute.xlu0 16
  %4376 = vperm.xlu0 %4375, %v3090
  %v4377 = vpop.permute.xlu0 %4376
  %4379 = vset.pattern.permute.xlu0 16
  %4380 = vperm.xlu0 %4379, %v3091
  %v4381 = vpop.permute.xlu0 %4380
  %4383 = vset.pattern.permute.xlu0 16
  %4384 = vperm.xlu0 %4383, %v3092
  %v4385 = vpop.permute.xlu0 %4384
  %v4387 = vmul.f32 %v4363, %v4373
  %v4388 = vmul.f32 %v4364, %v4373
  %v4389 = vmul.f32 %v4365, %v4377
  %v4390 = vmul.f32 %v4366, %v4377
  %v4391 = vmul.f32 %v4367, %v4381
  %v4392 = vmul.f32 %v4368, %v4381
  %v4393 = vmul.f32 %v4369, %v4385
  %v4394 = vmul.f32 %v4370, %v4385
  %4403 = vrot.lane.b32.xlu0 %v4387, 103
  %v4404 = vpop.permute.xlu0 %4403
  %4405 = vrot.lane.b32.xlu0 %v4388, 103
  %v4406 = vpop.permute.xlu0 %4405
  %4407 = vrot.lane.b32.xlu0 %v4389, 103
  %v4408 = vpop.permute.xlu0 %4407
  %4409 = vrot.lane.b32.xlu0 %v4390, 103
  %v4410 = vpop.permute.xlu0 %4409
  %4411 = vrot.lane.b32.xlu0 %v4391, 103
  %v4412 = vpop.permute.xlu0 %4411
  %4413 = vrot.lane.b32.xlu0 %v4392, 103
  %v4414 = vpop.permute.xlu0 %4413
  %4415 = vrot.lane.b32.xlu0 %v4393, 103
  %v4416 = vpop.permute.xlu0 %4415
  %4417 = vrot.lane.b32.xlu0 %v4394, 103
  %v4418 = vpop.permute.xlu0 %4417
  %v4419 = vsel %vm1761, %v4404, %v4406
  %v4420 = vsel %vm1761, %v4408, %v4410
  %v4421 = vsel %vm1761, %v4412, %v4414
  %v4422 = vsel %vm1761, %v4416, %v4418
  %v4431 = vadd.f32 %v4349, %v4404
  %v4432 = vadd.f32 %v4350, %v4419
  %v4433 = vadd.f32 %v4351, %v4408
  %v4434 = vadd.f32 %v4352, %v4420
  %v4435 = vadd.f32 %v4353, %v4412
  %v4436 = vadd.f32 %v4354, %v4421
  %v4437 = vadd.f32 %v4355, %v4416
  %v4438 = vadd.f32 %v4356, %v4422
  %v4439 = vld [vmem:[%s4 + $0x11] sm:$0x1]
  %v4440 = vperm.slane %v4439, 0
  %4442 = vrot.lane.b32.xlu0 %v4440, 8
  %v4443 = vpop.permute.xlu0 %4442
  %v4445 = vmul.f32 %v4103, %v4443
  %v4446 = vmul.f32 %v4104, %v4443
  %v4447 = vmul.f32 %v4105, %v4443
  %v4448 = vmul.f32 %v4106, %v4443
  %v4449 = vmul.f32 %v4107, %v4443
  %v4450 = vmul.f32 %v4108, %v4443
  %v4451 = vmul.f32 %v4109, %v4443
  %v4452 = vmul.f32 %v4110, %v4443
  %4453 = vset.pattern.permute.xlu0 17
  %4454 = vperm.xlu0 %4453, %v3089
  %v4455 = vpop.permute.xlu0 %4454
  %4457 = vset.pattern.permute.xlu0 17
  %4458 = vperm.xlu0 %4457, %v3090
  %v4459 = vpop.permute.xlu0 %4458
  %4461 = vset.pattern.permute.xlu0 17
  %4462 = vperm.xlu0 %4461, %v3091
  %v4463 = vpop.permute.xlu0 %4462
  %4465 = vset.pattern.permute.xlu0 17
  %4466 = vperm.xlu0 %4465, %v3092
  %v4467 = vpop.permute.xlu0 %4466
  %v4469 = vmul.f32 %v4445, %v4455
  %v4470 = vmul.f32 %v4446, %v4455
  %v4471 = vmul.f32 %v4447, %v4459
  %v4472 = vmul.f32 %v4448, %v4459
  %v4473 = vmul.f32 %v4449, %v4463
  %v4474 = vmul.f32 %v4450, %v4463
  %v4475 = vmul.f32 %v4451, %v4467
  %v4476 = vmul.f32 %v4452, %v4467
  %4485 = vrot.lane.b32.xlu0 %v4469, 102
  %v4486 = vpop.permute.xlu0 %4485
  %4487 = vrot.lane.b32.xlu0 %v4470, 102
  %v4488 = vpop.permute.xlu0 %4487
  %4489 = vrot.lane.b32.xlu0 %v4471, 102
  %v4490 = vpop.permute.xlu0 %4489
  %4491 = vrot.lane.b32.xlu0 %v4472, 102
  %v4492 = vpop.permute.xlu0 %4491
  %4493 = vrot.lane.b32.xlu0 %v4473, 102
  %v4494 = vpop.permute.xlu0 %4493
  %4495 = vrot.lane.b32.xlu0 %v4474, 102
  %v4496 = vpop.permute.xlu0 %4495
  %4497 = vrot.lane.b32.xlu0 %v4475, 102
  %v4498 = vpop.permute.xlu0 %4497
  %4499 = vrot.lane.b32.xlu0 %v4476, 102
  %v4500 = vpop.permute.xlu0 %4499
  %v4501 = vsel %vm1844, %v4486, %v4488
  %v4502 = vsel %vm1844, %v4490, %v4492
  %v4503 = vsel %vm1844, %v4494, %v4496
  %v4504 = vsel %vm1844, %v4498, %v4500
  %v4513 = vadd.f32 %v4431, %v4486
  %v4514 = vadd.f32 %v4432, %v4501
  %v4515 = vadd.f32 %v4433, %v4490
  %v4516 = vadd.f32 %v4434, %v4502
  %v4517 = vadd.f32 %v4435, %v4494
  %v4518 = vadd.f32 %v4436, %v4503
  %v4519 = vadd.f32 %v4437, %v4498
  %v4520 = vadd.f32 %v4438, %v4504
  %v4521 = vld [vmem:[%s4 + $0x12] sm:$0x1]
  %v4522 = vperm.slane %v4521, 0
  %4524 = vrot.lane.b32.xlu0 %v4522, 9
  %v4525 = vpop.permute.xlu0 %4524
  %v4527 = vmul.f32 %v4103, %v4525
  %v4528 = vmul.f32 %v4104, %v4525
  %v4529 = vmul.f32 %v4105, %v4525
  %v4530 = vmul.f32 %v4106, %v4525
  %v4531 = vmul.f32 %v4107, %v4525
  %v4532 = vmul.f32 %v4108, %v4525
  %v4533 = vmul.f32 %v4109, %v4525
  %v4534 = vmul.f32 %v4110, %v4525
  %4535 = vset.pattern.permute.xlu0 18
  %4536 = vperm.xlu0 %4535, %v3089
  %v4537 = vpop.permute.xlu0 %4536
  %4539 = vset.pattern.permute.xlu0 18
  %4540 = vperm.xlu0 %4539, %v3090
  %v4541 = vpop.permute.xlu0 %4540
  %4543 = vset.pattern.permute.xlu0 18
  %4544 = vperm.xlu0 %4543, %v3091
  %v4545 = vpop.permute.xlu0 %4544
  %4547 = vset.pattern.permute.xlu0 18
  %4548 = vperm.xlu0 %4547, %v3092
  %v4549 = vpop.permute.xlu0 %4548
  %v4551 = vmul.f32 %v4527, %v4537
  %v4552 = vmul.f32 %v4528, %v4537
  %v4553 = vmul.f32 %v4529, %v4541
  %v4554 = vmul.f32 %v4530, %v4541
  %v4555 = vmul.f32 %v4531, %v4545
  %v4556 = vmul.f32 %v4532, %v4545
  %v4557 = vmul.f32 %v4533, %v4549
  %v4558 = vmul.f32 %v4534, %v4549
  %4567 = vrot.lane.b32.xlu0 %v4551, 101
  %v4568 = vpop.permute.xlu0 %4567
  %4569 = vrot.lane.b32.xlu0 %v4552, 101
  %v4570 = vpop.permute.xlu0 %4569
  %4571 = vrot.lane.b32.xlu0 %v4553, 101
  %v4572 = vpop.permute.xlu0 %4571
  %4573 = vrot.lane.b32.xlu0 %v4554, 101
  %v4574 = vpop.permute.xlu0 %4573
  %4575 = vrot.lane.b32.xlu0 %v4555, 101
  %v4576 = vpop.permute.xlu0 %4575
  %4577 = vrot.lane.b32.xlu0 %v4556, 101
  %v4578 = vpop.permute.xlu0 %4577
  %4579 = vrot.lane.b32.xlu0 %v4557, 101
  %v4580 = vpop.permute.xlu0 %4579
  %4581 = vrot.lane.b32.xlu0 %v4558, 101
  %v4582 = vpop.permute.xlu0 %4581
  %v4583 = vsel %vm1927, %v4568, %v4570
  %v4584 = vsel %vm1927, %v4572, %v4574
  %v4585 = vsel %vm1927, %v4576, %v4578
  %v4586 = vsel %vm1927, %v4580, %v4582
  %v4595 = vadd.f32 %v4513, %v4568
  %v4596 = vadd.f32 %v4514, %v4583
  %v4597 = vadd.f32 %v4515, %v4572
  %v4598 = vadd.f32 %v4516, %v4584
  %v4599 = vadd.f32 %v4517, %v4576
  %v4600 = vadd.f32 %v4518, %v4585
  %v4601 = vadd.f32 %v4519, %v4580
  %v4602 = vadd.f32 %v4520, %v4586
  %v4603 = vld [vmem:[%s4 + $0x13] sm:$0x1]
  %v4604 = vperm.slane %v4603, 0
  %4606 = vrot.lane.b32.xlu0 %v4604, 10
  %v4607 = vpop.permute.xlu0 %4606
  %v4609 = vmul.f32 %v4103, %v4607
  %v4610 = vmul.f32 %v4104, %v4607
  %v4611 = vmul.f32 %v4105, %v4607
  %v4612 = vmul.f32 %v4106, %v4607
  %v4613 = vmul.f32 %v4107, %v4607
  %v4614 = vmul.f32 %v4108, %v4607
  %v4615 = vmul.f32 %v4109, %v4607
  %v4616 = vmul.f32 %v4110, %v4607
  %4617 = vset.pattern.permute.xlu0 19
  %4618 = vperm.xlu0 %4617, %v3089
  %v4619 = vpop.permute.xlu0 %4618
  %4621 = vset.pattern.permute.xlu0 19
  %4622 = vperm.xlu0 %4621, %v3090
  %v4623 = vpop.permute.xlu0 %4622
  %4625 = vset.pattern.permute.xlu0 19
  %4626 = vperm.xlu0 %4625, %v3091
  %v4627 = vpop.permute.xlu0 %4626
  %4629 = vset.pattern.permute.xlu0 19
  %4630 = vperm.xlu0 %4629, %v3092
  %v4631 = vpop.permute.xlu0 %4630
  %v4633 = vmul.f32 %v4609, %v4619
  %v4634 = vmul.f32 %v4610, %v4619
  %v4635 = vmul.f32 %v4611, %v4623
  %v4636 = vmul.f32 %v4612, %v4623
  %v4637 = vmul.f32 %v4613, %v4627
  %v4638 = vmul.f32 %v4614, %v4627
  %v4639 = vmul.f32 %v4615, %v4631
  %v4640 = vmul.f32 %v4616, %v4631
  %4649 = vrot.lane.b32.xlu0 %v4633, 100
  %v4650 = vpop.permute.xlu0 %4649
  %4651 = vrot.lane.b32.xlu0 %v4634, 100
  %v4652 = vpop.permute.xlu0 %4651
  %4653 = vrot.lane.b32.xlu0 %v4635, 100
  %v4654 = vpop.permute.xlu0 %4653
  %4655 = vrot.lane.b32.xlu0 %v4636, 100
  %v4656 = vpop.permute.xlu0 %4655
  %4657 = vrot.lane.b32.xlu0 %v4637, 100
  %v4658 = vpop.permute.xlu0 %4657
  %4659 = vrot.lane.b32.xlu0 %v4638, 100
  %v4660 = vpop.permute.xlu0 %4659
  %4661 = vrot.lane.b32.xlu0 %v4639, 100
  %v4662 = vpop.permute.xlu0 %4661
  %4663 = vrot.lane.b32.xlu0 %v4640, 100
  %v4664 = vpop.permute.xlu0 %4663
  %v4665 = vsel %vm2010, %v4650, %v4652
  %v4666 = vsel %vm2010, %v4654, %v4656
  %v4667 = vsel %vm2010, %v4658, %v4660
  %v4668 = vsel %vm2010, %v4662, %v4664
  %v4677 = vadd.f32 %v4595, %v4650
  %v4678 = vadd.f32 %v4596, %v4665
  %v4679 = vadd.f32 %v4597, %v4654
  %v4680 = vadd.f32 %v4598, %v4666
  %v4681 = vadd.f32 %v4599, %v4658
  %v4682 = vadd.f32 %v4600, %v4667
  %v4683 = vadd.f32 %v4601, %v4662
  %v4684 = vadd.f32 %v4602, %v4668
  %v4685 = vld [vmem:[%s4 + $0x14] sm:$0x1]
  %v4686 = vperm.slane %v4685, 0
  %4688 = vrot.lane.b32.xlu0 %v4686, 14
  %v4689 = vpop.permute.xlu0 %4688
  %v4691 = vmul.f32 %v4103, %v4689
  %v4692 = vmul.f32 %v4104, %v4689
  %v4693 = vmul.f32 %v4105, %v4689
  %v4694 = vmul.f32 %v4106, %v4689
  %v4695 = vmul.f32 %v4107, %v4689
  %v4696 = vmul.f32 %v4108, %v4689
  %v4697 = vmul.f32 %v4109, %v4689
  %v4698 = vmul.f32 %v4110, %v4689
  %4699 = vset.pattern.permute.xlu0 20
  %4700 = vperm.xlu0 %4699, %v3089
  %v4701 = vpop.permute.xlu0 %4700
  %4703 = vset.pattern.permute.xlu0 20
  %4704 = vperm.xlu0 %4703, %v3090
  %v4705 = vpop.permute.xlu0 %4704
  %4707 = vset.pattern.permute.xlu0 20
  %4708 = vperm.xlu0 %4707, %v3091
  %v4709 = vpop.permute.xlu0 %4708
  %4711 = vset.pattern.permute.xlu0 20
  %4712 = vperm.xlu0 %4711, %v3092
  %v4713 = vpop.permute.xlu0 %4712
  %v4715 = vmul.f32 %v4691, %v4701
  %v4716 = vmul.f32 %v4692, %v4701
  %v4717 = vmul.f32 %v4693, %v4705
  %v4718 = vmul.f32 %v4694, %v4705
  %v4719 = vmul.f32 %v4695, %v4709
  %v4720 = vmul.f32 %v4696, %v4709
  %v4721 = vmul.f32 %v4697, %v4713
  %v4722 = vmul.f32 %v4698, %v4713
  %4731 = vrot.lane.b32.xlu0 %v4715, 96
  %v4732 = vpop.permute.xlu0 %4731
  %4733 = vrot.lane.b32.xlu0 %v4716, 96
  %v4734 = vpop.permute.xlu0 %4733
  %4735 = vrot.lane.b32.xlu0 %v4717, 96
  %v4736 = vpop.permute.xlu0 %4735
  %4737 = vrot.lane.b32.xlu0 %v4718, 96
  %v4738 = vpop.permute.xlu0 %4737
  %4739 = vrot.lane.b32.xlu0 %v4719, 96
  %v4740 = vpop.permute.xlu0 %4739
  %4741 = vrot.lane.b32.xlu0 %v4720, 96
  %v4742 = vpop.permute.xlu0 %4741
  %4743 = vrot.lane.b32.xlu0 %v4721, 96
  %v4744 = vpop.permute.xlu0 %4743
  %4745 = vrot.lane.b32.xlu0 %v4722, 96
  %v4746 = vpop.permute.xlu0 %4745
  %v4747 = vsel %vm2093, %v4732, %v4734
  %v4748 = vsel %vm2093, %v4736, %v4738
  %v4749 = vsel %vm2093, %v4740, %v4742
  %v4750 = vsel %vm2093, %v4744, %v4746
  %v4759 = vadd.f32 %v4677, %v4732
  %v4760 = vadd.f32 %v4678, %v4747
  %v4761 = vadd.f32 %v4679, %v4736
  %v4762 = vadd.f32 %v4680, %v4748
  %v4763 = vadd.f32 %v4681, %v4740
  %v4764 = vadd.f32 %v4682, %v4749
  %v4765 = vadd.f32 %v4683, %v4744
  %v4766 = vadd.f32 %v4684, %v4750
  %v4767 = vld [vmem:[%s4 + $0x15] sm:$0x1]
  %v4768 = vperm.slane %v4767, 0
  %4770 = vrot.lane.b32.xlu0 %v4768, 15
  %v4771 = vpop.permute.xlu0 %4770
  %v4773 = vmul.f32 %v4103, %v4771
  %v4774 = vmul.f32 %v4104, %v4771
  %v4775 = vmul.f32 %v4105, %v4771
  %v4776 = vmul.f32 %v4106, %v4771
  %v4777 = vmul.f32 %v4107, %v4771
  %v4778 = vmul.f32 %v4108, %v4771
  %v4779 = vmul.f32 %v4109, %v4771
  %v4780 = vmul.f32 %v4110, %v4771
  %4781 = vset.pattern.permute.xlu0 21
  %4782 = vperm.xlu0 %4781, %v3089
  %v4783 = vpop.permute.xlu0 %4782
  %4785 = vset.pattern.permute.xlu0 21
  %4786 = vperm.xlu0 %4785, %v3090
  %v4787 = vpop.permute.xlu0 %4786
  %4789 = vset.pattern.permute.xlu0 21
  %4790 = vperm.xlu0 %4789, %v3091
  %v4791 = vpop.permute.xlu0 %4790
  %4793 = vset.pattern.permute.xlu0 21
  %4794 = vperm.xlu0 %4793, %v3092
  %v4795 = vpop.permute.xlu0 %4794
  %v4797 = vmul.f32 %v4773, %v4783
  %v4798 = vmul.f32 %v4774, %v4783
  %v4799 = vmul.f32 %v4775, %v4787
  %v4800 = vmul.f32 %v4776, %v4787
  %v4801 = vmul.f32 %v4777, %v4791
  %v4802 = vmul.f32 %v4778, %v4791
  %v4803 = vmul.f32 %v4779, %v4795
  %v4804 = vmul.f32 %v4780, %v4795
  %4813 = vrot.lane.b32.xlu0 %v4797, 95
  %v4814 = vpop.permute.xlu0 %4813
  %4815 = vrot.lane.b32.xlu0 %v4798, 95
  %v4816 = vpop.permute.xlu0 %4815
  %4817 = vrot.lane.b32.xlu0 %v4799, 95
  %v4818 = vpop.permute.xlu0 %4817
  %4819 = vrot.lane.b32.xlu0 %v4800, 95
  %v4820 = vpop.permute.xlu0 %4819
  %4821 = vrot.lane.b32.xlu0 %v4801, 95
  %v4822 = vpop.permute.xlu0 %4821
  %4823 = vrot.lane.b32.xlu0 %v4802, 95
  %v4824 = vpop.permute.xlu0 %4823
  %4825 = vrot.lane.b32.xlu0 %v4803, 95
  %v4826 = vpop.permute.xlu0 %4825
  %4827 = vrot.lane.b32.xlu0 %v4804, 95
  %v4828 = vpop.permute.xlu0 %4827
  %v4829 = vsel %vm2176, %v4814, %v4816
  %v4830 = vsel %vm2176, %v4818, %v4820
  %v4831 = vsel %vm2176, %v4822, %v4824
  %v4832 = vsel %vm2176, %v4826, %v4828
  %v4841 = vadd.f32 %v4759, %v4814
  %v4842 = vadd.f32 %v4760, %v4829
  %v4843 = vadd.f32 %v4761, %v4818
  %v4844 = vadd.f32 %v4762, %v4830
  %v4845 = vadd.f32 %v4763, %v4822
  %v4846 = vadd.f32 %v4764, %v4831
  %v4847 = vadd.f32 %v4765, %v4826
  %v4848 = vadd.f32 %v4766, %v4832
  %v4849 = vld [vmem:[%s4 + $0x16] sm:$0x1]
  %v4850 = vperm.slane %v4849, 0
  %4852 = vrot.lane.b32.xlu0 %v4850, 16
  %v4853 = vpop.permute.xlu0 %4852
  %v4855 = vmul.f32 %v4103, %v4853
  %v4856 = vmul.f32 %v4104, %v4853
  %v4857 = vmul.f32 %v4105, %v4853
  %v4858 = vmul.f32 %v4106, %v4853
  %v4859 = vmul.f32 %v4107, %v4853
  %v4860 = vmul.f32 %v4108, %v4853
  %v4861 = vmul.f32 %v4109, %v4853
  %v4862 = vmul.f32 %v4110, %v4853
  %4863 = vset.pattern.permute.xlu0 22
  %4864 = vperm.xlu0 %4863, %v3089
  %v4865 = vpop.permute.xlu0 %4864
  %4867 = vset.pattern.permute.xlu0 22
  %4868 = vperm.xlu0 %4867, %v3090
  %v4869 = vpop.permute.xlu0 %4868
  %4871 = vset.pattern.permute.xlu0 22
  %4872 = vperm.xlu0 %4871, %v3091
  %v4873 = vpop.permute.xlu0 %4872
  %4875 = vset.pattern.permute.xlu0 22
  %4876 = vperm.xlu0 %4875, %v3092
  %v4877 = vpop.permute.xlu0 %4876
  %v4879 = vmul.f32 %v4855, %v4865
  %v4880 = vmul.f32 %v4856, %v4865
  %v4881 = vmul.f32 %v4857, %v4869
  %v4882 = vmul.f32 %v4858, %v4869
  %v4883 = vmul.f32 %v4859, %v4873
  %v4884 = vmul.f32 %v4860, %v4873
  %v4885 = vmul.f32 %v4861, %v4877
  %v4886 = vmul.f32 %v4862, %v4877
  %4895 = vrot.lane.b32.xlu0 %v4879, 94
  %v4896 = vpop.permute.xlu0 %4895
  %4897 = vrot.lane.b32.xlu0 %v4880, 94
  %v4898 = vpop.permute.xlu0 %4897
  %4899 = vrot.lane.b32.xlu0 %v4881, 94
  %v4900 = vpop.permute.xlu0 %4899
  %4901 = vrot.lane.b32.xlu0 %v4882, 94
  %v4902 = vpop.permute.xlu0 %4901
  %4903 = vrot.lane.b32.xlu0 %v4883, 94
  %v4904 = vpop.permute.xlu0 %4903
  %4905 = vrot.lane.b32.xlu0 %v4884, 94
  %v4906 = vpop.permute.xlu0 %4905
  %4907 = vrot.lane.b32.xlu0 %v4885, 94
  %v4908 = vpop.permute.xlu0 %4907
  %4909 = vrot.lane.b32.xlu0 %v4886, 94
  %v4910 = vpop.permute.xlu0 %4909
  %v4911 = vsel %vm2259, %v4896, %v4898
  %v4912 = vsel %vm2259, %v4900, %v4902
  %v4913 = vsel %vm2259, %v4904, %v4906
  %v4914 = vsel %vm2259, %v4908, %v4910
  %v4923 = vadd.f32 %v4841, %v4896
  %v4924 = vadd.f32 %v4842, %v4911
  %v4925 = vadd.f32 %v4843, %v4900
  %v4926 = vadd.f32 %v4844, %v4912
  %v4927 = vadd.f32 %v4845, %v4904
  %v4928 = vadd.f32 %v4846, %v4913
  %v4929 = vadd.f32 %v4847, %v4908
  %v4930 = vadd.f32 %v4848, %v4914
  %v4931 = vld [vmem:[%s4 + $0x17] sm:$0x1]
  %v4932 = vperm.slane %v4931, 0
  %4934 = vrot.lane.b32.xlu0 %v4932, 17
  %v4935 = vpop.permute.xlu0 %4934
  %v4937 = vmul.f32 %v4103, %v4935
  %v4938 = vmul.f32 %v4104, %v4935
  %v4939 = vmul.f32 %v4105, %v4935
  %v4940 = vmul.f32 %v4106, %v4935
  %v4941 = vmul.f32 %v4107, %v4935
  %v4942 = vmul.f32 %v4108, %v4935
  %v4943 = vmul.f32 %v4109, %v4935
  %v4944 = vmul.f32 %v4110, %v4935
  %4945 = vset.pattern.permute.xlu0 23
  %4946 = vperm.xlu0 %4945, %v3089
  %v4947 = vpop.permute.xlu0 %4946
  %4949 = vset.pattern.permute.xlu0 23
  %4950 = vperm.xlu0 %4949, %v3090
  %v4951 = vpop.permute.xlu0 %4950
  %4953 = vset.pattern.permute.xlu0 23
  %4954 = vperm.xlu0 %4953, %v3091
  %v4955 = vpop.permute.xlu0 %4954
  %4957 = vset.pattern.permute.xlu0 23
  %4958 = vperm.xlu0 %4957, %v3092
  %v4959 = vpop.permute.xlu0 %4958
  %v4961 = vmul.f32 %v4937, %v4947
  %v4962 = vmul.f32 %v4938, %v4947
  %v4963 = vmul.f32 %v4939, %v4951
  %v4964 = vmul.f32 %v4940, %v4951
  %v4965 = vmul.f32 %v4941, %v4955
  %v4966 = vmul.f32 %v4942, %v4955
  %v4967 = vmul.f32 %v4943, %v4959
  %v4968 = vmul.f32 %v4944, %v4959
  %4977 = vrot.lane.b32.xlu0 %v4961, 93
  %v4978 = vpop.permute.xlu0 %4977
  %4979 = vrot.lane.b32.xlu0 %v4962, 93
  %v4980 = vpop.permute.xlu0 %4979
  %4981 = vrot.lane.b32.xlu0 %v4963, 93
  %v4982 = vpop.permute.xlu0 %4981
  %4983 = vrot.lane.b32.xlu0 %v4964, 93
  %v4984 = vpop.permute.xlu0 %4983
  %4985 = vrot.lane.b32.xlu0 %v4965, 93
  %v4986 = vpop.permute.xlu0 %4985
  %4987 = vrot.lane.b32.xlu0 %v4966, 93
  %v4988 = vpop.permute.xlu0 %4987
  %4989 = vrot.lane.b32.xlu0 %v4967, 93
  %v4990 = vpop.permute.xlu0 %4989
  %4991 = vrot.lane.b32.xlu0 %v4968, 93
  %v4992 = vpop.permute.xlu0 %4991
  %v4993 = vsel %vm2342, %v4978, %v4980
  %v4994 = vsel %vm2342, %v4982, %v4984
  %v4995 = vsel %vm2342, %v4986, %v4988
  %v4996 = vsel %vm2342, %v4990, %v4992
  %v5005 = vadd.f32 %v4923, %v4978
  %v5006 = vadd.f32 %v4924, %v4993
  %v5007 = vadd.f32 %v4925, %v4982
  %v5008 = vadd.f32 %v4926, %v4994
  %v5009 = vadd.f32 %v4927, %v4986
  %v5010 = vadd.f32 %v4928, %v4995
  %v5011 = vadd.f32 %v4929, %v4990
  %v5012 = vadd.f32 %v4930, %v4996
  %v5013 = vld [vmem:[%s4 + $0x18] sm:$0x1]
  %v5014 = vperm.slane %v5013, 0
  %5016 = vrot.lane.b32.xlu0 %v5014, 18
  %v5017 = vpop.permute.xlu0 %5016
  %v5019 = vmul.f32 %v4103, %v5017
  %v5020 = vmul.f32 %v4104, %v5017
  %v5021 = vmul.f32 %v4105, %v5017
  %v5022 = vmul.f32 %v4106, %v5017
  %v5023 = vmul.f32 %v4107, %v5017
  %v5024 = vmul.f32 %v4108, %v5017
  %v5025 = vmul.f32 %v4109, %v5017
  %v5026 = vmul.f32 %v4110, %v5017
  %5027 = vset.pattern.permute.xlu0 24
  %5028 = vperm.xlu0 %5027, %v3089
  %v5029 = vpop.permute.xlu0 %5028
  %5031 = vset.pattern.permute.xlu0 24
  %5032 = vperm.xlu0 %5031, %v3090
  %v5033 = vpop.permute.xlu0 %5032
  %5035 = vset.pattern.permute.xlu0 24
  %5036 = vperm.xlu0 %5035, %v3091
  %v5037 = vpop.permute.xlu0 %5036
  %5039 = vset.pattern.permute.xlu0 24
  %5040 = vperm.xlu0 %5039, %v3092
  %v5041 = vpop.permute.xlu0 %5040
  %v5043 = vmul.f32 %v5019, %v5029
  %v5044 = vmul.f32 %v5020, %v5029
  %v5045 = vmul.f32 %v5021, %v5033
  %v5046 = vmul.f32 %v5022, %v5033
  %v5047 = vmul.f32 %v5023, %v5037
  %v5048 = vmul.f32 %v5024, %v5037
  %v5049 = vmul.f32 %v5025, %v5041
  %v5050 = vmul.f32 %v5026, %v5041
  %5059 = vrot.lane.b32.xlu0 %v5043, 92
  %v5060 = vpop.permute.xlu0 %5059
  %5061 = vrot.lane.b32.xlu0 %v5044, 92
  %v5062 = vpop.permute.xlu0 %5061
  %5063 = vrot.lane.b32.xlu0 %v5045, 92
  %v5064 = vpop.permute.xlu0 %5063
  %5065 = vrot.lane.b32.xlu0 %v5046, 92
  %v5066 = vpop.permute.xlu0 %5065
  %5067 = vrot.lane.b32.xlu0 %v5047, 92
  %v5068 = vpop.permute.xlu0 %5067
  %5069 = vrot.lane.b32.xlu0 %v5048, 92
  %v5070 = vpop.permute.xlu0 %5069
  %5071 = vrot.lane.b32.xlu0 %v5049, 92
  %v5072 = vpop.permute.xlu0 %5071
  %5073 = vrot.lane.b32.xlu0 %v5050, 92
  %v5074 = vpop.permute.xlu0 %5073
  %v5075 = vsel %vm2425, %v5060, %v5062
  %v5076 = vsel %vm2425, %v5064, %v5066
  %v5077 = vsel %vm2425, %v5068, %v5070
  %v5078 = vsel %vm2425, %v5072, %v5074
  %v5087 = vadd.f32 %v5005, %v5060
  %v5088 = vadd.f32 %v5006, %v5075
  %v5089 = vadd.f32 %v5007, %v5064
  %v5090 = vadd.f32 %v5008, %v5076
  %v5091 = vadd.f32 %v5009, %v5068
  %v5092 = vadd.f32 %v5010, %v5077
  %v5093 = vadd.f32 %v5011, %v5072
  %v5094 = vadd.f32 %v5012, %v5078
  %5095 = vset.pattern.permute.xlu0 9
  %5096 = vperm.xlu0 %5095, %v42
  %v5097 = vpop.permute.xlu0 %5096
  %5099 = vset.pattern.permute.xlu0 9
  %5100 = vperm.xlu0 %5099, %v43
  %v5101 = vpop.permute.xlu0 %5100
  %5103 = vset.pattern.permute.xlu0 9
  %5104 = vperm.xlu0 %5103, %v44
  %v5105 = vpop.permute.xlu0 %5104
  %5107 = vset.pattern.permute.xlu0 9
  %5108 = vperm.xlu0 %5107, %v45
  %v5109 = vpop.permute.xlu0 %5108
  %v5111 = vadd.f32 %v5087, %v5097
  %v5112 = vadd.f32 %v5088, %v5097
  %v5113 = vadd.f32 %v5089, %v5101
  %v5114 = vadd.f32 %v5090, %v5101
  %v5115 = vadd.f32 %v5091, %v5105
  %v5116 = vadd.f32 %v5092, %v5105
  %v5117 = vadd.f32 %v5093, %v5109
  %v5118 = vadd.f32 %v5094, %v5109
  %5127 = vrot.lane.b32.xlu0 %v5111, 18
  %v5128 = vpop.permute.xlu0 %5127
  %5129 = vrot.lane.b32.xlu0 %v5112, 18
  %v5130 = vpop.permute.xlu0 %5129
  %5131 = vrot.lane.b32.xlu0 %v5113, 18
  %v5132 = vpop.permute.xlu0 %5131
  %5133 = vrot.lane.b32.xlu0 %v5114, 18
  %v5134 = vpop.permute.xlu0 %5133
  %5135 = vrot.lane.b32.xlu0 %v5115, 18
  %v5136 = vpop.permute.xlu0 %5135
  %5137 = vrot.lane.b32.xlu0 %v5116, 18
  %v5138 = vpop.permute.xlu0 %5137
  %5139 = vrot.lane.b32.xlu0 %v5117, 18
  %v5140 = vpop.permute.xlu0 %5139
  %5141 = vrot.lane.b32.xlu0 %v5118, 18
  %v5142 = vpop.permute.xlu0 %5141
  %v5143 = vsel %vm2494, %v5128, %v5130
  %v5144 = vsel %vm2494, %v5132, %v5134
  %v5145 = vsel %vm2494, %v5136, %v5138
  %v5146 = vsel %vm2494, %v5140, %v5142
  %5151 = vadd.xlane.f32.xlu0 %v5143
  %v5152 = vpop.xlane.xlu0 %5151
  %5153 = vadd.xlane.f32.xlu0 %v5144
  %v5154 = vpop.xlane.xlu0 %5153
  %5155 = vadd.xlane.f32.xlu0 %v5145
  %v5156 = vpop.xlane.xlu0 %5155
  %5157 = vadd.xlane.f32.xlu0 %v5146
  %v5158 = vpop.xlane.xlu0 %5157
  %v5159 = vmul.f32 %v5111, %v5111
  %v5160 = vmul.f32 %v5112, %v5112
  %v5161 = vmul.f32 %v5113, %v5113
  %v5162 = vmul.f32 %v5114, %v5114
  %v5163 = vmul.f32 %v5115, %v5115
  %v5164 = vmul.f32 %v5116, %v5116
  %v5165 = vmul.f32 %v5117, %v5117
  %v5166 = vmul.f32 %v5118, %v5118
  %5175 = vrot.lane.b32.xlu0 %v5159, 18
  %v5176 = vpop.permute.xlu0 %5175
  %5177 = vrot.lane.b32.xlu0 %v5160, 18
  %v5178 = vpop.permute.xlu0 %5177
  %5179 = vrot.lane.b32.xlu0 %v5161, 18
  %v5180 = vpop.permute.xlu0 %5179
  %5181 = vrot.lane.b32.xlu0 %v5162, 18
  %v5182 = vpop.permute.xlu0 %5181
  %5183 = vrot.lane.b32.xlu0 %v5163, 18
  %v5184 = vpop.permute.xlu0 %5183
  %5185 = vrot.lane.b32.xlu0 %v5164, 18
  %v5186 = vpop.permute.xlu0 %5185
  %5187 = vrot.lane.b32.xlu0 %v5165, 18
  %v5188 = vpop.permute.xlu0 %5187
  %5189 = vrot.lane.b32.xlu0 %v5166, 18
  %v5190 = vpop.permute.xlu0 %5189
  %v5191 = vsel %vm2494, %v5176, %v5178
  %v5192 = vsel %vm2494, %v5180, %v5182
  %v5193 = vsel %vm2494, %v5184, %v5186
  %v5194 = vsel %vm2494, %v5188, %v5190
  %5199 = vadd.xlane.f32.xlu0 %v5191
  %v5200 = vpop.xlane.xlu0 %5199
  %5201 = vadd.xlane.f32.xlu0 %v5192
  %v5202 = vpop.xlane.xlu0 %5201
  %5203 = vadd.xlane.f32.xlu0 %v5193
  %v5204 = vpop.xlane.xlu0 %5203
  %5205 = vadd.xlane.f32.xlu0 %v5194
  %v5206 = vpop.xlane.xlu0 %5205
  %v5207 = vmul.f32 %v5152, 0.0078125
  %v5208 = vmul.f32 %v5154, 0.0078125
  %v5209 = vmul.f32 %v5156, 0.0078125
  %v5210 = vmul.f32 %v5158, 0.0078125
  %v5211 = vmul.f32 %v5200, 0.0078125
  %v5212 = vmul.f32 %v5202, 0.0078125
  %v5213 = vmul.f32 %v5204, 0.0078125
  %v5214 = vmul.f32 %v5206, 0.0078125
  %v5215 = vmul.f32 %v5207, %v5207
  %v5216 = vmul.f32 %v5208, %v5208
  %v5217 = vmul.f32 %v5209, %v5209
  %v5218 = vmul.f32 %v5210, %v5210
  %v5219 = vsub.f32 %v5211, %v5215
  %v5220 = vsub.f32 %v5212, %v5216
  %v5221 = vsub.f32 %v5213, %v5217
  %v5222 = vsub.f32 %v5214, %v5218
  %v5223 = vmax.f32 %v5219, 0.0
  %v5224 = vmax.f32 %v5220, 0.0
  %v5225 = vmax.f32 %v5221, 0.0
  %v5226 = vmax.f32 %v5222, 0.0
  %v5227 = vsub.f32 %v5111, %v5207
  %v5228 = vsub.f32 %v5112, %v5207
  %v5229 = vsub.f32 %v5113, %v5208
  %v5230 = vsub.f32 %v5114, %v5208
  %v5231 = vsub.f32 %v5115, %v5209
  %v5232 = vsub.f32 %v5116, %v5209
  %v5233 = vsub.f32 %v5117, %v5210
  %v5234 = vsub.f32 %v5118, %v5210
  %v5235 = vadd.f32 %v5223, 1e-05
  %v5236 = vadd.f32 %v5224, 1e-05
  %v5237 = vadd.f32 %v5225, 1e-05
  %v5238 = vadd.f32 %v5226, 1e-05
  %v5239 = vrsqrt.pop %v5235
  %v5240 = vmul.f32 %v5239, %v5235
  %v5241 = vmul.f32 %v5240, %v5239
  %v5242 = vmul.f32 0.5, %v5241
  %v5243 = vsub.f32 1.5, %v5242
  %v5244 = vmul.f32 %v5239, %v5243
  %vm5245 = vweird.f32 %v5235
  %vm5246 = vweird.f32 %v5239
  %vm5247 = vmor %vm5245, %vm5246
  %v5248 = vsel %vm5247, %v5239, %v5244
  %v5249 = vrsqrt.pop %v5236
  %v5250 = vmul.f32 %v5249, %v5236
  %v5251 = vmul.f32 %v5250, %v5249
  %v5252 = vmul.f32 0.5, %v5251
  %v5253 = vsub.f32 1.5, %v5252
  %v5254 = vmul.f32 %v5249, %v5253
  %vm5255 = vweird.f32 %v5236
  %vm5256 = vweird.f32 %v5249
  %vm5257 = vmor %vm5255, %vm5256
  %v5258 = vsel %vm5257, %v5249, %v5254
  %v5259 = vrsqrt.pop %v5237
  %v5260 = vmul.f32 %v5259, %v5237
  %v5261 = vmul.f32 %v5260, %v5259
  %v5262 = vmul.f32 0.5, %v5261
  %v5263 = vsub.f32 1.5, %v5262
  %v5264 = vmul.f32 %v5259, %v5263
  %vm5265 = vweird.f32 %v5237
  %vm5266 = vweird.f32 %v5259
  %vm5267 = vmor %vm5265, %vm5266
  %v5268 = vsel %vm5267, %v5259, %v5264
  %v5269 = vrsqrt.pop %v5238
  %v5270 = vmul.f32 %v5269, %v5238
  %v5271 = vmul.f32 %v5270, %v5269
  %v5272 = vmul.f32 0.5, %v5271
  %v5273 = vsub.f32 1.5, %v5272
  %v5274 = vmul.f32 %v5269, %v5273
  %vm5275 = vweird.f32 %v5238
  %vm5276 = vweird.f32 %v5269
  %vm5277 = vmor %vm5275, %vm5276
  %v5278 = vsel %vm5277, %v5269, %v5274
  %v5279 = vmul.f32 %v42, %v5248
  %v5280 = vmul.f32 %v43, %v5258
  %v5281 = vmul.f32 %v44, %v5268
  %v5282 = vmul.f32 %v45, %v5278
  %5284 = vset.pattern.permute.xlu0 10
  %5285 = vperm.xlu0 %5284, %v5279
  %v5286 = vpop.permute.xlu0 %5285
  %5289 = vset.pattern.permute.xlu0 10
  %5290 = vperm.xlu0 %5289, %v5280
  %v5291 = vpop.permute.xlu0 %5290
  %5294 = vset.pattern.permute.xlu0 10
  %5295 = vperm.xlu0 %5294, %v5281
  %v5296 = vpop.permute.xlu0 %5295
  %5299 = vset.pattern.permute.xlu0 10
  %5300 = vperm.xlu0 %5299, %v5282
  %v5301 = vpop.permute.xlu0 %5300
  %v5303 = vmul.f32 %v5227, %v5286
  %v5304 = vmul.f32 %v5228, %v5286
  %v5305 = vmul.f32 %v5229, %v5291
  %v5306 = vmul.f32 %v5230, %v5291
  %v5307 = vmul.f32 %v5231, %v5296
  %v5308 = vmul.f32 %v5232, %v5296
  %v5309 = vmul.f32 %v5233, %v5301
  %v5310 = vmul.f32 %v5234, %v5301
  %5311 = vset.pattern.permute.xlu0 11
  %5312 = vperm.xlu0 %5311, %v42
  %v5313 = vpop.permute.xlu0 %5312
  %5315 = vset.pattern.permute.xlu0 11
  %5316 = vperm.xlu0 %5315, %v43
  %v5317 = vpop.permute.xlu0 %5316
  %5319 = vset.pattern.permute.xlu0 11
  %5320 = vperm.xlu0 %5319, %v44
  %v5321 = vpop.permute.xlu0 %5320
  %5323 = vset.pattern.permute.xlu0 11
  %5324 = vperm.xlu0 %5323, %v45
  %v5325 = vpop.permute.xlu0 %5324
  %v5327 = vadd.f32 %v5303, %v5313
  %v5328 = vadd.f32 %v5304, %v5313
  %v5329 = vadd.f32 %v5305, %v5317
  %v5330 = vadd.f32 %v5306, %v5317
  %v5331 = vadd.f32 %v5307, %v5321
  %v5332 = vadd.f32 %v5308, %v5321
  %v5333 = vadd.f32 %v5309, %v5325
  %v5334 = vadd.f32 %v5310, %v5325
  %5339 = vrot.lane.b32.xlu0 %v3080, 110
  %v5340 = vpop.permute.xlu0 %5339
  %5341 = vrot.lane.b32.xlu0 %v3081, 110
  %v5342 = vpop.permute.xlu0 %5341
  %5343 = vrot.lane.b32.xlu0 %v3082, 110
  %v5344 = vpop.permute.xlu0 %5343
  %5345 = vrot.lane.b32.xlu0 %v3083, 110
  %v5346 = vpop.permute.xlu0 %5345
  %v5351 = vadd.f32 %v5327, %v5340
  %v5352 = vadd.f32 %v5328, %v5340
  %v5353 = vadd.f32 %v5329, %v5342
  %v5354 = vadd.f32 %v5330, %v5342
  %v5355 = vadd.f32 %v5331, %v5344
  %v5356 = vadd.f32 %v5332, %v5344
  %v5357 = vadd.f32 %v5333, %v5346
  %v5358 = vadd.f32 %v5334, %v5346
  %s5359 = scalar_lea.vmem %s5, 16
  %v5360 = vld [vmem:[%s5359] sm:$0xf]
  %v5361 = vld [vmem:[%s5359 + $0x4] sm:$0xf]
  %v5362 = vld [vmem:[%s5359 + $0x8] sm:$0xf]
  %v5363 = vld [vmem:[%s5359 + $0xc] sm:$0xf]
  %v5364 = vpack.c.bf16 %v5353, %v5351
  %v5365 = vpack.c.bf16 %v5354, %v5352
  %v5366 = vpack.c.bf16 %v5357, %v5355
  %v5367 = vpack.c.bf16 %v5358, %v5356
  %5368 = vset.pattern.permute.xlu0 12
  %5369 = vperm.xlu0 %5368, %v42
  %v5370 = vpop.permute.xlu0 %5369
  %5372 = vset.pattern.permute.xlu0 12
  %5373 = vperm.xlu0 %5372, %v43
  %v5374 = vpop.permute.xlu0 %5373
  %5376 = vset.pattern.permute.xlu0 12
  %5377 = vperm.xlu0 %5376, %v44
  %v5378 = vpop.permute.xlu0 %5377
  %5380 = vset.pattern.permute.xlu0 12
  %5381 = vperm.xlu0 %5380, %v45
  %v5382 = vpop.permute.xlu0 %5381
  %v5388 = vunpack.c.l.b16 %v5360
  %v5389 = vunpack.c.l.b16 %v5361
  %v5390 = vunpack.c.l.b16 %v5362
  %v5391 = vunpack.c.l.b16 %v5363
  %v5392 = vpack.c.b16 %v5389, %v5388
  %v5393 = vpack.c.b16 %v5391, %v5390
  %5398 = vrot.lane.b32.xlu0 %v5364, 18
  %v5399 = vpop.permute.xlu0 %5398
  %5400 = vrot.lane.b32.xlu0 %v5365, 18
  %v5401 = vpop.permute.xlu0 %5400
  %5402 = vrot.lane.b32.xlu0 %v5366, 18
  %v5403 = vpop.permute.xlu0 %5402
  %5404 = vrot.lane.b32.xlu0 %v5367, 18
  %v5405 = vpop.permute.xlu0 %5404
  %v5406 = vsel %vm2757, %v5399, %v5401
  %v5407 = vsel %vm2757, %v5403, %v5405
  %v5411 = vsel %vm2762, %v5392, 0
  %v5414 = vsel %vm2762, %v5393, 0
  %5416 = vmatpush.bf16.msra.mxu0 0
  %5417 = vmatpush.bf16.msra.mxu0 0
  %5418 = vmatpush.bf16.msra.mxu0 0
  %5419 = vmatpush.bf16.msra.mxu0 0
  %5420 = vmatpush.bf16.msra.mxu0 0
  %5421 = vmatpush.bf16.msra.mxu0 0
  %5422 = vmatpush.bf16.msra.mxu0 %v5407
  %5423 = vmatpush.bf16.msra.mxu0 %v5406
  %5424 = vmatmul.bf16.gmra.mxu0 %v5411
  %v5425 = vpop.f32.mrf.mxu0
  %v5426 = vadd.f32 %v5370, %v5425
  %v5427 = vpop.f32.mrf.mxu0
  %v5428 = vadd.f32 %v5374, %v5427
  %5429 = vmatmul.bf16.gmra.mxu0 %v5414
  %v5430 = vpop.f32.mrf.mxu0
  %v5431 = vadd.f32 %v5378, %v5430
  %v5432 = vpop.f32.mrf.mxu0
  %v5433 = vadd.f32 %v5382, %v5432
  %5434 = vdwg.mxu0
  %v5435 = vmul.f32 %v5426, 0.70710677
  %v5436 = vmul.f32 %v5428, 0.70710677
  %v5437 = vmul.f32 %v5431, 0.70710677
  %v5438 = vmul.f32 %v5433, 0.70710677
  %v5439 = vand.u32 2147483647, %v5435
  %v5440 = vand.u32 2147483647, %v5436
  %v5441 = vand.u32 2147483647, %v5437
  %v5442 = vand.u32 2147483647, %v5438
  %v5443 = vmul.f32 %v5439, 0.3275911
  %v5444 = vmul.f32 %v5440, 0.3275911
  %v5445 = vmul.f32 %v5441, 0.3275911
  %v5446 = vmul.f32 %v5442, 0.3275911
  %v5447 = vadd.f32 %v5443, 1.0
  %v5448 = vadd.f32 %v5444, 1.0
  %v5449 = vadd.f32 %v5445, 1.0
  %v5450 = vadd.f32 %v5446, 1.0
  %v5451 = vrcp.pop %v5447
  %v5452 = vmul.f32 %v5447, %v5451
  %v5453 = vsub.f32 1.0, %v5452
  %v5454 = vmul.f32 %v5451, %v5453
  %v5455 = vadd.f32 %v5451, %v5454
  %vm5456 = vweird.f32 %v5447
  %vm5457 = vweird.f32 %v5451
  %vm5458 = vmor %vm5456, %vm5457
  %v5459 = vsel %vm5458, %v5451, %v5455
  %v5460 = vand.u32 2147483647, %v5447
  %vm5461 = vcmp.eq.f32.partialorder %v5460, 8.507059e+37
  %v5462 = vand.u32 %v5447, 2147483648
  %v5463 = vor.u32 1.1754944e-38, %v5462
  %v5464 = vsel %vm5461, %v5463, %v5459
  %v5465 = vmul.f32 1.0, %v5464
  %v5466 = vrcp.pop %v5448
  %v5467 = vmul.f32 %v5448, %v5466
  %v5468 = vsub.f32 1.0, %v5467
  %v5469 = vmul.f32 %v5466, %v5468
  %v5470 = vadd.f32 %v5466, %v5469
  %vm5471 = vweird.f32 %v5448
  %vm5472 = vweird.f32 %v5466
  %vm5473 = vmor %vm5471, %vm5472
  %v5474 = vsel %vm5473, %v5466, %v5470
  %v5475 = vand.u32 2147483647, %v5448
  %vm5476 = vcmp.eq.f32.partialorder %v5475, 8.507059e+37
  %v5477 = vand.u32 %v5448, 2147483648
  %v5478 = vor.u32 1.1754944e-38, %v5477
  %v5479 = vsel %vm5476, %v5478, %v5474
  %v5480 = vmul.f32 1.0, %v5479
  %v5481 = vrcp.pop %v5449
  %v5482 = vmul.f32 %v5449, %v5481
  %v5483 = vsub.f32 1.0, %v5482
  %v5484 = vmul.f32 %v5481, %v5483
  %v5485 = vadd.f32 %v5481, %v5484
  %vm5486 = vweird.f32 %v5449
  %vm5487 = vweird.f32 %v5481
  %vm5488 = vmor %vm5486, %vm5487
  %v5489 = vsel %vm5488, %v5481, %v5485
  %v5490 = vand.u32 2147483647, %v5449
  %vm5491 = vcmp.eq.f32.partialorder %v5490, 8.507059e+37
  %v5492 = vand.u32 %v5449, 2147483648
  %v5493 = vor.u32 1.1754944e-38, %v5492
  %v5494 = vsel %vm5491, %v5493, %v5489
  %v5495 = vmul.f32 1.0, %v5494
  %v5496 = vrcp.pop %v5450
  %v5497 = vmul.f32 %v5450, %v5496
  %v5498 = vsub.f32 1.0, %v5497
  %v5499 = vmul.f32 %v5496, %v5498
  %v5500 = vadd.f32 %v5496, %v5499
  %vm5501 = vweird.f32 %v5450
  %vm5502 = vweird.f32 %v5496
  %vm5503 = vmor %vm5501, %vm5502
  %v5504 = vsel %vm5503, %v5496, %v5500
  %v5505 = vand.u32 2147483647, %v5450
  %vm5506 = vcmp.eq.f32.partialorder %v5505, 8.507059e+37
  %v5507 = vand.u32 %v5450, 2147483648
  %v5508 = vor.u32 1.1754944e-38, %v5507
  %v5509 = vsel %vm5506, %v5508, %v5504
  %v5510 = vmul.f32 1.0, %v5509
  %v5511 = vmul.f32 %v5465, 1.0614054
  %v5512 = vmul.f32 %v5480, 1.0614054
  %v5513 = vmul.f32 %v5495, 1.0614054
  %v5514 = vmul.f32 %v5510, 1.0614054
  %v5515 = vadd.f32 %v5511, -1.4531521
  %v5516 = vadd.f32 %v5512, -1.4531521
  %v5517 = vadd.f32 %v5513, -1.4531521
  %v5518 = vadd.f32 %v5514, -1.4531521
  %v5519 = vmul.f32 %v5465, %v5515
  %v5520 = vmul.f32 %v5480, %v5516
  %v5521 = vmul.f32 %v5495, %v5517
  %v5522 = vmul.f32 %v5510, %v5518
  %v5523 = vadd.f32 %v5519, 1.4214138
  %v5524 = vadd.f32 %v5520, 1.4214138
  %v5525 = vadd.f32 %v5521, 1.4214138
  %v5526 = vadd.f32 %v5522, 1.4214138
  %v5527 = vmul.f32 %v5465, %v5523
  %v5528 = vmul.f32 %v5480, %v5524
  %v5529 = vmul.f32 %v5495, %v5525
  %v5530 = vmul.f32 %v5510, %v5526
  %v5531 = vadd.f32 %v5527, -0.28449672
  %v5532 = vadd.f32 %v5528, -0.28449672
  %v5533 = vadd.f32 %v5529, -0.28449672
  %v5534 = vadd.f32 %v5530, -0.28449672
  %v5535 = vmul.f32 %v5465, %v5531
  %v5536 = vmul.f32 %v5480, %v5532
  %v5537 = vmul.f32 %v5495, %v5533
  %v5538 = vmul.f32 %v5510, %v5534
  %v5539 = vadd.f32 %v5535, 0.2548296
  %v5540 = vadd.f32 %v5536, 0.2548296
  %v5541 = vadd.f32 %v5537, 0.2548296
  %v5542 = vadd.f32 %v5538, 0.2548296
  %v5543 = vmul.f32 %v5465, %v5539
  %v5544 = vmul.f32 %v5480, %v5540
  %v5545 = vmul.f32 %v5495, %v5541
  %v5546 = vmul.f32 %v5510, %v5542
  %v5547 = vsub.f32 0.0, %v5439
  %v5548 = vsub.f32 0.0, %v5440
  %v5549 = vsub.f32 0.0, %v5441
  %v5550 = vsub.f32 0.0, %v5442
  %v5551 = vmul.f32 %v5547, %v5439
  %v5552 = vmul.f32 %v5548, %v5440
  %v5553 = vmul.f32 %v5549, %v5441
  %v5554 = vmul.f32 %v5550, %v5442
  %v5555 = vmul.f32 %v5551, 1.442695
  %v5556 = vpow.pop %v5555
  %v5557 = vmul.f32 %v5552, 1.442695
  %v5558 = vpow.pop %v5557
  %v5559 = vmul.f32 %v5553, 1.442695
  %v5560 = vpow.pop %v5559
  %v5561 = vmul.f32 %v5554, 1.442695
  %v5562 = vpow.pop %v5561
  %v5563 = vmul.f32 %v5543, %v5556
  %v5564 = vmul.f32 %v5544, %v5558
  %v5565 = vmul.f32 %v5545, %v5560
  %v5566 = vmul.f32 %v5546, %v5562
  %v5567 = vsub.f32 1.0, %v5563
  %v5568 = vsub.f32 1.0, %v5564
  %v5569 = vsub.f32 1.0, %v5565
  %v5570 = vsub.f32 1.0, %v5566
  %vm5571 = vcmp.ge.f32.partialorder %v5435, 0.0
  %vm5572 = vcmp.ge.f32.partialorder %v5436, 0.0
  %vm5573 = vcmp.ge.f32.partialorder %v5437, 0.0
  %vm5574 = vcmp.ge.f32.partialorder %v5438, 0.0
  %v5575 = vsub.f32 0.0, %v5567
  %v5576 = vsub.f32 0.0, %v5568
  %v5577 = vsub.f32 0.0, %v5569
  %v5578 = vsub.f32 0.0, %v5570
  %v5579 = vsel %vm5571, %v5567, %v5575
  %v5580 = vsel %vm5572, %v5568, %v5576
  %v5581 = vsel %vm5573, %v5569, %v5577
  %v5582 = vsel %vm5574, %v5570, %v5578
  %v5583 = vmul.f32 %v5426, 0.5
  %v5584 = vmul.f32 %v5428, 0.5
  %v5585 = vmul.f32 %v5431, 0.5
  %v5586 = vmul.f32 %v5433, 0.5
  %v5587 = vadd.f32 %v5579, 1.0
  %v5588 = vadd.f32 %v5580, 1.0
  %v5589 = vadd.f32 %v5581, 1.0
  %v5590 = vadd.f32 %v5582, 1.0
  %v5591 = vmul.f32 %v5583, %v5587
  %v5592 = vmul.f32 %v5584, %v5588
  %v5593 = vmul.f32 %v5585, %v5589
  %v5594 = vmul.f32 %v5586, %v5590
  %5595 = vadd.xlane.f32.xlu0 %v5591
  %v5596 = vpop.xlane.xlu0 %5595
  %5597 = vadd.xlane.f32.xlu0 %v5592
  %v5598 = vpop.xlane.xlu0 %5597
  %5599 = vadd.xlane.f32.xlu0 %v5593
  %v5600 = vpop.xlane.xlu0 %5599
  %5601 = vadd.xlane.f32.xlu0 %v5594
  %v5602 = vpop.xlane.xlu0 %5601
  %v5603 = vmul.f32 %v5591, %v5591
  %v5604 = vmul.f32 %v5592, %v5592
  %v5605 = vmul.f32 %v5593, %v5593
  %v5606 = vmul.f32 %v5594, %v5594
  %5607 = vadd.xlane.f32.xlu0 %v5603
  %v5608 = vpop.xlane.xlu0 %5607
  %5609 = vadd.xlane.f32.xlu0 %v5604
  %v5610 = vpop.xlane.xlu0 %5609
  %5611 = vadd.xlane.f32.xlu0 %v5605
  %v5612 = vpop.xlane.xlu0 %5611
  %5613 = vadd.xlane.f32.xlu0 %v5606
  %v5614 = vpop.xlane.xlu0 %5613
  %v5615 = vmul.f32 %v5596, 0.0078125
  %v5616 = vmul.f32 %v5598, 0.0078125
  %v5617 = vmul.f32 %v5600, 0.0078125
  %v5618 = vmul.f32 %v5602, 0.0078125
  %v5619 = vmul.f32 %v5608, 0.0078125
  %v5620 = vmul.f32 %v5610, 0.0078125
  %v5621 = vmul.f32 %v5612, 0.0078125
  %v5622 = vmul.f32 %v5614, 0.0078125
  %v5623 = vmul.f32 %v5615, %v5615
  %v5624 = vmul.f32 %v5616, %v5616
  %v5625 = vmul.f32 %v5617, %v5617
  %v5626 = vmul.f32 %v5618, %v5618
  %v5627 = vsub.f32 %v5619, %v5623
  %v5628 = vsub.f32 %v5620, %v5624
  %v5629 = vsub.f32 %v5621, %v5625
  %v5630 = vsub.f32 %v5622, %v5626
  %v5631 = vmax.f32 %v5627, 0.0
  %v5632 = vmax.f32 %v5628, 0.0
  %v5633 = vmax.f32 %v5629, 0.0
  %v5634 = vmax.f32 %v5630, 0.0
  %v5635 = vsub.f32 %v5591, %v5615
  %v5636 = vsub.f32 %v5592, %v5616
  %v5637 = vsub.f32 %v5593, %v5617
  %v5638 = vsub.f32 %v5594, %v5618
  %v5639 = vadd.f32 %v5631, 1e-05
  %v5640 = vadd.f32 %v5632, 1e-05
  %v5641 = vadd.f32 %v5633, 1e-05
  %v5642 = vadd.f32 %v5634, 1e-05
  %v5643 = vrsqrt.pop %v5639
  %v5644 = vmul.f32 %v5643, %v5639
  %v5645 = vmul.f32 %v5644, %v5643
  %v5646 = vmul.f32 0.5, %v5645
  %v5647 = vsub.f32 1.5, %v5646
  %v5648 = vmul.f32 %v5643, %v5647
  %vm5649 = vweird.f32 %v5639
  %vm5650 = vweird.f32 %v5643
  %vm5651 = vmor %vm5649, %vm5650
  %v5652 = vsel %vm5651, %v5643, %v5648
  %v5653 = vrsqrt.pop %v5640
  %v5654 = vmul.f32 %v5653, %v5640
  %v5655 = vmul.f32 %v5654, %v5653
  %v5656 = vmul.f32 0.5, %v5655
  %v5657 = vsub.f32 1.5, %v5656
  %v5658 = vmul.f32 %v5653, %v5657
  %vm5659 = vweird.f32 %v5640
  %vm5660 = vweird.f32 %v5653
  %vm5661 = vmor %vm5659, %vm5660
  %v5662 = vsel %vm5661, %v5653, %v5658
  %v5663 = vrsqrt.pop %v5641
  %v5664 = vmul.f32 %v5663, %v5641
  %v5665 = vmul.f32 %v5664, %v5663
  %v5666 = vmul.f32 0.5, %v5665
  %v5667 = vsub.f32 1.5, %v5666
  %v5668 = vmul.f32 %v5663, %v5667
  %vm5669 = vweird.f32 %v5641
  %vm5670 = vweird.f32 %v5663
  %vm5671 = vmor %vm5669, %vm5670
  %v5672 = vsel %vm5671, %v5663, %v5668
  %v5673 = vrsqrt.pop %v5642
  %v5674 = vmul.f32 %v5673, %v5642
  %v5675 = vmul.f32 %v5674, %v5673
  %v5676 = vmul.f32 0.5, %v5675
  %v5677 = vsub.f32 1.5, %v5676
  %v5678 = vmul.f32 %v5673, %v5677
  %vm5679 = vweird.f32 %v5642
  %vm5680 = vweird.f32 %v5673
  %vm5681 = vmor %vm5679, %vm5680
  %v5682 = vsel %vm5681, %v5673, %v5678
  %v5683 = vmul.f32 %v42, %v5652
  %v5684 = vmul.f32 %v43, %v5662
  %v5685 = vmul.f32 %v44, %v5672
  %v5686 = vmul.f32 %v45, %v5682
  %5688 = vset.pattern.permute.xlu0 13
  %5689 = vperm.xlu0 %5688, %v5683
  %v5690 = vpop.permute.xlu0 %5689
  %5693 = vset.pattern.permute.xlu0 13
  %5694 = vperm.xlu0 %5693, %v5684
  %v5695 = vpop.permute.xlu0 %5694
  %5698 = vset.pattern.permute.xlu0 13
  %5699 = vperm.xlu0 %5698, %v5685
  %v5700 = vpop.permute.xlu0 %5699
  %5703 = vset.pattern.permute.xlu0 13
  %5704 = vperm.xlu0 %5703, %v5686
  %v5705 = vpop.permute.xlu0 %5704
  %v5707 = vmul.f32 %v5635, %v5690
  %v5708 = vmul.f32 %v5636, %v5695
  %v5709 = vmul.f32 %v5637, %v5700
  %v5710 = vmul.f32 %v5638, %v5705
  %5711 = vset.pattern.permute.xlu0 14
  %5712 = vperm.xlu0 %5711, %v42
  %v5713 = vpop.permute.xlu0 %5712
  %5715 = vset.pattern.permute.xlu0 14
  %5716 = vperm.xlu0 %5715, %v43
  %v5717 = vpop.permute.xlu0 %5716
  %5719 = vset.pattern.permute.xlu0 14
  %5720 = vperm.xlu0 %5719, %v44
  %v5721 = vpop.permute.xlu0 %5720
  %5723 = vset.pattern.permute.xlu0 14
  %5724 = vperm.xlu0 %5723, %v45
  %v5725 = vpop.permute.xlu0 %5724
  %v5727 = vadd.f32 %v5707, %v5713
  %v5728 = vadd.f32 %v5708, %v5717
  %v5729 = vadd.f32 %v5709, %v5721
  %v5730 = vadd.f32 %v5710, %v5725
  %v5731 = vld [vmem:[%s7] sm:$0xff]
  %v5732 = vld [vmem:[%s7 + $0x8] sm:$0xff]
  %v5733 = vld [vmem:[%s7 + $0x10] sm:$0xff]
  %v5734 = vld [vmem:[%s7 + $0x18] sm:$0xff]
  %v5735 = vld [vmem:[%s7 + $0x20] sm:$0xff]
  %v5736 = vld [vmem:[%s7 + $0x28] sm:$0xff]
  %v5737 = vld [vmem:[%s7 + $0x30] sm:$0xff]
  %v5738 = vld [vmem:[%s7 + $0x38] sm:$0xff]
  %v5739 = vld [vmem:[%s7 + $0x40] sm:$0xff]
  %v5740 = vld [vmem:[%s7 + $0x48] sm:$0xff]
  %v5741 = vld [vmem:[%s7 + $0x50] sm:$0xff]
  %v5742 = vld [vmem:[%s7 + $0x58] sm:$0xff]
  %v5743 = vld [vmem:[%s7 + $0x60] sm:$0xff]
  %v5744 = vld [vmem:[%s7 + $0x68] sm:$0xff]
  %v5745 = vld [vmem:[%s7 + $0x70] sm:$0xff]
  %v5746 = vld [vmem:[%s7 + $0x78] sm:$0xff]
  %5747 = vmatpush.msra.mxu0 %v5746
  %5748 = vmatpush.msra.mxu0 %v5745
  %5749 = vmatpush.msra.mxu0 %v5744
  %5750 = vmatpush.msra.mxu0 %v5743
  %5751 = vmatpush.msra.mxu0 %v5742
  %5752 = vmatpush.msra.mxu0 %v5741
  %5753 = vmatpush.msra.mxu0 %v5740
  %5754 = vmatpush.msra.mxu0 %v5739
  %5755 = vmatpush.msra.mxu0 %v5738
  %5756 = vmatpush.msra.mxu0 %v5737
  %5757 = vmatpush.msra.mxu0 %v5736
  %5758 = vmatpush.msra.mxu0 %v5735
  %5759 = vmatpush.msra.mxu0 %v5734
  %5760 = vmatpush.msra.mxu0 %v5733
  %5761 = vmatpush.msra.mxu0 %v5732
  %5762 = vmatpush.msra.mxu0 %v5731
  %5763 = vmatmul.f32.gmra.mxu0 %v5727
  %v5764 = vpop.f32.mrf.mxu0
  %v5765 = vadd.f32 0.0, %v5764
  %5766 = vmatmul.f32.gmra.mxu0 %v5728
  %v5767 = vpop.f32.mrf.mxu0
  %v5768 = vadd.f32 0.0, %v5767
  %5769 = vmatmul.f32.gmra.mxu0 %v5729
  %v5770 = vpop.f32.mrf.mxu0
  %v5771 = vadd.f32 0.0, %v5770
  %5772 = vmatmul.f32.gmra.mxu0 %v5730
  %v5773 = vpop.f32.mrf.mxu0
  %v5774 = vadd.f32 0.0, %v5773
  %5775 = vdwg.mxu0
  %v5776 = vld [vmem:[%s6] sm:$0xff]
  %v5777 = vld [vmem:[%s6 + $0x8] sm:$0x3]
  %5779 = vset.pattern.permute.xlu0 32
  %5780 = vperm.xlu0 %5779, %v5776
  %v5781 = vpop.permute.xlu0 %5780
  %5784 = vset.pattern.permute.xlu0 32
  %5785 = vperm.xlu0 %5784, %v5777
  %v5786 = vpop.permute.xlu0 %5785
  %v5788 = vsel %vm2762, %v5776, 0
  %v5790 = vsel %vm2762, %v5777, 0
  %5792 = vmatpush.msra.mxu0 0.0
  %5793 = vmatpush.msra.mxu0 0.0
  %5794 = vmatpush.msra.mxu0 0.0
  %5795 = vmatpush.msra.mxu0 0.0
  %5796 = vmatpush.msra.mxu0 0.0
  %5797 = vmatpush.msra.mxu0 0.0
  %5798 = vmatpush.msra.mxu0 0.0
  %5799 = vmatpush.msra.mxu0 0.0
  %5800 = vmatpush.msra.mxu0 0.0
  %5801 = vmatpush.msra.mxu0 0.0
  %5802 = vmatpush.msra.mxu0 0.0
  %5803 = vmatpush.msra.mxu0 0.0
  %5804 = vmatpush.msra.mxu0 %v5774
  %5805 = vmatpush.msra.mxu0 %v5771
  %5806 = vmatpush.msra.mxu0 %v5768
  %5807 = vmatpush.msra.mxu0 %v5765
  %5808 = vmatmul.f32.gmra.mxu0 %v5788
  %v5809 = vpop.f32.mrf.mxu0
  %v5810 = vadd.f32 %v5781, %v5809
  %5811 = vmatmul.f32.gmra.mxu0 %v5790
  %v5812 = vpop.f32.mrf.mxu0
  %v5813 = vadd.f32 %v5786, %v5812
  %5814 = vdwg.mxu0
  %vm5815 = vcmask 15360
  %5816 = vst.msk [vmem:[%s8] sm:$0xff] %vm5815, %v5810
  %vm5817 = vcmask 9216
  %5818 = vst.msk [vmem:[%s8 + $0x8] sm:$0x3] %vm5817, %v5813
  // Predicated region
  $region34: #{convmixer_forward.1} parent=0 // pred_check
    _
  $region35: #{convmixer_forward.1} parent=0 // pred_check_branch
    %5820 = sbr.rel (0) target = $region37
  $region36: #{convmixer_forward.1} parent=0 // pred_region
    _
  $region37: #{convmixer_forward.1} parent=0 // pred_fallthru
    _
  // Predicated region
  $region38: #{convmixer_forward.1} parent=0 // pred_check
    _
  $region39: #{convmixer_forward.1} parent=0 // pred_check_branch
    %5822 = sbr.rel (0) target = $region41
  $region40: #{convmixer_forward.1} parent=0 // pred_region
    _
  $region41: #{convmixer_forward.1} parent=0 // pred_fallthru
    _

</llo_original>
